<compile_context>
chip_gen: v6e
topology: v6e:2x2x1
jax: 0.10.0
libtpu: 0.0.40
codegen_flags: <defaults>
</compile_context>

<pallas_src>
import functools
import math
import numpy as np
import jax
import jax.numpy as jnp
from jax.experimental import pallas as pl
from jax.experimental.pallas import tpu as pltpu

# ----------------------------- static config --------------------------------
IN_N = 50            # input_n
OUT_N = 25           # output_n
KS = 10              # kernel_size
DCT_N = 10           # dct_n
NODE = 33            # in_features (graph nodes)
H = 64               # d_model (reduced from 512 for the small test)
NUM_STAGE = 2

VL = KS + OUT_N              # 35  (value window length / DCT length)
VN = IN_N - KS - OUT_N + 1   # 16  (number of value windows)
KEY_L = IN_N - OUT_N         # 25  (key sequence length)
F_GCN = 2 * DCT_N            # 20  (GCN input features per node)

BN_SCALE = 1.0 / math.sqrt(1.0 + 1e-5)   # BatchNorm1d eval, fresh running stats


def get_dct_matrix(N):
    dct_m = np.eye(N)
    for k in range(N):
        for i in range(N):
            w = np.sqrt(2.0 / N)
            if k == 0:
                w = np.sqrt(1.0 / N)
            dct_m[k, i] = w * np.cos(np.pi * (i + 0.5) * k / N)
    idct_m = np.linalg.inv(dct_m)
    return dct_m, idct_m


# ------------------------- host-built constant matrices ----------------------
def build_constants():
    dct_m, idct_m = get_dct_matrix(VL)
    dct10 = dct_m[:DCT_N].astype(np.float32)       # (10, 35)
    idct10 = idct_m[:, :DCT_N].astype(np.float32)  # (35, 10)

    # bigd @ src gives the DCT of every value window stacked: row v*10+d.
    bigd = np.zeros((VN * DCT_N, IN_N), np.float32)
    for v in range(VN):
        bigd[v * DCT_N:(v + 1) * DCT_N, v:v + VL] = dct10

    # att (1,VN) @ rep -> att repeated 10x each (1, 160)
    rep = np.zeros((VN, VN * DCT_N), np.float32)
    for v in range(VN):
        rep[v, v * DCT_N:(v + 1) * DCT_N] = 1.0

    # block-diagonal selector: i10[d, v*10+d'] = (d == d')
    i10 = np.tile(np.eye(DCT_N, dtype=np.float32), (1, VN))      # (10, 160)

    # cmat @ src = DCT of the padded last-window trajectory (src[:, idx]).
    cmat = np.zeros((DCT_N, IN_N), np.float32)
    idx = list(range(IN_N - KS, IN_N)) + [IN_N - 1] * OUT_N
    for t, s in enumerate(idx):
        cmat[:, s] += dct10[:, t]

    # idct_m[:, :dct_n] zero-padded to F_GCN so no lane slice is needed.
    idct_pad = np.concatenate(
        [idct10, np.zeros((VL, F_GCN - DCT_N), np.float32)], axis=1)  # (35, 20)

    raw = dict(bigd=bigd, rep=rep, i10=i10, cmat=cmat, idct_pad=idct_pad)
    return {k: jnp.asarray(v) for k, v in raw.items()}


# --------------------------- fused Pallas kernel ------------------------------
def make_kernel(BT):
    LN = BT * NODE               # lane-dense node axis (33 * BT)
    KL1 = BT * KEY_L - 5         # rows after 6-tap conv over stacked keys
    KL2 = KL1 - 4                # rows after 5-tap conv
    QL1 = BT * KS - 5
    QL2 = QL1 - 4

    def kernel(fw_ref, key_ref, qry_ref, srcln_ref,
               wk1_ref, wk2_ref, wq1_ref, wq2_ref,
               bigd_ref, rep_ref, i10_ref, cmat_ref,
               w1t_ref, a1t_ref, b1t_ref,
               wblkt_ref, ablkt_ref, bblkt_ref,
               w7t_ref, a7t_ref, b7t_ref,
               idctp_ref, out_ref):
        key_st = key_ref[0]      # (BT*25, 33)  BT key sequences stacked on rows
        qry_st = qry_ref[0]      # (BT*10, 33)  BT query sequences stacked on rows
        src_ln = srcln_ref[0]    # (50, BT*33)  lane-dense (samples on node axis)
        fw = fw_ref[0, 0]        # fusion weight scalar (SMEM)

        # Conv1d(k) -> ReLU as a sum of shifted matmuls (no lane concats).
        # 1/1000 input scaling is folded into the first-conv weights on host.
        def tap_conv_relu(x, w_ref, ntaps, l_out):
            acc = jnp.dot(x[0:l_out, :], w_ref[0],
                          preferred_element_type=jnp.float32)
            for j in range(1, ntaps):
                acc = acc + jnp.dot(x[j:j + l_out, :], w_ref[j],
                                    preferred_element_type=jnp.float32)
            return jnp.maximum(acc, 0.0)

        # convK / convQ batched along M; rows that straddle a sample boundary
        # are junk and are simply never read below.
        k2_all = tap_conv_relu(tap_conv_relu(key_st, wk1_ref, 6, KL1),
                               wk2_ref, 5, KL2)          # (BT*25-9, 64)
        q2_all = tap_conv_relu(tap_conv_relu(qry_st, wq1_ref, 6, QL1),
                               wq2_ref, 5, QL2)          # (BT*10-9, 64)

        # Shared per-step DCT tensors (lane-dense, one matmul for all samples).
        g_all = jnp.dot(bigd_ref[...], src_ln,
                        preferred_element_type=jnp.float32)       # (160, BT*33)
        dct_traj = jnp.dot(cmat_ref[...], src_ln,
                           preferred_element_type=jnp.float32)    # (10, BT*33)

        rep_m = rep_ref[...]     # (16, 160)
        i10_m = i10_ref[...]     # (10, 160)
        lane_id = jax.lax.broadcasted_iota(jnp.int32, (DCT_N, LN), 1)

        # Per-sample attention (short unrolled loop, all weight loads hoisted).
        dct_att = None
        for b in range(BT):
            q_b = q2_all[b * KS:b * KS + 1, :]                    # (1, 64)
            k_b = k2_all[b * KEY_L:b * KEY_L + VN, :]             # (16, 64)
            score = jax.lax.dot_general(
                q_b, k_b, (((1,), (1,)), ((), ())),
                preferred_element_type=jnp.float32) + 1e-15       # (1, 16)
            # exact division (approx reciprocal is unsafe for ~1e-15 sums)
            att = score / jnp.sum(score, axis=1, keepdims=True)
            att = att * fw                                        # fusion weight
            att_e = i10_m * jnp.dot(att, rep_m,
                                    preferred_element_type=jnp.float32)  # (10,160)
            p_b = jnp.dot(att_e, g_all,
                          preferred_element_type=jnp.float32)     # (10, BT*33)
            if dct_att is None:
                dct_att = p_b
            else:
                # lanes >= b*NODE are overwritten by later samples -> block select
                dct_att = jnp.where(lane_id >= b * NODE, p_b, dct_att)

        # GCN input, feature-major lane-dense: traj features then att features.
        z = jnp.concatenate([dct_traj, dct_att], axis=0)          # (20, BT*33)

        # GraphConvolution in transposed form with block-diagonal A^T:
        #   y^T = W^T @ x^T @ blockdiag(A^T) + b_col
        def gc(wt, at, bt_, x):
            s = jnp.dot(wt, x, preferred_element_type=jnp.float32)
            s = jnp.dot(s, at, preferred_element_type=jnp.float32)
            return s + bt_

        y = jnp.tanh(BN_SCALE * gc(w1t_ref[...], a1t_ref[...], b1t_ref[...], z))
        for st in range(NUM_STAGE):
            y_in = y
            for j in range(2):
                k = 2 * st + j
                y = jnp.tanh(BN_SCALE * gc(wblkt_ref[k], ablkt_ref[k],
                                           bblkt_ref[k], y))
            y = y + y_in
        dct_out = gc(w7t_ref[...], a7t_ref[...], b7t_ref[...], y) + z   # (20, BT*33)

        # inverse DCT of the first dct_n features (idct zero-padded -> no slice)
        out_ref[0] = jnp.dot(idctp_ref[...], dct_out,
                             preferred_element_type=jnp.float32)        # (35, BT*33)

    return kernel


def mix_attention_pallas(key_st, qry_st, src_ln, p, consts, BT):
    G = key_st.shape[0]          # number of grid steps (BT samples each)
    LN = BT * NODE

    def const_spec(shape):
        nd = len(shape)
        return pl.BlockSpec(shape, lambda g, _n=nd: (0,) * _n)

    return pl.pallas_call(
        make_kernel(BT),
        out_shape=jax.ShapeDtypeStruct((G, VL, LN), jnp.float32),
        grid=(G,),
        in_specs=[
            pl.BlockSpec(memory_space=pltpu.MemorySpace.SMEM),            # fusion weight
            pl.BlockSpec((1, BT * KEY_L, NODE), lambda g: (g, 0, 0)),     # stacked keys
            pl.BlockSpec((1, BT * KS, NODE), lambda g: (g, 0, 0)),        # stacked queries
            pl.BlockSpec((1, IN_N, LN), lambda g: (g, 0, 0)),             # lane-dense src
            const_spec((6, NODE, H)), const_spec((5, H, H)),              # convK taps
            const_spec((6, NODE, H)), const_spec((5, H, H)),              # convQ taps
            const_spec((VN * DCT_N, IN_N)), const_spec((VN, VN * DCT_N)),  # bigd, rep
            const_spec((DCT_N, VN * DCT_N)), const_spec((DCT_N, IN_N)),    # i10, cmat
            const_spec((H, F_GCN)), const_spec((LN, LN)), const_spec((H, 1)),      # gc1^T
            const_spec((2 * NUM_STAGE, H, H)),                            # block W^T
            const_spec((2 * NUM_STAGE, LN, LN)),                          # block A^T (blkdiag)
            const_spec((2 * NUM_STAGE, H, 1)),                            # block b
            const_spec((F_GCN, H)), const_spec((LN, LN)), const_spec((F_GCN, 1)),  # gc7^T
            const_spec((VL, F_GCN)),                                      # idct padded
        ],
        out_specs=pl.BlockSpec((1, VL, LN), lambda g: (g, 0, 0)),
        compiler_params=pltpu.CompilerParams(dimension_semantics=("parallel",)),
    )(p["fusion_w"], key_st, qry_st, src_ln,
      p["wk1"], p["wk2"], p["wq1"], p["wq2"],
      consts["bigd"], consts["rep"], consts["i10"], consts["cmat"],
      p["w1t"], p["a1t"], p["b1t"],
      p["wblkt"], p["ablkt"], p["bblkt"],
      p["w7t"], p["a7t"], p["b7t"],
      consts["idct_pad"])


# ----------------------------- parameters ------------------------------------
def init_params(key):
    keys = jax.random.split(key, 24)

    def uni(k, shape, bound):
        return jax.random.uniform(k, shape, jnp.float32, -bound, bound)

    def conv_taps(k, out_c, in_c, ksz, scale=1.0):
        # torch Conv1d weight (out, in, k) -> per-tap layout (k, in, out);
        # cross-correlation: h[t, o] = sum_j x[t+j, :] @ w_taps[j]
        bound = 1.0 / math.sqrt(in_c * ksz)
        w = uni(k, (out_c, in_c, ksz), bound)
        return jnp.transpose(w, (2, 1, 0)) * scale

    def gc_t(kw, ka, kb, fin, fout):
        # GraphConvolution params, pre-transposed for the feature-major kernel
        stdv = 1.0 / math.sqrt(fout)
        W = uni(kw, (fin, fout), stdv)
        A = uni(ka, (NODE, NODE), stdv)
        b = uni(kb, (fout,), stdv)
        return W.T, A.T, b.reshape(fout, 1)

    p = {}
    # 1/1000 scaling of the attention key/query inputs folded into conv-1 taps
    p["wk1"] = conv_taps(keys[0], H, NODE, 6, scale=1e-3)
    p["wk2"] = conv_taps(keys[1], H, H, 5)
    p["wq1"] = conv_taps(keys[2], H, NODE, 6, scale=1e-3)
    p["wq2"] = conv_taps(keys[3], H, H, 5)
    p["fusion_w"] = jnp.ones((1, 1), jnp.float32)   # _dct_att_tmp_weights (n-1 = 1)

    p["w1t"], p["a1t"], p["b1t"] = gc_t(keys[4], keys[5], keys[6], F_GCN, H)
    p["w7t"], p["a7t"], p["b7t"] = gc_t(keys[7], keys[8], keys[9], H, F_GCN)
    wb, ab, bb = [], [], []
    for i in range(2 * NUM_STAGE):
        w, a, b = gc_t(keys[10 + 3 * i], keys[11 + 3 * i], keys[12 + 3 * i], H, H)
        wb.append(w); ab.append(a); bb.append(b)
    p["wblkt"] = jnp.stack(wb)      # (4, H, H)
    p["ablkt"] = jnp.stack(ab)      # (4, NODE, NODE)
    p["bblkt"] = jnp.stack(bb)      # (4, H, 1)
    return p


def prepare_batched_params(p, BT):
    # Block-diagonal A^T (samples share A) so the GCN right-multiply stays a
    # single lane-dense matmul across the whole batch tile.
    eye = jnp.eye(BT, dtype=jnp.float32)
    q = dict(p)
    q["a1t"] = jnp.kron(eye, p["a1t"])
    q["a7t"] = jnp.kron(eye, p["a7t"])
    q["ablkt"] = jnp.stack(
        [jnp.kron(eye, p["ablkt"][k]) for k in range(2 * NUM_STAGE)])
    return q


# ------------------------------ forward pass ----------------------------------
def mix_attention_forward(params_bt, consts, src, BT):
    # src: (B, input_n, in_features)
    B = src.shape[0]
    assert B % BT == 0, "batch must be divisible by BT"
    G = B // BT
    src_tmp = src[:, :IN_N]
    # wrapper-side layout plumbing (cheap XLA ops):
    key_st = src_tmp[:, :KEY_L, :].reshape(G, BT * KEY_L, NODE)
    qry_st = src_tmp[:, IN_N - KS:, :].reshape(G, BT * KS, NODE)
    src_ln = jnp.transpose(src_tmp.reshape(G, BT, IN_N, NODE),
                           (0, 2, 1, 3)).reshape(G, IN_N, BT * NODE)

    out_ln = mix_attention_pallas(key_st, qry_st, src_ln, params_bt, consts, BT)
    out = jnp.transpose(out_ln.reshape(G, VL, BT, NODE),
                        (0, 2, 1, 3)).reshape(B, VL, NODE)
    outputs = out[:, :, None, :]                                   # (B, 35, 1, 33)
    empty = jnp.zeros((0, 0, 0), jnp.float32)                      # torch.empty((0,0,0))
    return outputs, empty, empty, empty


# --------------------------------- main ----------------------------------------
if __name__ == "__main__":
    key = jax.random.PRNGKey(0)
    pkey, xkey = jax.random.split(key)
    base_params = init_params(pkey)
    consts = build_constants()

    B, BT = 2, 2        # whole batch in one grid step for the small test
    params_bt = prepare_batched_params(base_params, BT)

    # deterministic example input (B=2, input_n=50, in_features=33), mm-scale coords
    src = jax.random.normal(xkey, (B, IN_N, NODE), jnp.float32) * 100.0

    fwd = jax.jit(functools.partial(mix_attention_forward, BT=BT))
    outputs, pre_int_pred, phase_pred, int_pred = fwd(params_bt, consts, src)
    jax.block_until_ready(outputs)

    assert outputs.shape == (B, KS + OUT_N, 1, NODE)
    assert bool(jnp.all(jnp.isfinite(outputs)))
    print("KERNEL_OK")
</pallas_src>

<mosaic_0001>
module attributes {stable_mosaic.version = 11 : i64} {
  func.func @kernel(%arg0: i32, %arg1: memref<1x1xf32, #tpu.memory_space<smem>>, %arg2: memref<1x50x33xf32, #tpu.memory_space<vmem>>, %arg3: memref<1x20x33xf32, #tpu.memory_space<vmem>>, %arg4: memref<1x50x66xf32, #tpu.memory_space<vmem>>, %arg5: memref<6x33x64xf32, #tpu.memory_space<vmem>>, %arg6: memref<5x64x64xf32, #tpu.memory_space<vmem>>, %arg7: memref<6x33x64xf32, #tpu.memory_space<vmem>>, %arg8: memref<5x64x64xf32, #tpu.memory_space<vmem>>, %arg9: memref<160x50xf32, #tpu.memory_space<vmem>>, %arg10: memref<16x160xf32, #tpu.memory_space<vmem>>, %arg11: memref<10x160xf32, #tpu.memory_space<vmem>>, %arg12: memref<10x50xf32, #tpu.memory_space<vmem>>, %arg13: memref<64x20xf32, #tpu.memory_space<vmem>>, %arg14: memref<66x66xf32, #tpu.memory_space<vmem>>, %arg15: memref<64x1xf32, #tpu.memory_space<vmem>>, %arg16: memref<4x64x64xf32, #tpu.memory_space<vmem>>, %arg17: memref<4x66x66xf32, #tpu.memory_space<vmem>>, %arg18: memref<4x64x1xf32, #tpu.memory_space<vmem>>, %arg19: memref<20x64xf32, #tpu.memory_space<vmem>>, %arg20: memref<66x66xf32, #tpu.memory_space<vmem>>, %arg21: memref<20x1xf32, #tpu.memory_space<vmem>>, %arg22: memref<35x20xf32, #tpu.memory_space<vmem>>, %arg23: memref<1x35x66xf32, #tpu.memory_space<vmem>>) attributes {dimension_semantics = [#tpu.dimension_semantics<parallel>], iteration_bounds = array<i64: 1>, scalar_prefetch = 0 : i64, scratch_operands = 0 : i64, tpu.core_type = #tpu.core_type<tc>, window_params = [{transform_indices = @transform_0, window_bounds = array<i64: 1, 1>}, {transform_indices = @transform_1, window_bounds = array<i64: 1, 50, 33>}, {transform_indices = @transform_2, window_bounds = array<i64: 1, 20, 33>}, {transform_indices = @transform_3, window_bounds = array<i64: 1, 50, 66>}, {pipeline_mode = #tpu.pipeline_mode<synchronous>, transform_indices = @transform_4, window_bounds = array<i64: 6, 33, 64>}, {pipeline_mode = #tpu.pipeline_mode<synchronous>, transform_indices = @transform_5, window_bounds = array<i64: 5, 64, 64>}, {pipeline_mode = #tpu.pipeline_mode<synchronous>, transform_indices = @transform_6, window_bounds = array<i64: 6, 33, 64>}, {pipeline_mode = #tpu.pipeline_mode<synchronous>, transform_indices = @transform_7, window_bounds = array<i64: 5, 64, 64>}, {pipeline_mode = #tpu.pipeline_mode<synchronous>, transform_indices = @transform_8, window_bounds = array<i64: 160, 50>}, {pipeline_mode = #tpu.pipeline_mode<synchronous>, transform_indices = @transform_9, window_bounds = array<i64: 16, 160>}, {pipeline_mode = #tpu.pipeline_mode<synchronous>, transform_indices = @transform_10, window_bounds = array<i64: 10, 160>}, {pipeline_mode = #tpu.pipeline_mode<synchronous>, transform_indices = @transform_11, window_bounds = array<i64: 10, 50>}, {pipeline_mode = #tpu.pipeline_mode<synchronous>, transform_indices = @transform_12, window_bounds = array<i64: 64, 20>}, {pipeline_mode = #tpu.pipeline_mode<synchronous>, transform_indices = @transform_13, window_bounds = array<i64: 66, 66>}, {pipeline_mode = #tpu.pipeline_mode<synchronous>, transform_indices = @transform_14, window_bounds = array<i64: 64, 1>}, {pipeline_mode = #tpu.pipeline_mode<synchronous>, transform_indices = @transform_15, window_bounds = array<i64: 4, 64, 64>}, {pipeline_mode = #tpu.pipeline_mode<synchronous>, transform_indices = @transform_16, window_bounds = array<i64: 4, 66, 66>}, {pipeline_mode = #tpu.pipeline_mode<synchronous>, transform_indices = @transform_17, window_bounds = array<i64: 4, 64, 1>}, {pipeline_mode = #tpu.pipeline_mode<synchronous>, transform_indices = @transform_18, window_bounds = array<i64: 20, 64>}, {pipeline_mode = #tpu.pipeline_mode<synchronous>, transform_indices = @transform_19, window_bounds = array<i64: 66, 66>}, {pipeline_mode = #tpu.pipeline_mode<synchronous>, transform_indices = @transform_20, window_bounds = array<i64: 20, 1>}, {pipeline_mode = #tpu.pipeline_mode<synchronous>, transform_indices = @transform_21, window_bounds = array<i64: 35, 20>}, {transform_indices = @transform_22, window_bounds = array<i64: 1, 35, 66>}]} {
    %c0 = arith.constant 0 : index
    %c0_0 = arith.constant 0 : index
    %c0_1 = arith.constant 0 : index
    %0 = vector.load %arg2[%c0, %c0_0, %c0_1] : memref<1x50x33xf32, #tpu.memory_space<vmem>>, vector<1x50x33xf32>
    %1 = vector.shape_cast %0 : vector<1x50x33xf32> to vector<50x33xf32>
    %c0_2 = arith.constant 0 : index
    %c0_3 = arith.constant 0 : index
    %c0_4 = arith.constant 0 : index
    %2 = vector.load %arg3[%c0_2, %c0_3, %c0_4] : memref<1x20x33xf32, #tpu.memory_space<vmem>>, vector<1x20x33xf32>
    %3 = vector.shape_cast %2 : vector<1x20x33xf32> to vector<20x33xf32>
    %c0_5 = arith.constant 0 : index
    %c0_6 = arith.constant 0 : index
    %c0_7 = arith.constant 0 : index
    %4 = vector.load %arg4[%c0_5, %c0_6, %c0_7] : memref<1x50x66xf32, #tpu.memory_space<vmem>>, vector<1x50x66xf32>
    %5 = vector.shape_cast %4 : vector<1x50x66xf32> to vector<50x66xf32>
    %c0_8 = arith.constant 0 : index
    %c0_9 = arith.constant 0 : index
    %6 = memref.load %arg1[%c0_8, %c0_9] : memref<1x1xf32, #tpu.memory_space<smem>>
    %7 = vector.extract_strided_slice %1 {offsets = [0, 0], sizes = [45, 33], strides = [1, 1]} : vector<50x33xf32> to vector<45x33xf32>
    %c0_10 = arith.constant 0 : index
    %c0_11 = arith.constant 0 : index
    %c0_12 = arith.constant 0 : index
    %8 = vector.load %arg5[%c0_10, %c0_11, %c0_12] : memref<6x33x64xf32, #tpu.memory_space<vmem>>, vector<1x33x64xf32>
    %9 = vector.shape_cast %8 : vector<1x33x64xf32> to vector<33x64xf32>
    %cst = arith.constant dense<0.000000e+00> : vector<45x64xf32>
    %10 = tpu.matmul %7, %9, %cst {dimension_numbers = #tpu.dot_dimension_numbers<[1], [0], [0], [1], [0, 0, 1, 1], [], []>} : vector<45x33xf32>, vector<33x64xf32>, vector<45x64xf32> -> vector<45x64xf32>
    %11 = vector.extract_strided_slice %1 {offsets = [1, 0], sizes = [45, 33], strides = [1, 1]} : vector<50x33xf32> to vector<45x33xf32>
    %c1 = arith.constant 1 : index
    %c0_13 = arith.constant 0 : index
    %c0_14 = arith.constant 0 : index
    %12 = vector.load %arg5[%c1, %c0_13, %c0_14] : memref<6x33x64xf32, #tpu.memory_space<vmem>>, vector<1x33x64xf32>
    %13 = vector.shape_cast %12 : vector<1x33x64xf32> to vector<33x64xf32>
    %cst_15 = arith.constant dense<0.000000e+00> : vector<45x64xf32>
    %14 = tpu.matmul %11, %13, %cst_15 {dimension_numbers = #tpu.dot_dimension_numbers<[1], [0], [0], [1], [0, 0, 1, 1], [], []>} : vector<45x33xf32>, vector<33x64xf32>, vector<45x64xf32> -> vector<45x64xf32>
    %15 = arith.addf %10, %14 : vector<45x64xf32>
    %16 = vector.extract_strided_slice %1 {offsets = [2, 0], sizes = [45, 33], strides = [1, 1]} : vector<50x33xf32> to vector<45x33xf32>
    %c2 = arith.constant 2 : index
    %c0_16 = arith.constant 0 : index
    %c0_17 = arith.constant 0 : index
    %17 = vector.load %arg5[%c2, %c0_16, %c0_17] : memref<6x33x64xf32, #tpu.memory_space<vmem>>, vector<1x33x64xf32>
    %18 = vector.shape_cast %17 : vector<1x33x64xf32> to vector<33x64xf32>
    %cst_18 = arith.constant dense<0.000000e+00> : vector<45x64xf32>
    %19 = tpu.matmul %16, %18, %cst_18 {dimension_numbers = #tpu.dot_dimension_numbers<[1], [0], [0], [1], [0, 0, 1, 1], [], []>} : vector<45x33xf32>, vector<33x64xf32>, vector<45x64xf32> -> vector<45x64xf32>
    %20 = arith.addf %15, %19 : vector<45x64xf32>
    %21 = vector.extract_strided_slice %1 {offsets = [3, 0], sizes = [45, 33], strides = [1, 1]} : vector<50x33xf32> to vector<45x33xf32>
    %c3 = arith.constant 3 : index
    %c0_19 = arith.constant 0 : index
    %c0_20 = arith.constant 0 : index
    %22 = vector.load %arg5[%c3, %c0_19, %c0_20] : memref<6x33x64xf32, #tpu.memory_space<vmem>>, vector<1x33x64xf32>
    %23 = vector.shape_cast %22 : vector<1x33x64xf32> to vector<33x64xf32>
    %cst_21 = arith.constant dense<0.000000e+00> : vector<45x64xf32>
    %24 = tpu.matmul %21, %23, %cst_21 {dimension_numbers = #tpu.dot_dimension_numbers<[1], [0], [0], [1], [0, 0, 1, 1], [], []>} : vector<45x33xf32>, vector<33x64xf32>, vector<45x64xf32> -> vector<45x64xf32>
    %25 = arith.addf %20, %24 : vector<45x64xf32>
    %26 = vector.extract_strided_slice %1 {offsets = [4, 0], sizes = [45, 33], strides = [1, 1]} : vector<50x33xf32> to vector<45x33xf32>
    %c4 = arith.constant 4 : index
    %c0_22 = arith.constant 0 : index
    %c0_23 = arith.constant 0 : index
    %27 = vector.load %arg5[%c4, %c0_22, %c0_23] : memref<6x33x64xf32, #tpu.memory_space<vmem>>, vector<1x33x64xf32>
    %28 = vector.shape_cast %27 : vector<1x33x64xf32> to vector<33x64xf32>
    %cst_24 = arith.constant dense<0.000000e+00> : vector<45x64xf32>
    %29 = tpu.matmul %26, %28, %cst_24 {dimension_numbers = #tpu.dot_dimension_numbers<[1], [0], [0], [1], [0, 0, 1, 1], [], []>} : vector<45x33xf32>, vector<33x64xf32>, vector<45x64xf32> -> vector<45x64xf32>
    %30 = arith.addf %25, %29 : vector<45x64xf32>
    %31 = vector.extract_strided_slice %1 {offsets = [5, 0], sizes = [45, 33], strides = [1, 1]} : vector<50x33xf32> to vector<45x33xf32>
    %c5 = arith.constant 5 : index
    %c0_25 = arith.constant 0 : index
    %c0_26 = arith.constant 0 : index
    %32 = vector.load %arg5[%c5, %c0_25, %c0_26] : memref<6x33x64xf32, #tpu.memory_space<vmem>>, vector<1x33x64xf32>
    %33 = vector.shape_cast %32 : vector<1x33x64xf32> to vector<33x64xf32>
    %cst_27 = arith.constant dense<0.000000e+00> : vector<45x64xf32>
    %34 = tpu.matmul %31, %33, %cst_27 {dimension_numbers = #tpu.dot_dimension_numbers<[1], [0], [0], [1], [0, 0, 1, 1], [], []>} : vector<45x33xf32>, vector<33x64xf32>, vector<45x64xf32> -> vector<45x64xf32>
    %35 = arith.addf %30, %34 : vector<45x64xf32>
    %cst_28 = arith.constant 0.000000e+00 : f32
    %36 = vector.broadcast %cst_28 : f32 to vector<45x64xf32>
    %37 = arith.maximumf %35, %36 : vector<45x64xf32>
    %38 = vector.extract_strided_slice %37 {offsets = [0, 0], sizes = [41, 64], strides = [1, 1]} : vector<45x64xf32> to vector<41x64xf32>
    %c0_29 = arith.constant 0 : index
    %c0_30 = arith.constant 0 : index
    %c0_31 = arith.constant 0 : index
    %39 = vector.load %arg6[%c0_29, %c0_30, %c0_31] : memref<5x64x64xf32, #tpu.memory_space<vmem>>, vector<1x64x64xf32>
    %40 = vector.shape_cast %39 : vector<1x64x64xf32> to vector<64x64xf32>
    %cst_32 = arith.constant dense<0.000000e+00> : vector<41x64xf32>
    %41 = tpu.matmul %38, %40, %cst_32 {dimension_numbers = #tpu.dot_dimension_numbers<[1], [0], [0], [1], [0, 0, 1, 1], [], []>} : vector<41x64xf32>, vector<64x64xf32>, vector<41x64xf32> -> vector<41x64xf32>
    %42 = vector.extract_strided_slice %37 {offsets = [1, 0], sizes = [41, 64], strides = [1, 1]} : vector<45x64xf32> to vector<41x64xf32>
    %c1_33 = arith.constant 1 : index
    %c0_34 = arith.constant 0 : index
    %c0_35 = arith.constant 0 : index
    %43 = vector.load %arg6[%c1_33, %c0_34, %c0_35] : memref<5x64x64xf32, #tpu.memory_space<vmem>>, vector<1x64x64xf32>
    %44 = vector.shape_cast %43 : vector<1x64x64xf32> to vector<64x64xf32>
    %cst_36 = arith.constant dense<0.000000e+00> : vector<41x64xf32>
    %45 = tpu.matmul %42, %44, %cst_36 {dimension_numbers = #tpu.dot_dimension_numbers<[1], [0], [0], [1], [0, 0, 1, 1], [], []>} : vector<41x64xf32>, vector<64x64xf32>, vector<41x64xf32> -> vector<41x64xf32>
    %46 = arith.addf %41, %45 : vector<41x64xf32>
    %47 = vector.extract_strided_slice %37 {offsets = [2, 0], sizes = [41, 64], strides = [1, 1]} : vector<45x64xf32> to vector<41x64xf32>
    %c2_37 = arith.constant 2 : index
    %c0_38 = arith.constant 0 : index
    %c0_39 = arith.constant 0 : index
    %48 = vector.load %arg6[%c2_37, %c0_38, %c0_39] : memref<5x64x64xf32, #tpu.memory_space<vmem>>, vector<1x64x64xf32>
    %49 = vector.shape_cast %48 : vector<1x64x64xf32> to vector<64x64xf32>
    %cst_40 = arith.constant dense<0.000000e+00> : vector<41x64xf32>
    %50 = tpu.matmul %47, %49, %cst_40 {dimension_numbers = #tpu.dot_dimension_numbers<[1], [0], [0], [1], [0, 0, 1, 1], [], []>} : vector<41x64xf32>, vector<64x64xf32>, vector<41x64xf32> -> vector<41x64xf32>
    %51 = arith.addf %46, %50 : vector<41x64xf32>
    %52 = vector.extract_strided_slice %37 {offsets = [3, 0], sizes = [41, 64], strides = [1, 1]} : vector<45x64xf32> to vector<41x64xf32>
    %c3_41 = arith.constant 3 : index
    %c0_42 = arith.constant 0 : index
    %c0_43 = arith.constant 0 : index
    %53 = vector.load %arg6[%c3_41, %c0_42, %c0_43] : memref<5x64x64xf32, #tpu.memory_space<vmem>>, vector<1x64x64xf32>
    %54 = vector.shape_cast %53 : vector<1x64x64xf32> to vector<64x64xf32>
    %cst_44 = arith.constant dense<0.000000e+00> : vector<41x64xf32>
    %55 = tpu.matmul %52, %54, %cst_44 {dimension_numbers = #tpu.dot_dimension_numbers<[1], [0], [0], [1], [0, 0, 1, 1], [], []>} : vector<41x64xf32>, vector<64x64xf32>, vector<41x64xf32> -> vector<41x64xf32>
    %56 = arith.addf %51, %55 : vector<41x64xf32>
    %57 = vector.extract_strided_slice %37 {offsets = [4, 0], sizes = [41, 64], strides = [1, 1]} : vector<45x64xf32> to vector<41x64xf32>
    %c4_45 = arith.constant 4 : index
    %c0_46 = arith.constant 0 : index
    %c0_47 = arith.constant 0 : index
    %58 = vector.load %arg6[%c4_45, %c0_46, %c0_47] : memref<5x64x64xf32, #tpu.memory_space<vmem>>, vector<1x64x64xf32>
    %59 = vector.shape_cast %58 : vector<1x64x64xf32> to vector<64x64xf32>
    %cst_48 = arith.constant dense<0.000000e+00> : vector<41x64xf32>
    %60 = tpu.matmul %57, %59, %cst_48 {dimension_numbers = #tpu.dot_dimension_numbers<[1], [0], [0], [1], [0, 0, 1, 1], [], []>} : vector<41x64xf32>, vector<64x64xf32>, vector<41x64xf32> -> vector<41x64xf32>
    %61 = arith.addf %56, %60 : vector<41x64xf32>
    %cst_49 = arith.constant 0.000000e+00 : f32
    %62 = vector.broadcast %cst_49 : f32 to vector<41x64xf32>
    %63 = arith.maximumf %61, %62 : vector<41x64xf32>
    %64 = vector.extract_strided_slice %3 {offsets = [0, 0], sizes = [15, 33], strides = [1, 1]} : vector<20x33xf32> to vector<15x33xf32>
    %c0_50 = arith.constant 0 : index
    %c0_51 = arith.constant 0 : index
    %c0_52 = arith.constant 0 : index
    %65 = vector.load %arg7[%c0_50, %c0_51, %c0_52] : memref<6x33x64xf32, #tpu.memory_space<vmem>>, vector<1x33x64xf32>
    %66 = vector.shape_cast %65 : vector<1x33x64xf32> to vector<33x64xf32>
    %cst_53 = arith.constant dense<0.000000e+00> : vector<15x64xf32>
    %67 = tpu.matmul %64, %66, %cst_53 {dimension_numbers = #tpu.dot_dimension_numbers<[1], [0], [0], [1], [0, 0, 1, 1], [], []>} : vector<15x33xf32>, vector<33x64xf32>, vector<15x64xf32> -> vector<15x64xf32>
    %68 = vector.extract_strided_slice %3 {offsets = [1, 0], sizes = [15, 33], strides = [1, 1]} : vector<20x33xf32> to vector<15x33xf32>
    %c1_54 = arith.constant 1 : index
    %c0_55 = arith.constant 0 : index
    %c0_56 = arith.constant 0 : index
    %69 = vector.load %arg7[%c1_54, %c0_55, %c0_56] : memref<6x33x64xf32, #tpu.memory_space<vmem>>, vector<1x33x64xf32>
    %70 = vector.shape_cast %69 : vector<1x33x64xf32> to vector<33x64xf32>
    %cst_57 = arith.constant dense<0.000000e+00> : vector<15x64xf32>
    %71 = tpu.matmul %68, %70, %cst_57 {dimension_numbers = #tpu.dot_dimension_numbers<[1], [0], [0], [1], [0, 0, 1, 1], [], []>} : vector<15x33xf32>, vector<33x64xf32>, vector<15x64xf32> -> vector<15x64xf32>
    %72 = arith.addf %67, %71 : vector<15x64xf32>
    %73 = vector.extract_strided_slice %3 {offsets = [2, 0], sizes = [15, 33], strides = [1, 1]} : vector<20x33xf32> to vector<15x33xf32>
    %c2_58 = arith.constant 2 : index
    %c0_59 = arith.constant 0 : index
    %c0_60 = arith.constant 0 : index
    %74 = vector.load %arg7[%c2_58, %c0_59, %c0_60] : memref<6x33x64xf32, #tpu.memory_space<vmem>>, vector<1x33x64xf32>
    %75 = vector.shape_cast %74 : vector<1x33x64xf32> to vector<33x64xf32>
    %cst_61 = arith.constant dense<0.000000e+00> : vector<15x64xf32>
    %76 = tpu.matmul %73, %75, %cst_61 {dimension_numbers = #tpu.dot_dimension_numbers<[1], [0], [0], [1], [0, 0, 1, 1], [], []>} : vector<15x33xf32>, vector<33x64xf32>, vector<15x64xf32> -> vector<15x64xf32>
    %77 = arith.addf %72, %76 : vector<15x64xf32>
    %78 = vector.extract_strided_slice %3 {offsets = [3, 0], sizes = [15, 33], strides = [1, 1]} : vector<20x33xf32> to vector<15x33xf32>
    %c3_62 = arith.constant 3 : index
    %c0_63 = arith.constant 0 : index
    %c0_64 = arith.constant 0 : index
    %79 = vector.load %arg7[%c3_62, %c0_63, %c0_64] : memref<6x33x64xf32, #tpu.memory_space<vmem>>, vector<1x33x64xf32>
    %80 = vector.shape_cast %79 : vector<1x33x64xf32> to vector<33x64xf32>
    %cst_65 = arith.constant dense<0.000000e+00> : vector<15x64xf32>
    %81 = tpu.matmul %78, %80, %cst_65 {dimension_numbers = #tpu.dot_dimension_numbers<[1], [0], [0], [1], [0, 0, 1, 1], [], []>} : vector<15x33xf32>, vector<33x64xf32>, vector<15x64xf32> -> vector<15x64xf32>
    %82 = arith.addf %77, %81 : vector<15x64xf32>
    %83 = vector.extract_strided_slice %3 {offsets = [4, 0], sizes = [15, 33], strides = [1, 1]} : vector<20x33xf32> to vector<15x33xf32>
    %c4_66 = arith.constant 4 : index
    %c0_67 = arith.constant 0 : index
    %c0_68 = arith.constant 0 : index
    %84 = vector.load %arg7[%c4_66, %c0_67, %c0_68] : memref<6x33x64xf32, #tpu.memory_space<vmem>>, vector<1x33x64xf32>
    %85 = vector.shape_cast %84 : vector<1x33x64xf32> to vector<33x64xf32>
    %cst_69 = arith.constant dense<0.000000e+00> : vector<15x64xf32>
    %86 = tpu.matmul %83, %85, %cst_69 {dimension_numbers = #tpu.dot_dimension_numbers<[1], [0], [0], [1], [0, 0, 1, 1], [], []>} : vector<15x33xf32>, vector<33x64xf32>, vector<15x64xf32> -> vector<15x64xf32>
    %87 = arith.addf %82, %86 : vector<15x64xf32>
    %88 = vector.extract_strided_slice %3 {offsets = [5, 0], sizes = [15, 33], strides = [1, 1]} : vector<20x33xf32> to vector<15x33xf32>
    %c5_70 = arith.constant 5 : index
    %c0_71 = arith.constant 0 : index
    %c0_72 = arith.constant 0 : index
    %89 = vector.load %arg7[%c5_70, %c0_71, %c0_72] : memref<6x33x64xf32, #tpu.memory_space<vmem>>, vector<1x33x64xf32>
    %90 = vector.shape_cast %89 : vector<1x33x64xf32> to vector<33x64xf32>
    %cst_73 = arith.constant dense<0.000000e+00> : vector<15x64xf32>
    %91 = tpu.matmul %88, %90, %cst_73 {dimension_numbers = #tpu.dot_dimension_numbers<[1], [0], [0], [1], [0, 0, 1, 1], [], []>} : vector<15x33xf32>, vector<33x64xf32>, vector<15x64xf32> -> vector<15x64xf32>
    %92 = arith.addf %87, %91 : vector<15x64xf32>
    %cst_74 = arith.constant 0.000000e+00 : f32
    %93 = vector.broadcast %cst_74 : f32 to vector<15x64xf32>
    %94 = arith.maximumf %92, %93 : vector<15x64xf32>
    %95 = vector.extract_strided_slice %94 {offsets = [0, 0], sizes = [11, 64], strides = [1, 1]} : vector<15x64xf32> to vector<11x64xf32>
    %c0_75 = arith.constant 0 : index
    %c0_76 = arith.constant 0 : index
    %c0_77 = arith.constant 0 : index
    %96 = vector.load %arg8[%c0_75, %c0_76, %c0_77] : memref<5x64x64xf32, #tpu.memory_space<vmem>>, vector<1x64x64xf32>
    %97 = vector.shape_cast %96 : vector<1x64x64xf32> to vector<64x64xf32>
    %cst_78 = arith.constant dense<0.000000e+00> : vector<11x64xf32>
    %98 = tpu.matmul %95, %97, %cst_78 {dimension_numbers = #tpu.dot_dimension_numbers<[1], [0], [0], [1], [0, 0, 1, 1], [], []>} : vector<11x64xf32>, vector<64x64xf32>, vector<11x64xf32> -> vector<11x64xf32>
    %99 = vector.extract_strided_slice %94 {offsets = [1, 0], sizes = [11, 64], strides = [1, 1]} : vector<15x64xf32> to vector<11x64xf32>
    %c1_79 = arith.constant 1 : index
    %c0_80 = arith.constant 0 : index
    %c0_81 = arith.constant 0 : index
    %100 = vector.load %arg8[%c1_79, %c0_80, %c0_81] : memref<5x64x64xf32, #tpu.memory_space<vmem>>, vector<1x64x64xf32>
    %101 = vector.shape_cast %100 : vector<1x64x64xf32> to vector<64x64xf32>
    %cst_82 = arith.constant dense<0.000000e+00> : vector<11x64xf32>
    %102 = tpu.matmul %99, %101, %cst_82 {dimension_numbers = #tpu.dot_dimension_numbers<[1], [0], [0], [1], [0, 0, 1, 1], [], []>} : vector<11x64xf32>, vector<64x64xf32>, vector<11x64xf32> -> vector<11x64xf32>
    %103 = arith.addf %98, %102 : vector<11x64xf32>
    %104 = vector.extract_strided_slice %94 {offsets = [2, 0], sizes = [11, 64], strides = [1, 1]} : vector<15x64xf32> to vector<11x64xf32>
    %c2_83 = arith.constant 2 : index
    %c0_84 = arith.constant 0 : index
    %c0_85 = arith.constant 0 : index
    %105 = vector.load %arg8[%c2_83, %c0_84, %c0_85] : memref<5x64x64xf32, #tpu.memory_space<vmem>>, vector<1x64x64xf32>
    %106 = vector.shape_cast %105 : vector<1x64x64xf32> to vector<64x64xf32>
    %cst_86 = arith.constant dense<0.000000e+00> : vector<11x64xf32>
    %107 = tpu.matmul %104, %106, %cst_86 {dimension_numbers = #tpu.dot_dimension_numbers<[1], [0], [0], [1], [0, 0, 1, 1], [], []>} : vector<11x64xf32>, vector<64x64xf32>, vector<11x64xf32> -> vector<11x64xf32>
    %108 = arith.addf %103, %107 : vector<11x64xf32>
    %109 = vector.extract_strided_slice %94 {offsets = [3, 0], sizes = [11, 64], strides = [1, 1]} : vector<15x64xf32> to vector<11x64xf32>
    %c3_87 = arith.constant 3 : index
    %c0_88 = arith.constant 0 : index
    %c0_89 = arith.constant 0 : index
    %110 = vector.load %arg8[%c3_87, %c0_88, %c0_89] : memref<5x64x64xf32, #tpu.memory_space<vmem>>, vector<1x64x64xf32>
    %111 = vector.shape_cast %110 : vector<1x64x64xf32> to vector<64x64xf32>
    %cst_90 = arith.constant dense<0.000000e+00> : vector<11x64xf32>
    %112 = tpu.matmul %109, %111, %cst_90 {dimension_numbers = #tpu.dot_dimension_numbers<[1], [0], [0], [1], [0, 0, 1, 1], [], []>} : vector<11x64xf32>, vector<64x64xf32>, vector<11x64xf32> -> vector<11x64xf32>
    %113 = arith.addf %108, %112 : vector<11x64xf32>
    %114 = vector.extract_strided_slice %94 {offsets = [4, 0], sizes = [11, 64], strides = [1, 1]} : vector<15x64xf32> to vector<11x64xf32>
    %c4_91 = arith.constant 4 : index
    %c0_92 = arith.constant 0 : index
    %c0_93 = arith.constant 0 : index
    %115 = vector.load %arg8[%c4_91, %c0_92, %c0_93] : memref<5x64x64xf32, #tpu.memory_space<vmem>>, vector<1x64x64xf32>
    %116 = vector.shape_cast %115 : vector<1x64x64xf32> to vector<64x64xf32>
    %cst_94 = arith.constant dense<0.000000e+00> : vector<11x64xf32>
    %117 = tpu.matmul %114, %116, %cst_94 {dimension_numbers = #tpu.dot_dimension_numbers<[1], [0], [0], [1], [0, 0, 1, 1], [], []>} : vector<11x64xf32>, vector<64x64xf32>, vector<11x64xf32> -> vector<11x64xf32>
    %118 = arith.addf %113, %117 : vector<11x64xf32>
    %cst_95 = arith.constant 0.000000e+00 : f32
    %119 = vector.broadcast %cst_95 : f32 to vector<11x64xf32>
    %120 = arith.maximumf %118, %119 : vector<11x64xf32>
    %c0_96 = arith.constant 0 : index
    %c0_97 = arith.constant 0 : index
    %121 = vector.load %arg9[%c0_96, %c0_97] : memref<160x50xf32, #tpu.memory_space<vmem>>, vector<160x50xf32>
    %cst_98 = arith.constant dense<0.000000e+00> : vector<160x66xf32>
    %122 = tpu.matmul %121, %5, %cst_98 {dimension_numbers = #tpu.dot_dimension_numbers<[1], [0], [0], [1], [0, 0, 1, 1], [], []>} : vector<160x50xf32>, vector<50x66xf32>, vector<160x66xf32> -> vector<160x66xf32>
    %c0_99 = arith.constant 0 : index
    %c0_100 = arith.constant 0 : index
    %123 = vector.load %arg12[%c0_99, %c0_100] : memref<10x50xf32, #tpu.memory_space<vmem>>, vector<10x50xf32>
    %cst_101 = arith.constant dense<0.000000e+00> : vector<10x66xf32>
    %124 = tpu.matmul %123, %5, %cst_101 {dimension_numbers = #tpu.dot_dimension_numbers<[1], [0], [0], [1], [0, 0, 1, 1], [], []>} : vector<10x50xf32>, vector<50x66xf32>, vector<10x66xf32> -> vector<10x66xf32>
    %c0_102 = arith.constant 0 : index
    %c0_103 = arith.constant 0 : index
    %125 = vector.load %arg10[%c0_102, %c0_103] : memref<16x160xf32, #tpu.memory_space<vmem>>, vector<16x160xf32>
    %c0_104 = arith.constant 0 : index
    %c0_105 = arith.constant 0 : index
    %126 = vector.load %arg11[%c0_104, %c0_105] : memref<10x160xf32, #tpu.memory_space<vmem>>, vector<10x160xf32>
    %127 = tpu.iota {dimensions = array<i32: 1>} : vector<10x66xi32>
    %128 = vector.extract_strided_slice %120 {offsets = [0, 0], sizes = [1, 64], strides = [1, 1]} : vector<11x64xf32> to vector<1x64xf32>
    %129 = vector.extract_strided_slice %63 {offsets = [0, 0], sizes = [16, 64], strides = [1, 1]} : vector<41x64xf32> to vector<16x64xf32>
    %cst_106 = arith.constant dense<0.000000e+00> : vector<1x16xf32>
    %130 = tpu.matmul %128, %129, %cst_106 {dimension_numbers = #tpu.dot_dimension_numbers<[1], [1], [0], [0], [0, 0, 1, 0], [], []>} : vector<1x64xf32>, vector<16x64xf32>, vector<1x16xf32> -> vector<1x16xf32>
    %cst_107 = arith.constant 1.000000e-15 : f32
    %131 = vector.broadcast %cst_107 : f32 to vector<1x16xf32>
    %132 = arith.addf %130, %131 : vector<1x16xf32>
    %cst_108 = arith.constant dense<0.000000e+00> : vector<1xf32>
    %133 = vector.multi_reduction <add>, %132, %cst_108 [1] : vector<1x16xf32> to vector<1xf32>
    %134 = vector.shape_cast %133 : vector<1xf32> to vector<1x1xf32>
    %135 = vector.broadcast %134 : vector<1x1xf32> to vector<1x16xf32>
    %136 = arith.divf %132, %135 : vector<1x16xf32>
    %137 = vector.broadcast %6 : f32 to vector<1x16xf32>
    %138 = arith.mulf %136, %137 : vector<1x16xf32>
    %cst_109 = arith.constant dense<0.000000e+00> : vector<1x160xf32>
    %139 = tpu.matmul %138, %125, %cst_109 {dimension_numbers = #tpu.dot_dimension_numbers<[1], [0], [0], [1], [0, 0, 1, 1], [], []>} : vector<1x16xf32>, vector<16x160xf32>, vector<1x160xf32> -> vector<1x160xf32>
    %140 = vector.broadcast %139 : vector<1x160xf32> to vector<10x160xf32>
    %141 = arith.mulf %126, %140 : vector<10x160xf32>
    %cst_110 = arith.constant dense<0.000000e+00> : vector<10x66xf32>
    %142 = tpu.matmul %141, %122, %cst_110 {dimension_numbers = #tpu.dot_dimension_numbers<[1], [0], [0], [1], [0, 0, 1, 1], [], []>} : vector<10x160xf32>, vector<160x66xf32>, vector<10x66xf32> -> vector<10x66xf32>
    %143 = vector.extract_strided_slice %120 {offsets = [10, 0], sizes = [1, 64], strides = [1, 1]} : vector<11x64xf32> to vector<1x64xf32>
    %144 = vector.extract_strided_slice %63 {offsets = [25, 0], sizes = [16, 64], strides = [1, 1]} : vector<41x64xf32> to vector<16x64xf32>
    %cst_111 = arith.constant dense<0.000000e+00> : vector<1x16xf32>
    %145 = tpu.matmul %143, %144, %cst_111 {dimension_numbers = #tpu.dot_dimension_numbers<[1], [1], [0], [0], [0, 0, 1, 0], [], []>} : vector<1x64xf32>, vector<16x64xf32>, vector<1x16xf32> -> vector<1x16xf32>
    %cst_112 = arith.constant 1.000000e-15 : f32
    %146 = vector.broadcast %cst_112 : f32 to vector<1x16xf32>
    %147 = arith.addf %145, %146 : vector<1x16xf32>
    %cst_113 = arith.constant dense<0.000000e+00> : vector<1xf32>
    %148 = vector.multi_reduction <add>, %147, %cst_113 [1] : vector<1x16xf32> to vector<1xf32>
    %149 = vector.shape_cast %148 : vector<1xf32> to vector<1x1xf32>
    %150 = vector.broadcast %149 : vector<1x1xf32> to vector<1x16xf32>
    %151 = arith.divf %147, %150 : vector<1x16xf32>
    %152 = vector.broadcast %6 : f32 to vector<1x16xf32>
    %153 = arith.mulf %151, %152 : vector<1x16xf32>
    %cst_114 = arith.constant dense<0.000000e+00> : vector<1x160xf32>
    %154 = tpu.matmul %153, %125, %cst_114 {dimension_numbers = #tpu.dot_dimension_numbers<[1], [0], [0], [1], [0, 0, 1, 1], [], []>} : vector<1x16xf32>, vector<16x160xf32>, vector<1x160xf32> -> vector<1x160xf32>
    %155 = vector.broadcast %154 : vector<1x160xf32> to vector<10x160xf32>
    %156 = arith.mulf %126, %155 : vector<10x160xf32>
    %cst_115 = arith.constant dense<0.000000e+00> : vector<10x66xf32>
    %157 = tpu.matmul %156, %122, %cst_115 {dimension_numbers = #tpu.dot_dimension_numbers<[1], [0], [0], [1], [0, 0, 1, 1], [], []>} : vector<10x160xf32>, vector<160x66xf32>, vector<10x66xf32> -> vector<10x66xf32>
    %c33_i32 = arith.constant 33 : i32
    %158 = vector.broadcast %c33_i32 : i32 to vector<10x66xi32>
    %159 = arith.cmpi sge, %127, %158 : vector<10x66xi32>
    %160 = arith.select %159, %157, %142 : vector<10x66xi1>, vector<10x66xf32>
    %161 = tpu.concatenate %124, %160 in 0 : vector<10x66xf32>, vector<10x66xf32> -> vector<20x66xf32>
    %c0_116 = arith.constant 0 : index
    %c0_117 = arith.constant 0 : index
    %162 = vector.load %arg13[%c0_116, %c0_117] : memref<64x20xf32, #tpu.memory_space<vmem>>, vector<64x20xf32>
    %c0_118 = arith.constant 0 : index
    %c0_119 = arith.constant 0 : index
    %163 = vector.load %arg14[%c0_118, %c0_119] : memref<66x66xf32, #tpu.memory_space<vmem>>, vector<66x66xf32>
    %c0_120 = arith.constant 0 : index
    %c0_121 = arith.constant 0 : index
    %164 = vector.load %arg15[%c0_120, %c0_121] : memref<64x1xf32, #tpu.memory_space<vmem>>, vector<64x1xf32>
    %cst_122 = arith.constant dense<0.000000e+00> : vector<64x66xf32>
    %165 = tpu.matmul %162, %161, %cst_122 {dimension_numbers = #tpu.dot_dimension_numbers<[1], [0], [0], [1], [0, 0, 1, 1], [], []>} : vector<64x20xf32>, vector<20x66xf32>, vector<64x66xf32> -> vector<64x66xf32>
    %cst_123 = arith.constant dense<0.000000e+00> : vector<64x66xf32>
    %166 = tpu.matmul %165, %163, %cst_123 {dimension_numbers = #tpu.dot_dimension_numbers<[1], [0], [0], [1], [0, 0, 1, 1], [], []>} : vector<64x66xf32>, vector<66x66xf32>, vector<64x66xf32> -> vector<64x66xf32>
    %167 = vector.broadcast %164 : vector<64x1xf32> to vector<64x66xf32>
    %168 = arith.addf %166, %167 : vector<64x66xf32>
    %cst_124 = arith.constant 0.999994993 : f32
    %169 = vector.broadcast %cst_124 : f32 to vector<64x66xf32>
    %170 = arith.mulf %169, %168 : vector<64x66xf32>
    %171 = math.tanh %170 : vector<64x66xf32>
    %c0_125 = arith.constant 0 : index
    %c0_126 = arith.constant 0 : index
    %c0_127 = arith.constant 0 : index
    %172 = vector.load %arg16[%c0_125, %c0_126, %c0_127] : memref<4x64x64xf32, #tpu.memory_space<vmem>>, vector<1x64x64xf32>
    %173 = vector.shape_cast %172 : vector<1x64x64xf32> to vector<64x64xf32>
    %c0_128 = arith.constant 0 : index
    %c0_129 = arith.constant 0 : index
    %c0_130 = arith.constant 0 : index
    %174 = vector.load %arg17[%c0_128, %c0_129, %c0_130] : memref<4x66x66xf32, #tpu.memory_space<vmem>>, vector<1x66x66xf32>
    %175 = vector.shape_cast %174 : vector<1x66x66xf32> to vector<66x66xf32>
    %c0_131 = arith.constant 0 : index
    %c0_132 = arith.constant 0 : index
    %c0_133 = arith.constant 0 : index
    %176 = vector.load %arg18[%c0_131, %c0_132, %c0_133] : memref<4x64x1xf32, #tpu.memory_space<vmem>>, vector<1x64x1xf32>
    %177 = vector.shape_cast %176 : vector<1x64x1xf32> to vector<64x1xf32>
    %cst_134 = arith.constant dense<0.000000e+00> : vector<64x66xf32>
    %178 = tpu.matmul %173, %171, %cst_134 {dimension_numbers = #tpu.dot_dimension_numbers<[1], [0], [0], [1], [0, 0, 1, 1], [], []>} : vector<64x64xf32>, vector<64x66xf32>, vector<64x66xf32> -> vector<64x66xf32>
    %cst_135 = arith.constant dense<0.000000e+00> : vector<64x66xf32>
    %179 = tpu.matmul %178, %175, %cst_135 {dimension_numbers = #tpu.dot_dimension_numbers<[1], [0], [0], [1], [0, 0, 1, 1], [], []>} : vector<64x66xf32>, vector<66x66xf32>, vector<64x66xf32> -> vector<64x66xf32>
    %180 = vector.broadcast %177 : vector<64x1xf32> to vector<64x66xf32>
    %181 = arith.addf %179, %180 : vector<64x66xf32>
    %cst_136 = arith.constant 0.999994993 : f32
    %182 = vector.broadcast %cst_136 : f32 to vector<64x66xf32>
    %183 = arith.mulf %182, %181 : vector<64x66xf32>
    %184 = math.tanh %183 : vector<64x66xf32>
    %c1_137 = arith.constant 1 : index
    %c0_138 = arith.constant 0 : index
    %c0_139 = arith.constant 0 : index
    %185 = vector.load %arg16[%c1_137, %c0_138, %c0_139] : memref<4x64x64xf32, #tpu.memory_space<vmem>>, vector<1x64x64xf32>
    %186 = vector.shape_cast %185 : vector<1x64x64xf32> to vector<64x64xf32>
    %c1_140 = arith.constant 1 : index
    %c0_141 = arith.constant 0 : index
    %c0_142 = arith.constant 0 : index
    %187 = vector.load %arg17[%c1_140, %c0_141, %c0_142] : memref<4x66x66xf32, #tpu.memory_space<vmem>>, vector<1x66x66xf32>
    %188 = vector.shape_cast %187 : vector<1x66x66xf32> to vector<66x66xf32>
    %c1_143 = arith.constant 1 : index
    %c0_144 = arith.constant 0 : index
    %c0_145 = arith.constant 0 : index
    %189 = vector.load %arg18[%c1_143, %c0_144, %c0_145] : memref<4x64x1xf32, #tpu.memory_space<vmem>>, vector<1x64x1xf32>
    %190 = vector.shape_cast %189 : vector<1x64x1xf32> to vector<64x1xf32>
    %cst_146 = arith.constant dense<0.000000e+00> : vector<64x66xf32>
    %191 = tpu.matmul %186, %184, %cst_146 {dimension_numbers = #tpu.dot_dimension_numbers<[1], [0], [0], [1], [0, 0, 1, 1], [], []>} : vector<64x64xf32>, vector<64x66xf32>, vector<64x66xf32> -> vector<64x66xf32>
    %cst_147 = arith.constant dense<0.000000e+00> : vector<64x66xf32>
    %192 = tpu.matmul %191, %188, %cst_147 {dimension_numbers = #tpu.dot_dimension_numbers<[1], [0], [0], [1], [0, 0, 1, 1], [], []>} : vector<64x66xf32>, vector<66x66xf32>, vector<64x66xf32> -> vector<64x66xf32>
    %193 = vector.broadcast %190 : vector<64x1xf32> to vector<64x66xf32>
    %194 = arith.addf %192, %193 : vector<64x66xf32>
    %cst_148 = arith.constant 0.999994993 : f32
    %195 = vector.broadcast %cst_148 : f32 to vector<64x66xf32>
    %196 = arith.mulf %195, %194 : vector<64x66xf32>
    %197 = math.tanh %196 : vector<64x66xf32>
    %198 = arith.addf %197, %171 : vector<64x66xf32>
    %c2_149 = arith.constant 2 : index
    %c0_150 = arith.constant 0 : index
    %c0_151 = arith.constant 0 : index
    %199 = vector.load %arg16[%c2_149, %c0_150, %c0_151] : memref<4x64x64xf32, #tpu.memory_space<vmem>>, vector<1x64x64xf32>
    %200 = vector.shape_cast %199 : vector<1x64x64xf32> to vector<64x64xf32>
    %c2_152 = arith.constant 2 : index
    %c0_153 = arith.constant 0 : index
    %c0_154 = arith.constant 0 : index
    %201 = vector.load %arg17[%c2_152, %c0_153, %c0_154] : memref<4x66x66xf32, #tpu.memory_space<vmem>>, vector<1x66x66xf32>
    %202 = vector.shape_cast %201 : vector<1x66x66xf32> to vector<66x66xf32>
    %c2_155 = arith.constant 2 : index
    %c0_156 = arith.constant 0 : index
    %c0_157 = arith.constant 0 : index
    %203 = vector.load %arg18[%c2_155, %c0_156, %c0_157] : memref<4x64x1xf32, #tpu.memory_space<vmem>>, vector<1x64x1xf32>
    %204 = vector.shape_cast %203 : vector<1x64x1xf32> to vector<64x1xf32>
    %cst_158 = arith.constant dense<0.000000e+00> : vector<64x66xf32>
    %205 = tpu.matmul %200, %198, %cst_158 {dimension_numbers = #tpu.dot_dimension_numbers<[1], [0], [0], [1], [0, 0, 1, 1], [], []>} : vector<64x64xf32>, vector<64x66xf32>, vector<64x66xf32> -> vector<64x66xf32>
    %cst_159 = arith.constant dense<0.000000e+00> : vector<64x66xf32>
    %206 = tpu.matmul %205, %202, %cst_159 {dimension_numbers = #tpu.dot_dimension_numbers<[1], [0], [0], [1], [0, 0, 1, 1], [], []>} : vector<64x66xf32>, vector<66x66xf32>, vector<64x66xf32> -> vector<64x66xf32>
    %207 = vector.broadcast %204 : vector<64x1xf32> to vector<64x66xf32>
    %208 = arith.addf %206, %207 : vector<64x66xf32>
    %cst_160 = arith.constant 0.999994993 : f32
    %209 = vector.broadcast %cst_160 : f32 to vector<64x66xf32>
    %210 = arith.mulf %209, %208 : vector<64x66xf32>
    %211 = math.tanh %210 : vector<64x66xf32>
    %c3_161 = arith.constant 3 : index
    %c0_162 = arith.constant 0 : index
    %c0_163 = arith.constant 0 : index
    %212 = vector.load %arg16[%c3_161, %c0_162, %c0_163] : memref<4x64x64xf32, #tpu.memory_space<vmem>>, vector<1x64x64xf32>
    %213 = vector.shape_cast %212 : vector<1x64x64xf32> to vector<64x64xf32>
    %c3_164 = arith.constant 3 : index
    %c0_165 = arith.constant 0 : index
    %c0_166 = arith.constant 0 : index
    %214 = vector.load %arg17[%c3_164, %c0_165, %c0_166] : memref<4x66x66xf32, #tpu.memory_space<vmem>>, vector<1x66x66xf32>
    %215 = vector.shape_cast %214 : vector<1x66x66xf32> to vector<66x66xf32>
    %c3_167 = arith.constant 3 : index
    %c0_168 = arith.constant 0 : index
    %c0_169 = arith.constant 0 : index
    %216 = vector.load %arg18[%c3_167, %c0_168, %c0_169] : memref<4x64x1xf32, #tpu.memory_space<vmem>>, vector<1x64x1xf32>
    %217 = vector.shape_cast %216 : vector<1x64x1xf32> to vector<64x1xf32>
    %cst_170 = arith.constant dense<0.000000e+00> : vector<64x66xf32>
    %218 = tpu.matmul %213, %211, %cst_170 {dimension_numbers = #tpu.dot_dimension_numbers<[1], [0], [0], [1], [0, 0, 1, 1], [], []>} : vector<64x64xf32>, vector<64x66xf32>, vector<64x66xf32> -> vector<64x66xf32>
    %cst_171 = arith.constant dense<0.000000e+00> : vector<64x66xf32>
    %219 = tpu.matmul %218, %215, %cst_171 {dimension_numbers = #tpu.dot_dimension_numbers<[1], [0], [0], [1], [0, 0, 1, 1], [], []>} : vector<64x66xf32>, vector<66x66xf32>, vector<64x66xf32> -> vector<64x66xf32>
    %220 = vector.broadcast %217 : vector<64x1xf32> to vector<64x66xf32>
    %221 = arith.addf %219, %220 : vector<64x66xf32>
    %cst_172 = arith.constant 0.999994993 : f32
    %222 = vector.broadcast %cst_172 : f32 to vector<64x66xf32>
    %223 = arith.mulf %222, %221 : vector<64x66xf32>
    %224 = math.tanh %223 : vector<64x66xf32>
    %225 = arith.addf %224, %198 : vector<64x66xf32>
    %c0_173 = arith.constant 0 : index
    %c0_174 = arith.constant 0 : index
    %226 = vector.load %arg19[%c0_173, %c0_174] : memref<20x64xf32, #tpu.memory_space<vmem>>, vector<20x64xf32>
    %c0_175 = arith.constant 0 : index
    %c0_176 = arith.constant 0 : index
    %227 = vector.load %arg20[%c0_175, %c0_176] : memref<66x66xf32, #tpu.memory_space<vmem>>, vector<66x66xf32>
    %c0_177 = arith.constant 0 : index
    %c0_178 = arith.constant 0 : index
    %228 = vector.load %arg21[%c0_177, %c0_178] : memref<20x1xf32, #tpu.memory_space<vmem>>, vector<20x1xf32>
    %cst_179 = arith.constant dense<0.000000e+00> : vector<20x66xf32>
    %229 = tpu.matmul %226, %225, %cst_179 {dimension_numbers = #tpu.dot_dimension_numbers<[1], [0], [0], [1], [0, 0, 1, 1], [], []>} : vector<20x64xf32>, vector<64x66xf32>, vector<20x66xf32> -> vector<20x66xf32>
    %cst_180 = arith.constant dense<0.000000e+00> : vector<20x66xf32>
    %230 = tpu.matmul %229, %227, %cst_180 {dimension_numbers = #tpu.dot_dimension_numbers<[1], [0], [0], [1], [0, 0, 1, 1], [], []>} : vector<20x66xf32>, vector<66x66xf32>, vector<20x66xf32> -> vector<20x66xf32>
    %231 = vector.broadcast %228 : vector<20x1xf32> to vector<20x66xf32>
    %232 = arith.addf %230, %231 : vector<20x66xf32>
    %233 = arith.addf %232, %161 : vector<20x66xf32>
    %c0_181 = arith.constant 0 : index
    %c0_182 = arith.constant 0 : index
    %234 = vector.load %arg22[%c0_181, %c0_182] : memref<35x20xf32, #tpu.memory_space<vmem>>, vector<35x20xf32>
    %cst_183 = arith.constant dense<0.000000e+00> : vector<35x66xf32>
    %235 = tpu.matmul %234, %233, %cst_183 {dimension_numbers = #tpu.dot_dimension_numbers<[1], [0], [0], [1], [0, 0, 1, 1], [], []>} : vector<35x20xf32>, vector<20x66xf32>, vector<35x66xf32> -> vector<35x66xf32>
    %c0_184 = arith.constant 0 : index
    %c0_185 = arith.constant 0 : index
    %c0_186 = arith.constant 0 : index
    %236 = vector.load %arg23[%c0_184, %c0_185, %c0_186] : memref<1x35x66xf32, #tpu.memory_space<vmem>>, vector<1x35x66xf32>
    %237 = vector.shape_cast %236 : vector<1x35x66xf32> to vector<35x66xf32>
    %238 = vector.shape_cast %235 : vector<35x66xf32> to vector<1x35x66xf32>
    tpu.vector_store %arg23[%c0_184, %c0_185, %c0_186], %238 {strides = array<i32>} : memref<1x35x66xf32, #tpu.memory_space<vmem>>, vector<1x35x66xf32>,
    return
  }
  func.func @transform_0(%arg0: i32) -> (i32, i32) {
    %c0_i32 = arith.constant 0 : i32
    %c0_i32_0 = arith.constant 0 : i32
    %c0_i32_1 = arith.constant 0 : i32
    return %c0_i32, %c0_i32_0 : i32, i32
  }
  func.func @transform_1(%arg0: i32) -> (i32, i32, i32) {
    %c0_i32 = arith.constant 0 : i32
    %c0_i32_0 = arith.constant 0 : i32
    %c0_i32_1 = arith.constant 0 : i32
    return %arg0, %c0_i32, %c0_i32_0 : i32, i32, i32
  }
  func.func @transform_2(%arg0: i32) -> (i32, i32, i32) {
    %c0_i32 = arith.constant 0 : i32
    %c0_i32_0 = arith.constant 0 : i32
    %c0_i32_1 = arith.constant 0 : i32
    return %arg0, %c0_i32, %c0_i32_0 : i32, i32, i32
  }
  func.func @transform_3(%arg0: i32) -> (i32, i32, i32) {
    %c0_i32 = arith.constant 0 : i32
    %c0_i32_0 = arith.constant 0 : i32
    %c0_i32_1 = arith.constant 0 : i32
    return %arg0, %c0_i32, %c0_i32_0 : i32, i32, i32
  }
  func.func @transform_4(%arg0: i32) -> (i32, i32, i32) {
    %c0_i32 = arith.constant 0 : i32
    %c0_i32_0 = arith.constant 0 : i32
    %c0_i32_1 = arith.constant 0 : i32
    %c0_i32_2 = arith.constant 0 : i32
    return %c0_i32, %c0_i32_0, %c0_i32_1 : i32, i32, i32
  }
  func.func @transform_5(%arg0: i32) -> (i32, i32, i32) {
    %c0_i32 = arith.constant 0 : i32
    %c0_i32_0 = arith.constant 0 : i32
    %c0_i32_1 = arith.constant 0 : i32
    %c0_i32_2 = arith.constant 0 : i32
    return %c0_i32, %c0_i32_0, %c0_i32_1 : i32, i32, i32
  }
  func.func @transform_6(%arg0: i32) -> (i32, i32, i32) {
    %c0_i32 = arith.constant 0 : i32
    %c0_i32_0 = arith.constant 0 : i32
    %c0_i32_1 = arith.constant 0 : i32
    %c0_i32_2 = arith.constant 0 : i32
    return %c0_i32, %c0_i32_0, %c0_i32_1 : i32, i32, i32
  }
  func.func @transform_7(%arg0: i32) -> (i32, i32, i32) {
    %c0_i32 = arith.constant 0 : i32
    %c0_i32_0 = arith.constant 0 : i32
    %c0_i32_1 = arith.constant 0 : i32
    %c0_i32_2 = arith.constant 0 : i32
    return %c0_i32, %c0_i32_0, %c0_i32_1 : i32, i32, i32
  }
  func.func @transform_8(%arg0: i32) -> (i32, i32) {
    %c0_i32 = arith.constant 0 : i32
    %c0_i32_0 = arith.constant 0 : i32
    %c0_i32_1 = arith.constant 0 : i32
    return %c0_i32, %c0_i32_0 : i32, i32
  }
  func.func @transform_9(%arg0: i32) -> (i32, i32) {
    %c0_i32 = arith.constant 0 : i32
    %c0_i32_0 = arith.constant 0 : i32
    %c0_i32_1 = arith.constant 0 : i32
    return %c0_i32, %c0_i32_0 : i32, i32
  }
  func.func @transform_10(%arg0: i32) -> (i32, i32) {
    %c0_i32 = arith.constant 0 : i32
    %c0_i32_0 = arith.constant 0 : i32
    %c0_i32_1 = arith.constant 0 : i32
    return %c0_i32, %c0_i32_0 : i32, i32
  }
  func.func @transform_11(%arg0: i32) -> (i32, i32) {
    %c0_i32 = arith.constant 0 : i32
    %c0_i32_0 = arith.constant 0 : i32
    %c0_i32_1 = arith.constant 0 : i32
    return %c0_i32, %c0_i32_0 : i32, i32
  }
  func.func @transform_12(%arg0: i32) -> (i32, i32) {
    %c0_i32 = arith.constant 0 : i32
    %c0_i32_0 = arith.constant 0 : i32
    %c0_i32_1 = arith.constant 0 : i32
    return %c0_i32, %c0_i32_0 : i32, i32
  }
  func.func @transform_13(%arg0: i32) -> (i32, i32) {
    %c0_i32 = arith.constant 0 : i32
    %c0_i32_0 = arith.constant 0 : i32
    %c0_i32_1 = arith.constant 0 : i32
    return %c0_i32, %c0_i32_0 : i32, i32
  }
  func.func @transform_14(%arg0: i32) -> (i32, i32) {
    %c0_i32 = arith.constant 0 : i32
    %c0_i32_0 = arith.constant 0 : i32
    %c0_i32_1 = arith.constant 0 : i32
    return %c0_i32, %c0_i32_0 : i32, i32
  }
  func.func @transform_15(%arg0: i32) -> (i32, i32, i32) {
    %c0_i32 = arith.constant 0 : i32
    %c0_i32_0 = arith.constant 0 : i32
    %c0_i32_1 = arith.constant 0 : i32
    %c0_i32_2 = arith.constant 0 : i32
    return %c0_i32, %c0_i32_0, %c0_i32_1 : i32, i32, i32
  }
  func.func @transform_16(%arg0: i32) -> (i32, i32, i32) {
    %c0_i32 = arith.constant 0 : i32
    %c0_i32_0 = arith.constant 0 : i32
    %c0_i32_1 = arith.constant 0 : i32
    %c0_i32_2 = arith.constant 0 : i32
    return %c0_i32, %c0_i32_0, %c0_i32_1 : i32, i32, i32
  }
  func.func @transform_17(%arg0: i32) -> (i32, i32, i32) {
    %c0_i32 = arith.constant 0 : i32
    %c0_i32_0 = arith.constant 0 : i32
    %c0_i32_1 = arith.constant 0 : i32
    %c0_i32_2 = arith.constant 0 : i32
    return %c0_i32, %c0_i32_0, %c0_i32_1 : i32, i32, i32
  }
  func.func @transform_18(%arg0: i32) -> (i32, i32) {
    %c0_i32 = arith.constant 0 : i32
    %c0_i32_0 = arith.constant 0 : i32
    %c0_i32_1 = arith.constant 0 : i32
    return %c0_i32, %c0_i32_0 : i32, i32
  }
  func.func @transform_19(%arg0: i32) -> (i32, i32) {
    %c0_i32 = arith.constant 0 : i32
    %c0_i32_0 = arith.constant 0 : i32
    %c0_i32_1 = arith.constant 0 : i32
    return %c0_i32, %c0_i32_0 : i32, i32
  }
  func.func @transform_20(%arg0: i32) -> (i32, i32) {
    %c0_i32 = arith.constant 0 : i32
    %c0_i32_0 = arith.constant 0 : i32
    %c0_i32_1 = arith.constant 0 : i32
    return %c0_i32, %c0_i32_0 : i32, i32
  }
  func.func @transform_21(%arg0: i32) -> (i32, i32) {
    %c0_i32 = arith.constant 0 : i32
    %c0_i32_0 = arith.constant 0 : i32
    %c0_i32_1 = arith.constant 0 : i32
    return %c0_i32, %c0_i32_0 : i32, i32
  }
  func.func @transform_22(%arg0: i32) -> (i32, i32, i32) {
    %c0_i32 = arith.constant 0 : i32
    %c0_i32_0 = arith.constant 0 : i32
    %c0_i32_1 = arith.constant 0 : i32
    return %arg0, %c0_i32, %c0_i32_0 : i32, i32, i32
  }
}

</mosaic_0001>

<llo_original>
// kernel: mix_attention_forward.1
$region0: #{mix_attention_forward.1}
  #allocation0 [shape = 'u32[]', space=smem, size = 0x4, offset = 0x4, fixed_abs, tag = 'smem constant byte address 0x4 - core index']
  #allocation1 [shape = 'u32[144,128]{1,0:T(1,128)}', space=vmem, size = 0x12000, scoped, tag = 'internal scratch']
  #allocation2 [shape = 'f32[1,1]{1,0:T(1,128)S(6)}', space=smem, size = 0x200, scoped, tag = 'scoped memory for mix_attention_forward.1']
  %s0 = inlined_call_operand.<no memory space> [shape: f32[1,1], index: 0, kind: input, shape index: {}]
  %s1 = inlined_call_operand.vmem [shape: f32[1,50,33], index: 1, kind: input, shape index: {}]
  %s2 = inlined_call_operand.vmem [shape: f32[1,20,33], index: 2, kind: input, shape index: {}]
  %s3 = inlined_call_operand.vmem [shape: f32[1,50,66], index: 3, kind: input, shape index: {}]
  %s4 = inlined_call_operand.vmem [shape: f32[6,33,64], index: 4, kind: input, shape index: {}]
  %s5 = inlined_call_operand.vmem [shape: f32[5,64,64], index: 5, kind: input, shape index: {}]
  %s6 = inlined_call_operand.vmem [shape: f32[6,33,64], index: 6, kind: input, shape index: {}]
  %s7 = inlined_call_operand.vmem [shape: f32[5,64,64], index: 7, kind: input, shape index: {}]
  %s8 = inlined_call_operand.vmem [shape: f32[160,50], index: 8, kind: input, shape index: {}]
  %s9 = inlined_call_operand.vmem [shape: f32[16,160], index: 9, kind: input, shape index: {}]
  %s10 = inlined_call_operand.vmem [shape: f32[10,160], index: 10, kind: input, shape index: {}]
  %s11 = inlined_call_operand.vmem [shape: f32[10,50], index: 11, kind: input, shape index: {}]
  %s12 = inlined_call_operand.vmem [shape: f32[64,20], index: 12, kind: input, shape index: {}]
  %s13 = inlined_call_operand.vmem [shape: f32[66,66], index: 13, kind: input, shape index: {}]
  %s14 = inlined_call_operand.vmem [shape: f32[64,1], index: 14, kind: input, shape index: {}]
  %s15 = inlined_call_operand.vmem [shape: f32[4,64,64], index: 15, kind: input, shape index: {}]
  %s16 = inlined_call_operand.vmem [shape: f32[4,66,66], index: 16, kind: input, shape index: {}]
  %s17 = inlined_call_operand.vmem [shape: f32[4,64,1], index: 17, kind: input, shape index: {}]
  %s18 = inlined_call_operand.vmem [shape: f32[20,64], index: 18, kind: input, shape index: {}]
  %s19 = inlined_call_operand.vmem [shape: f32[66,66], index: 19, kind: input, shape index: {}]
  %s20 = inlined_call_operand.vmem [shape: f32[20,1], index: 20, kind: input, shape index: {}]
  %s21 = inlined_call_operand.vmem [shape: f32[35,20], index: 21, kind: input, shape index: {}]
  %s22 = inlined_call_operand.vmem [shape: f32[1,35,66], index: 22, kind: output, shape index: {}]
  %s23 = sld [smem:[#allocation0]]
  $region98: #{mix_attention_forward.1} parent=0
    _
  %s25 = ssub.s32 1, %s23
  %s26 = scalar_select 0, %s25, %s23
  %27 = sst [smem:[#allocation2]] %s0
  // Predicated region
  $region2: #{mix_attention_forward.1} parent=0 // pred_check
    _
  $region3: #{mix_attention_forward.1} parent=0 // pred_check_branch
    %29 = sbr.rel (0) target = $region5
  $region4: #{mix_attention_forward.1} parent=0 // pred_region
    _
  $region5: #{mix_attention_forward.1} parent=0 // pred_fallthru
    _
  // Predicated region
  $region6: #{mix_attention_forward.1} parent=0 // pred_check
    _
  $region7: #{mix_attention_forward.1} parent=0 // pred_check_branch
    %31 = sbr.rel (0) target = $region9
  $region8: #{mix_attention_forward.1} parent=0 // pred_region
    _
  $region9: #{mix_attention_forward.1} parent=0 // pred_fallthru
    _
  // Predicated region
  $region10: #{mix_attention_forward.1} parent=0 // pred_check
    _
  $region11: #{mix_attention_forward.1} parent=0 // pred_check_branch
    %33 = sbr.rel (0) target = $region13
  $region12: #{mix_attention_forward.1} parent=0 // pred_region
    _
  $region13: #{mix_attention_forward.1} parent=0 // pred_fallthru
    _
  // Predicated region
  $region14: #{mix_attention_forward.1} parent=0 // pred_check
    _
  $region15: #{mix_attention_forward.1} parent=0 // pred_check_branch
    %35 = sbr.rel (0) target = $region17
  $region16: #{mix_attention_forward.1} parent=0 // pred_region
    _
  $region17: #{mix_attention_forward.1} parent=0 // pred_fallthru
    _
  // Predicated region
  $region18: #{mix_attention_forward.1} parent=0 // pred_check
    _
  $region19: #{mix_attention_forward.1} parent=0 // pred_check_branch
    %37 = sbr.rel (0) target = $region21
  $region20: #{mix_attention_forward.1} parent=0 // pred_region
    _
  $region21: #{mix_attention_forward.1} parent=0 // pred_fallthru
    _
  // Predicated region
  $region22: #{mix_attention_forward.1} parent=0 // pred_check
    _
  $region23: #{mix_attention_forward.1} parent=0 // pred_check_branch
    %39 = sbr.rel (0) target = $region25
  $region24: #{mix_attention_forward.1} parent=0 // pred_region
    _
  $region25: #{mix_attention_forward.1} parent=0 // pred_fallthru
    _
  // Predicated region
  $region26: #{mix_attention_forward.1} parent=0 // pred_check
    _
  $region27: #{mix_attention_forward.1} parent=0 // pred_check_branch
    %41 = sbr.rel (0) target = $region29
  $region28: #{mix_attention_forward.1} parent=0 // pred_region
    _
  $region29: #{mix_attention_forward.1} parent=0 // pred_fallthru
    _
  // Predicated region
  $region30: #{mix_attention_forward.1} parent=0 // pred_check
    _
  $region31: #{mix_attention_forward.1} parent=0 // pred_check_branch
    %43 = sbr.rel (0) target = $region33
  $region32: #{mix_attention_forward.1} parent=0 // pred_region
    _
  $region33: #{mix_attention_forward.1} parent=0 // pred_fallthru
    _
  // Predicated region
  $region34: #{mix_attention_forward.1} parent=0 // pred_check
    _
  $region35: #{mix_attention_forward.1} parent=0 // pred_check_branch
    %45 = sbr.rel (0) target = $region37
  $region36: #{mix_attention_forward.1} parent=0 // pred_region
    _
  $region37: #{mix_attention_forward.1} parent=0 // pred_fallthru
    _
  // Predicated region
  $region38: #{mix_attention_forward.1} parent=0 // pred_check
    _
  $region39: #{mix_attention_forward.1} parent=0 // pred_check_branch
    %47 = sbr.rel (0) target = $region41
  $region40: #{mix_attention_forward.1} parent=0 // pred_region
    _
  $region41: #{mix_attention_forward.1} parent=0 // pred_fallthru
    _
  // Predicated region
  $region42: #{mix_attention_forward.1} parent=0 // pred_check
    _
  $region43: #{mix_attention_forward.1} parent=0 // pred_check_branch
    %49 = sbr.rel (0) target = $region45
  $region44: #{mix_attention_forward.1} parent=0 // pred_region
    _
  $region45: #{mix_attention_forward.1} parent=0 // pred_fallthru
    _
  // Predicated region
  $region46: #{mix_attention_forward.1} parent=0 // pred_check
    _
  $region47: #{mix_attention_forward.1} parent=0 // pred_check_branch
    %51 = sbr.rel (0) target = $region49
  $region48: #{mix_attention_forward.1} parent=0 // pred_region
    _
  $region49: #{mix_attention_forward.1} parent=0 // pred_fallthru
    _
  // Predicated region
  $region50: #{mix_attention_forward.1} parent=0 // pred_check
    _
  $region51: #{mix_attention_forward.1} parent=0 // pred_check_branch
    %53 = sbr.rel (0) target = $region53
  $region52: #{mix_attention_forward.1} parent=0 // pred_region
    _
  $region53: #{mix_attention_forward.1} parent=0 // pred_fallthru
    _
  // Predicated region
  $region54: #{mix_attention_forward.1} parent=0 // pred_check
    _
  $region55: #{mix_attention_forward.1} parent=0 // pred_check_branch
    %55 = sbr.rel (0) target = $region57
  $region56: #{mix_attention_forward.1} parent=0 // pred_region
    _
  $region57: #{mix_attention_forward.1} parent=0 // pred_fallthru
    _
  // Predicated region
  $region58: #{mix_attention_forward.1} parent=0 // pred_check
    _
  $region59: #{mix_attention_forward.1} parent=0 // pred_check_branch
    %57 = sbr.rel (0) target = $region61
  $region60: #{mix_attention_forward.1} parent=0 // pred_region
    _
  $region61: #{mix_attention_forward.1} parent=0 // pred_fallthru
    _
  // Predicated region
  $region62: #{mix_attention_forward.1} parent=0 // pred_check
    _
  $region63: #{mix_attention_forward.1} parent=0 // pred_check_branch
    %59 = sbr.rel (0) target = $region65
  $region64: #{mix_attention_forward.1} parent=0 // pred_region
    _
  $region65: #{mix_attention_forward.1} parent=0 // pred_fallthru
    _
  // Predicated region
  $region66: #{mix_attention_forward.1} parent=0 // pred_check
    _
  $region67: #{mix_attention_forward.1} parent=0 // pred_check_branch
    %61 = sbr.rel (0) target = $region69
  $region68: #{mix_attention_forward.1} parent=0 // pred_region
    _
  $region69: #{mix_attention_forward.1} parent=0 // pred_fallthru
    _
  // Predicated region
  $region70: #{mix_attention_forward.1} parent=0 // pred_check
    _
  $region71: #{mix_attention_forward.1} parent=0 // pred_check_branch
    %63 = sbr.rel (0) target = $region73
  $region72: #{mix_attention_forward.1} parent=0 // pred_region
    _
  $region73: #{mix_attention_forward.1} parent=0 // pred_fallthru
    _
  // Predicated region
  $region74: #{mix_attention_forward.1} parent=0 // pred_check
    _
  $region75: #{mix_attention_forward.1} parent=0 // pred_check_branch
    %65 = sbr.rel (0) target = $region77
  $region76: #{mix_attention_forward.1} parent=0 // pred_region
    _
  $region77: #{mix_attention_forward.1} parent=0 // pred_fallthru
    _
  // Predicated region
  $region78: #{mix_attention_forward.1} parent=0 // pred_check
    _
  $region79: #{mix_attention_forward.1} parent=0 // pred_check_branch
    %67 = sbr.rel (0) target = $region81
  $region80: #{mix_attention_forward.1} parent=0 // pred_region
    _
  $region81: #{mix_attention_forward.1} parent=0 // pred_fallthru
    _
  // Predicated region
  $region82: #{mix_attention_forward.1} parent=0 // pred_check
    _
  $region83: #{mix_attention_forward.1} parent=0 // pred_check_branch
    %69 = sbr.rel (0) target = $region85
  $region84: #{mix_attention_forward.1} parent=0 // pred_region
    _
  $region85: #{mix_attention_forward.1} parent=0 // pred_fallthru
    _
  // Predicated region
  $region86: #{mix_attention_forward.1} parent=0 // pred_check
    _
  $region87: #{mix_attention_forward.1} parent=0 // pred_check_branch
    %71 = sbr.rel (0) target = $region89
  $region88: #{mix_attention_forward.1} parent=0 // pred_region
    _
  $region89: #{mix_attention_forward.1} parent=0 // pred_fallthru
    _
  %v72 = vld [vmem:[%s1] sm:$0xff]
  %v73 = vld [vmem:[%s1 + $0x8] sm:$0xff]
  %v74 = vld [vmem:[%s1 + $0x10] sm:$0xff]
  %v75 = vld [vmem:[%s1 + $0x18] sm:$0xff]
  %v76 = vld [vmem:[%s1 + $0x20] sm:$0xff]
  %v77 = vld [vmem:[%s1 + $0x28] sm:$0xff]
  %v78 = vld [vmem:[%s1 + $0x30] sm:$0x3]
  %v79 = vld [vmem:[%s2] sm:$0xff]
  %v80 = vld [vmem:[%s2 + $0x8] sm:$0xff]
  %v81 = vld [vmem:[%s2 + $0x10] sm:$0xf]
  %v82 = vld [vmem:[%s3] sm:$0xff]
  %v83 = vld [vmem:[%s3 + $0x8] sm:$0xff]
  %v84 = vld [vmem:[%s3 + $0x10] sm:$0xff]
  %v85 = vld [vmem:[%s3 + $0x18] sm:$0xff]
  %v86 = vld [vmem:[%s3 + $0x20] sm:$0xff]
  %v87 = vld [vmem:[%s3 + $0x28] sm:$0xff]
  %v88 = vld [vmem:[%s3 + $0x30] sm:$0x3]
  %s89 = sld [smem:[#allocation2]]
  %v90 = vld [vmem:[%s4] sm:$0xff]
  %v91 = vld [vmem:[%s4 + $0x8] sm:$0xff]
  %v92 = vld [vmem:[%s4 + $0x10] sm:$0xff]
  %v93 = vld [vmem:[%s4 + $0x18] sm:$0xff]
  %v94 = vld [vmem:[%s4 + $0x20] sm:$0x1]
  %s95 = scalar_lea.vmem %s4, 40
  %v96 = vld [vmem:[%s95] sm:$0xff]
  %v97 = vld [vmem:[%s95 + $0x8] sm:$0xff]
  %v98 = vld [vmem:[%s95 + $0x10] sm:$0xff]
  %v99 = vld [vmem:[%s95 + $0x18] sm:$0xff]
  %v100 = vld [vmem:[%s95 + $0x20] sm:$0x1]
  %vm107 = vcmask 1046528
  %v108 = vrot.slane %v72, 1
  %v109 = vrot.slane %v73, 1
  %v110 = vsel %vm107, %v108, %v109
  %v111 = vrot.slane %v74, 1
  %v112 = vsel %vm107, %v109, %v111
  %v113 = vrot.slane %v75, 1
  %v114 = vsel %vm107, %v111, %v113
  %v115 = vrot.slane %v76, 1
  %v116 = vsel %vm107, %v113, %v115
  %v117 = vrot.slane %v77, 1
  %v118 = vsel %vm107, %v115, %v117
  %vm119 = vcmask 269312
  %v120 = vsel %vm119, %v110, 0
  %v122 = vsel %vm119, %v112, 0
  %v124 = vsel %vm119, %v114, 0
  %v126 = vsel %vm119, %v116, 0
  %v128 = vsel %vm119, %v118, 0
  %v130 = vsel %vm119, %v117, 0
  %vm132 = vcmask 1040384
  %v134 = vsel %vm132, %v100, 0
  %136 = vmatprep.subr.mxu0 0.0
  %137 = vmatpush1.msra.mxu0 0.0
  %138 = vmatprep.subr.mxu0 0.0
  %139 = vmatpush1.msra.mxu0 0.0
  %140 = vmatprep.subr.mxu0 0.0
  %141 = vmatpush1.msra.mxu0 0.0
  %142 = vmatprep.subr.mxu0 0.0
  %143 = vmatpush1.msra.mxu0 0.0
  %144 = vmatprep.subr.mxu0 0.0
  %145 = vmatpush1.msra.mxu0 0.0
  %146 = vmatprep.subr.mxu0 0.0
  %147 = vmatpush1.msra.mxu0 0.0
  %148 = vmatprep.subr.mxu0 0.0
  %149 = vmatpush1.msra.mxu0 0.0
  %150 = vmatprep.subr.mxu0 0.0
  %151 = vmatpush1.msra.mxu0 0.0
  %152 = vmatprep.subr.mxu0 0.0
  %153 = vmatpush1.msra.mxu0 0.0
  %154 = vmatprep.subr.mxu0 0.0
  %155 = vmatpush1.msra.mxu0 0.0
  %156 = vmatprep.subr.mxu0 0.0
  %157 = vmatpush1.msra.mxu0 0.0
  %158 = vmatprep.subr.mxu0 0.0
  %159 = vmatpush1.msra.mxu0 %v134
  %160 = vmatprep.subr.mxu0 0.0
  %161 = vmatpush1.msra.mxu0 %v99
  %162 = vmatprep.subr.mxu0 0.0
  %163 = vmatpush1.msra.mxu0 %v98
  %164 = vmatprep.subr.mxu0 0.0
  %165 = vmatpush1.msra.mxu0 %v97
  %166 = vmatprep.subr.mxu0 0.0
  %167 = vmatpush1.msra.mxu0 %v96
  %168 = vmatprep.subr.mxu0 0.0
  %169 = vmatpush2.msra.mxu0 0.0
  %170 = vmatprep.subr.mxu0 0.0
  %171 = vmatpush2.msra.mxu0 0.0
  %172 = vmatprep.subr.mxu0 0.0
  %173 = vmatpush2.msra.mxu0 0.0
  %174 = vmatprep.subr.mxu0 0.0
  %175 = vmatpush2.msra.mxu0 0.0
  %176 = vmatprep.subr.mxu0 0.0
  %177 = vmatpush2.msra.mxu0 0.0
  %178 = vmatprep.subr.mxu0 0.0
  %179 = vmatpush2.msra.mxu0 0.0
  %180 = vmatprep.subr.mxu0 0.0
  %181 = vmatpush2.msra.mxu0 0.0
  %182 = vmatprep.subr.mxu0 0.0
  %183 = vmatpush2.msra.mxu0 0.0
  %184 = vmatprep.subr.mxu0 0.0
  %185 = vmatpush2.msra.mxu0 0.0
  %186 = vmatprep.subr.mxu0 0.0
  %187 = vmatpush2.msra.mxu0 0.0
  %188 = vmatprep.subr.mxu0 0.0
  %189 = vmatpush2.msra.mxu0 0.0
  %190 = vmatprep.subr.mxu0 0.0
  %191 = vmatpush2.msra.mxu0 0.0
  %192 = vmatprep.subr.mxu0 0.0
  %193 = vmatpush2.msra.mxu0 0.0
  %194 = vmatprep.subr.mxu0 0.0
  %195 = vmatpush2.msra.mxu0 0.0
  %196 = vmatprep.subr.mxu0 0.0
  %197 = vmatpush2.msra.mxu0 0.0
  %198 = vmatprep.subr.mxu0 0.0
  %199 = vmatpush2.msra.mxu0 0.0
  %200 = vmatprep.mubr.f32.mxu0 0.0
  %201 = vmatmul.mubr.f32.gmra.mxu0 %v120
  %v202 = vpop.f32.mrf.mxu0
  %v203 = vadd.f32 0.0, %v202
  %v204 = vpop.f32.mrf.mxu0
  %205 = vmatprep.mubr.f32.mxu0 0.0
  %206 = vmatmul.mubr.f32.gmra.mxu0 %v122
  %v207 = vpop.f32.mrf.mxu0
  %v208 = vadd.f32 0.0, %v207
  %v209 = vpop.f32.mrf.mxu0
  %210 = vmatprep.mubr.f32.mxu0 0.0
  %211 = vmatmul.mubr.f32.gmra.mxu0 %v124
  %v212 = vpop.f32.mrf.mxu0
  %v213 = vadd.f32 0.0, %v212
  %v214 = vpop.f32.mrf.mxu0
  %215 = vmatprep.mubr.f32.mxu0 0.0
  %216 = vmatmul.mubr.f32.gmra.mxu0 %v126
  %v217 = vpop.f32.mrf.mxu0
  %v218 = vadd.f32 0.0, %v217
  %v219 = vpop.f32.mrf.mxu0
  %220 = vmatprep.mubr.f32.mxu0 0.0
  %221 = vmatmul.mubr.f32.gmra.mxu0 %v128
  %v222 = vpop.f32.mrf.mxu0
  %v223 = vadd.f32 0.0, %v222
  %v224 = vpop.f32.mrf.mxu0
  %225 = vmatprep.mubr.f32.mxu0 0.0
  %226 = vmatmul.mubr.f32.gmra.mxu0 %v130
  %v227 = vpop.f32.mrf.mxu0
  %v228 = vadd.f32 0.0, %v227
  %v229 = vpop.f32.mrf.mxu0
  %230 = vdwg.mxu0
  %v231 = vsel %vm119, %v72, 0
  %v233 = vsel %vm119, %v73, 0
  %v235 = vsel %vm119, %v74, 0
  %v237 = vsel %vm119, %v75, 0
  %v239 = vsel %vm119, %v76, 0
  %v241 = vsel %vm119, %v77, 0
  %v244 = vsel %vm132, %v94, 0
  %246 = vmatprep.subr.mxu0 0.0
  %247 = vmatpush1.msra.mxu0 0.0
  %248 = vmatprep.subr.mxu0 0.0
  %249 = vmatpush1.msra.mxu0 0.0
  %250 = vmatprep.subr.mxu0 0.0
  %251 = vmatpush1.msra.mxu0 0.0
  %252 = vmatprep.subr.mxu0 0.0
  %253 = vmatpush1.msra.mxu0 0.0
  %254 = vmatprep.subr.mxu0 0.0
  %255 = vmatpush1.msra.mxu0 0.0
  %256 = vmatprep.subr.mxu0 0.0
  %257 = vmatpush1.msra.mxu0 0.0
  %258 = vmatprep.subr.mxu0 0.0
  %259 = vmatpush1.msra.mxu0 0.0
  %260 = vmatprep.subr.mxu0 0.0
  %261 = vmatpush1.msra.mxu0 0.0
  %262 = vmatprep.subr.mxu0 0.0
  %263 = vmatpush1.msra.mxu0 0.0
  %264 = vmatprep.subr.mxu0 0.0
  %265 = vmatpush1.msra.mxu0 0.0
  %266 = vmatprep.subr.mxu0 0.0
  %267 = vmatpush1.msra.mxu0 0.0
  %268 = vmatprep.subr.mxu0 0.0
  %269 = vmatpush1.msra.mxu0 %v244
  %270 = vmatprep.subr.mxu0 0.0
  %271 = vmatpush1.msra.mxu0 %v93
  %272 = vmatprep.subr.mxu0 0.0
  %273 = vmatpush1.msra.mxu0 %v92
  %274 = vmatprep.subr.mxu0 0.0
  %275 = vmatpush1.msra.mxu0 %v91
  %276 = vmatprep.subr.mxu0 0.0
  %277 = vmatpush1.msra.mxu0 %v90
  %278 = vmatprep.subr.mxu0 0.0
  %279 = vmatpush2.msra.mxu0 0.0
  %280 = vmatprep.subr.mxu0 0.0
  %281 = vmatpush2.msra.mxu0 0.0
  %282 = vmatprep.subr.mxu0 0.0
  %283 = vmatpush2.msra.mxu0 0.0
  %284 = vmatprep.subr.mxu0 0.0
  %285 = vmatpush2.msra.mxu0 0.0
  %286 = vmatprep.subr.mxu0 0.0
  %287 = vmatpush2.msra.mxu0 0.0
  %288 = vmatprep.subr.mxu0 0.0
  %289 = vmatpush2.msra.mxu0 0.0
  %290 = vmatprep.subr.mxu0 0.0
  %291 = vmatpush2.msra.mxu0 0.0
  %292 = vmatprep.subr.mxu0 0.0
  %293 = vmatpush2.msra.mxu0 0.0
  %294 = vmatprep.subr.mxu0 0.0
  %295 = vmatpush2.msra.mxu0 0.0
  %296 = vmatprep.subr.mxu0 0.0
  %297 = vmatpush2.msra.mxu0 0.0
  %298 = vmatprep.subr.mxu0 0.0
  %299 = vmatpush2.msra.mxu0 0.0
  %300 = vmatprep.subr.mxu0 0.0
  %301 = vmatpush2.msra.mxu0 0.0
  %302 = vmatprep.subr.mxu0 0.0
  %303 = vmatpush2.msra.mxu0 0.0
  %304 = vmatprep.subr.mxu0 0.0
  %305 = vmatpush2.msra.mxu0 0.0
  %306 = vmatprep.subr.mxu0 0.0
  %307 = vmatpush2.msra.mxu0 0.0
  %308 = vmatprep.subr.mxu0 0.0
  %309 = vmatpush2.msra.mxu0 0.0
  %310 = vmatprep.mubr.f32.mxu0 0.0
  %311 = vmatmul.mubr.f32.gmra.mxu0 %v231
  %v312 = vpop.f32.mrf.mxu0
  %v313 = vadd.f32 %v203, %v312
  %v314 = vpop.f32.mrf.mxu0
  %315 = vmatprep.mubr.f32.mxu0 0.0
  %316 = vmatmul.mubr.f32.gmra.mxu0 %v233
  %v317 = vpop.f32.mrf.mxu0
  %v318 = vadd.f32 %v208, %v317
  %v319 = vpop.f32.mrf.mxu0
  %320 = vmatprep.mubr.f32.mxu0 0.0
  %321 = vmatmul.mubr.f32.gmra.mxu0 %v235
  %v322 = vpop.f32.mrf.mxu0
  %v323 = vadd.f32 %v213, %v322
  %v324 = vpop.f32.mrf.mxu0
  %325 = vmatprep.mubr.f32.mxu0 0.0
  %326 = vmatmul.mubr.f32.gmra.mxu0 %v237
  %v327 = vpop.f32.mrf.mxu0
  %v328 = vadd.f32 %v218, %v327
  %v329 = vpop.f32.mrf.mxu0
  %330 = vmatprep.mubr.f32.mxu0 0.0
  %331 = vmatmul.mubr.f32.gmra.mxu0 %v239
  %v332 = vpop.f32.mrf.mxu0
  %v333 = vadd.f32 %v223, %v332
  %v334 = vpop.f32.mrf.mxu0
  %335 = vmatprep.mubr.f32.mxu0 0.0
  %336 = vmatmul.mubr.f32.gmra.mxu0 %v241
  %v337 = vpop.f32.mrf.mxu0
  %v338 = vadd.f32 %v228, %v337
  %v339 = vpop.f32.mrf.mxu0
  %340 = vdwg.mxu0
  %s341 = scalar_lea.vmem %s4, 80
  %v342 = vld [vmem:[%s341] sm:$0xff]
  %v343 = vld [vmem:[%s341 + $0x8] sm:$0xff]
  %v344 = vld [vmem:[%s341 + $0x10] sm:$0xff]
  %v345 = vld [vmem:[%s341 + $0x18] sm:$0xff]
  %v346 = vld [vmem:[%s341 + $0x20] sm:$0x1]
  %vm347 = vcmask 1045504
  %v348 = vrot.slane %v72, 2
  %v349 = vrot.slane %v73, 2
  %v350 = vsel %vm347, %v348, %v349
  %v351 = vrot.slane %v74, 2
  %v352 = vsel %vm347, %v349, %v351
  %v353 = vrot.slane %v75, 2
  %v354 = vsel %vm347, %v351, %v353
  %v355 = vrot.slane %v76, 2
  %v356 = vsel %vm347, %v353, %v355
  %v357 = vrot.slane %v77, 2
  %v358 = vsel %vm347, %v355, %v357
  %v359 = vsel %vm119, %v350, 0
  %v361 = vsel %vm119, %v352, 0
  %v363 = vsel %vm119, %v354, 0
  %v365 = vsel %vm119, %v356, 0
  %v367 = vsel %vm119, %v358, 0
  %v369 = vsel %vm119, %v357, 0
  %v372 = vsel %vm132, %v346, 0
  %374 = vmatprep.subr.mxu0 0.0
  %375 = vmatpush1.msra.mxu0 0.0
  %376 = vmatprep.subr.mxu0 0.0
  %377 = vmatpush1.msra.mxu0 0.0
  %378 = vmatprep.subr.mxu0 0.0
  %379 = vmatpush1.msra.mxu0 0.0
  %380 = vmatprep.subr.mxu0 0.0
  %381 = vmatpush1.msra.mxu0 0.0
  %382 = vmatprep.subr.mxu0 0.0
  %383 = vmatpush1.msra.mxu0 0.0
  %384 = vmatprep.subr.mxu0 0.0
  %385 = vmatpush1.msra.mxu0 0.0
  %386 = vmatprep.subr.mxu0 0.0
  %387 = vmatpush1.msra.mxu0 0.0
  %388 = vmatprep.subr.mxu0 0.0
  %389 = vmatpush1.msra.mxu0 0.0
  %390 = vmatprep.subr.mxu0 0.0
  %391 = vmatpush1.msra.mxu0 0.0
  %392 = vmatprep.subr.mxu0 0.0
  %393 = vmatpush1.msra.mxu0 0.0
  %394 = vmatprep.subr.mxu0 0.0
  %395 = vmatpush1.msra.mxu0 0.0
  %396 = vmatprep.subr.mxu0 0.0
  %397 = vmatpush1.msra.mxu0 %v372
  %398 = vmatprep.subr.mxu0 0.0
  %399 = vmatpush1.msra.mxu0 %v345
  %400 = vmatprep.subr.mxu0 0.0
  %401 = vmatpush1.msra.mxu0 %v344
  %402 = vmatprep.subr.mxu0 0.0
  %403 = vmatpush1.msra.mxu0 %v343
  %404 = vmatprep.subr.mxu0 0.0
  %405 = vmatpush1.msra.mxu0 %v342
  %406 = vmatprep.subr.mxu0 0.0
  %407 = vmatpush2.msra.mxu0 0.0
  %408 = vmatprep.subr.mxu0 0.0
  %409 = vmatpush2.msra.mxu0 0.0
  %410 = vmatprep.subr.mxu0 0.0
  %411 = vmatpush2.msra.mxu0 0.0
  %412 = vmatprep.subr.mxu0 0.0
  %413 = vmatpush2.msra.mxu0 0.0
  %414 = vmatprep.subr.mxu0 0.0
  %415 = vmatpush2.msra.mxu0 0.0
  %416 = vmatprep.subr.mxu0 0.0
  %417 = vmatpush2.msra.mxu0 0.0
  %418 = vmatprep.subr.mxu0 0.0
  %419 = vmatpush2.msra.mxu0 0.0
  %420 = vmatprep.subr.mxu0 0.0
  %421 = vmatpush2.msra.mxu0 0.0
  %422 = vmatprep.subr.mxu0 0.0
  %423 = vmatpush2.msra.mxu0 0.0
  %424 = vmatprep.subr.mxu0 0.0
  %425 = vmatpush2.msra.mxu0 0.0
  %426 = vmatprep.subr.mxu0 0.0
  %427 = vmatpush2.msra.mxu0 0.0
  %428 = vmatprep.subr.mxu0 0.0
  %429 = vmatpush2.msra.mxu0 0.0
  %430 = vmatprep.subr.mxu0 0.0
  %431 = vmatpush2.msra.mxu0 0.0
  %432 = vmatprep.subr.mxu0 0.0
  %433 = vmatpush2.msra.mxu0 0.0
  %434 = vmatprep.subr.mxu0 0.0
  %435 = vmatpush2.msra.mxu0 0.0
  %436 = vmatprep.subr.mxu0 0.0
  %437 = vmatpush2.msra.mxu0 0.0
  %438 = vmatprep.mubr.f32.mxu0 0.0
  %439 = vmatmul.mubr.f32.gmra.mxu0 %v359
  %v440 = vpop.f32.mrf.mxu0
  %v441 = vadd.f32 0.0, %v440
  %v442 = vpop.f32.mrf.mxu0
  %443 = vmatprep.mubr.f32.mxu0 0.0
  %444 = vmatmul.mubr.f32.gmra.mxu0 %v361
  %v445 = vpop.f32.mrf.mxu0
  %v446 = vadd.f32 0.0, %v445
  %v447 = vpop.f32.mrf.mxu0
  %448 = vmatprep.mubr.f32.mxu0 0.0
  %449 = vmatmul.mubr.f32.gmra.mxu0 %v363
  %v450 = vpop.f32.mrf.mxu0
  %v451 = vadd.f32 0.0, %v450
  %v452 = vpop.f32.mrf.mxu0
  %453 = vmatprep.mubr.f32.mxu0 0.0
  %454 = vmatmul.mubr.f32.gmra.mxu0 %v365
  %v455 = vpop.f32.mrf.mxu0
  %v456 = vadd.f32 0.0, %v455
  %v457 = vpop.f32.mrf.mxu0
  %458 = vmatprep.mubr.f32.mxu0 0.0
  %459 = vmatmul.mubr.f32.gmra.mxu0 %v367
  %v460 = vpop.f32.mrf.mxu0
  %v461 = vadd.f32 0.0, %v460
  %v462 = vpop.f32.mrf.mxu0
  %463 = vmatprep.mubr.f32.mxu0 0.0
  %464 = vmatmul.mubr.f32.gmra.mxu0 %v369
  %v465 = vpop.f32.mrf.mxu0
  %v466 = vadd.f32 0.0, %v465
  %v467 = vpop.f32.mrf.mxu0
  %468 = vdwg.mxu0
  %v469 = vadd.f32 %v313, %v441
  %v470 = vadd.f32 %v318, %v446
  %v471 = vadd.f32 %v323, %v451
  %v472 = vadd.f32 %v328, %v456
  %v473 = vadd.f32 %v333, %v461
  %v474 = vadd.f32 %v338, %v466
  %s475 = scalar_lea.vmem %s4, 120
  %v476 = vld [vmem:[%s475] sm:$0xff]
  %v477 = vld [vmem:[%s475 + $0x8] sm:$0xff]
  %v478 = vld [vmem:[%s475 + $0x10] sm:$0xff]
  %v479 = vld [vmem:[%s475 + $0x18] sm:$0xff]
  %v480 = vld [vmem:[%s475 + $0x20] sm:$0x1]
  %vm481 = vcmask 1044480
  %v482 = vrot.slane %v72, 3
  %v483 = vrot.slane %v73, 3
  %v484 = vsel %vm481, %v482, %v483
  %v485 = vrot.slane %v74, 3
  %v486 = vsel %vm481, %v483, %v485
  %v487 = vrot.slane %v75, 3
  %v488 = vsel %vm481, %v485, %v487
  %v489 = vrot.slane %v76, 3
  %v490 = vsel %vm481, %v487, %v489
  %v491 = vrot.slane %v77, 3
  %v492 = vsel %vm481, %v489, %v491
  %v493 = vsel %vm119, %v484, 0
  %v495 = vsel %vm119, %v486, 0
  %v497 = vsel %vm119, %v488, 0
  %v499 = vsel %vm119, %v490, 0
  %v501 = vsel %vm119, %v492, 0
  %v503 = vsel %vm119, %v491, 0
  %v506 = vsel %vm132, %v480, 0
  %508 = vmatprep.subr.mxu0 0.0
  %509 = vmatpush1.msra.mxu0 0.0
  %510 = vmatprep.subr.mxu0 0.0
  %511 = vmatpush1.msra.mxu0 0.0
  %512 = vmatprep.subr.mxu0 0.0
  %513 = vmatpush1.msra.mxu0 0.0
  %514 = vmatprep.subr.mxu0 0.0
  %515 = vmatpush1.msra.mxu0 0.0
  %516 = vmatprep.subr.mxu0 0.0
  %517 = vmatpush1.msra.mxu0 0.0
  %518 = vmatprep.subr.mxu0 0.0
  %519 = vmatpush1.msra.mxu0 0.0
  %520 = vmatprep.subr.mxu0 0.0
  %521 = vmatpush1.msra.mxu0 0.0
  %522 = vmatprep.subr.mxu0 0.0
  %523 = vmatpush1.msra.mxu0 0.0
  %524 = vmatprep.subr.mxu0 0.0
  %525 = vmatpush1.msra.mxu0 0.0
  %526 = vmatprep.subr.mxu0 0.0
  %527 = vmatpush1.msra.mxu0 0.0
  %528 = vmatprep.subr.mxu0 0.0
  %529 = vmatpush1.msra.mxu0 0.0
  %530 = vmatprep.subr.mxu0 0.0
  %531 = vmatpush1.msra.mxu0 %v506
  %532 = vmatprep.subr.mxu0 0.0
  %533 = vmatpush1.msra.mxu0 %v479
  %534 = vmatprep.subr.mxu0 0.0
  %535 = vmatpush1.msra.mxu0 %v478
  %536 = vmatprep.subr.mxu0 0.0
  %537 = vmatpush1.msra.mxu0 %v477
  %538 = vmatprep.subr.mxu0 0.0
  %539 = vmatpush1.msra.mxu0 %v476
  %540 = vmatprep.subr.mxu0 0.0
  %541 = vmatpush2.msra.mxu0 0.0
  %542 = vmatprep.subr.mxu0 0.0
  %543 = vmatpush2.msra.mxu0 0.0
  %544 = vmatprep.subr.mxu0 0.0
  %545 = vmatpush2.msra.mxu0 0.0
  %546 = vmatprep.subr.mxu0 0.0
  %547 = vmatpush2.msra.mxu0 0.0
  %548 = vmatprep.subr.mxu0 0.0
  %549 = vmatpush2.msra.mxu0 0.0
  %550 = vmatprep.subr.mxu0 0.0
  %551 = vmatpush2.msra.mxu0 0.0
  %552 = vmatprep.subr.mxu0 0.0
  %553 = vmatpush2.msra.mxu0 0.0
  %554 = vmatprep.subr.mxu0 0.0
  %555 = vmatpush2.msra.mxu0 0.0
  %556 = vmatprep.subr.mxu0 0.0
  %557 = vmatpush2.msra.mxu0 0.0
  %558 = vmatprep.subr.mxu0 0.0
  %559 = vmatpush2.msra.mxu0 0.0
  %560 = vmatprep.subr.mxu0 0.0
  %561 = vmatpush2.msra.mxu0 0.0
  %562 = vmatprep.subr.mxu0 0.0
  %563 = vmatpush2.msra.mxu0 0.0
  %564 = vmatprep.subr.mxu0 0.0
  %565 = vmatpush2.msra.mxu0 0.0
  %566 = vmatprep.subr.mxu0 0.0
  %567 = vmatpush2.msra.mxu0 0.0
  %568 = vmatprep.subr.mxu0 0.0
  %569 = vmatpush2.msra.mxu0 0.0
  %570 = vmatprep.subr.mxu0 0.0
  %571 = vmatpush2.msra.mxu0 0.0
  %572 = vmatprep.mubr.f32.mxu0 0.0
  %573 = vmatmul.mubr.f32.gmra.mxu0 %v493
  %v574 = vpop.f32.mrf.mxu0
  %v575 = vadd.f32 0.0, %v574
  %v576 = vpop.f32.mrf.mxu0
  %577 = vmatprep.mubr.f32.mxu0 0.0
  %578 = vmatmul.mubr.f32.gmra.mxu0 %v495
  %v579 = vpop.f32.mrf.mxu0
  %v580 = vadd.f32 0.0, %v579
  %v581 = vpop.f32.mrf.mxu0
  %582 = vmatprep.mubr.f32.mxu0 0.0
  %583 = vmatmul.mubr.f32.gmra.mxu0 %v497
  %v584 = vpop.f32.mrf.mxu0
  %v585 = vadd.f32 0.0, %v584
  %v586 = vpop.f32.mrf.mxu0
  %587 = vmatprep.mubr.f32.mxu0 0.0
  %588 = vmatmul.mubr.f32.gmra.mxu0 %v499
  %v589 = vpop.f32.mrf.mxu0
  %v590 = vadd.f32 0.0, %v589
  %v591 = vpop.f32.mrf.mxu0
  %592 = vmatprep.mubr.f32.mxu0 0.0
  %593 = vmatmul.mubr.f32.gmra.mxu0 %v501
  %v594 = vpop.f32.mrf.mxu0
  %v595 = vadd.f32 0.0, %v594
  %v596 = vpop.f32.mrf.mxu0
  %597 = vmatprep.mubr.f32.mxu0 0.0
  %598 = vmatmul.mubr.f32.gmra.mxu0 %v503
  %v599 = vpop.f32.mrf.mxu0
  %v600 = vadd.f32 0.0, %v599
  %v601 = vpop.f32.mrf.mxu0
  %602 = vdwg.mxu0
  %v603 = vadd.f32 %v469, %v575
  %v604 = vadd.f32 %v470, %v580
  %v605 = vadd.f32 %v471, %v585
  %v606 = vadd.f32 %v472, %v590
  %v607 = vadd.f32 %v473, %v595
  %v608 = vadd.f32 %v474, %v600
  %s609 = scalar_lea.vmem %s4, 160
  %v610 = vld [vmem:[%s609] sm:$0xff]
  %v611 = vld [vmem:[%s609 + $0x8] sm:$0xff]
  %v612 = vld [vmem:[%s609 + $0x10] sm:$0xff]
  %v613 = vld [vmem:[%s609 + $0x18] sm:$0xff]
  %v614 = vld [vmem:[%s609 + $0x20] sm:$0x1]
  %vm616 = vcmask 1043456
  %v617 = vrot.slane %v72, 4
  %v618 = vrot.slane %v73, 4
  %v619 = vsel %vm616, %v617, %v618
  %v620 = vrot.slane %v74, 4
  %v621 = vsel %vm616, %v618, %v620
  %v622 = vrot.slane %v75, 4
  %v623 = vsel %vm616, %v620, %v622
  %v624 = vrot.slane %v76, 4
  %v625 = vsel %vm616, %v622, %v624
  %v626 = vrot.slane %v77, 4
  %v627 = vsel %vm616, %v624, %v626
  %v628 = vrot.slane %v78, 4
  %v629 = vsel %vm616, %v626, %v628
  %v630 = vsel %vm119, %v619, 0
  %v632 = vsel %vm119, %v621, 0
  %v634 = vsel %vm119, %v623, 0
  %v636 = vsel %vm119, %v625, 0
  %v638 = vsel %vm119, %v627, 0
  %v640 = vsel %vm119, %v629, 0
  %v643 = vsel %vm132, %v614, 0
  %645 = vmatprep.subr.mxu0 0.0
  %646 = vmatpush1.msra.mxu0 0.0
  %647 = vmatprep.subr.mxu0 0.0
  %648 = vmatpush1.msra.mxu0 0.0
  %649 = vmatprep.subr.mxu0 0.0
  %650 = vmatpush1.msra.mxu0 0.0
  %651 = vmatprep.subr.mxu0 0.0
  %652 = vmatpush1.msra.mxu0 0.0
  %653 = vmatprep.subr.mxu0 0.0
  %654 = vmatpush1.msra.mxu0 0.0
  %655 = vmatprep.subr.mxu0 0.0
  %656 = vmatpush1.msra.mxu0 0.0
  %657 = vmatprep.subr.mxu0 0.0
  %658 = vmatpush1.msra.mxu0 0.0
  %659 = vmatprep.subr.mxu0 0.0
  %660 = vmatpush1.msra.mxu0 0.0
  %661 = vmatprep.subr.mxu0 0.0
  %662 = vmatpush1.msra.mxu0 0.0
  %663 = vmatprep.subr.mxu0 0.0
  %664 = vmatpush1.msra.mxu0 0.0
  %665 = vmatprep.subr.mxu0 0.0
  %666 = vmatpush1.msra.mxu0 0.0
  %667 = vmatprep.subr.mxu0 0.0
  %668 = vmatpush1.msra.mxu0 %v643
  %669 = vmatprep.subr.mxu0 0.0
  %670 = vmatpush1.msra.mxu0 %v613
  %671 = vmatprep.subr.mxu0 0.0
  %672 = vmatpush1.msra.mxu0 %v612
  %673 = vmatprep.subr.mxu0 0.0
  %674 = vmatpush1.msra.mxu0 %v611
  %675 = vmatprep.subr.mxu0 0.0
  %676 = vmatpush1.msra.mxu0 %v610
  %677 = vmatprep.subr.mxu0 0.0
  %678 = vmatpush2.msra.mxu0 0.0
  %679 = vmatprep.subr.mxu0 0.0
  %680 = vmatpush2.msra.mxu0 0.0
  %681 = vmatprep.subr.mxu0 0.0
  %682 = vmatpush2.msra.mxu0 0.0
  %683 = vmatprep.subr.mxu0 0.0
  %684 = vmatpush2.msra.mxu0 0.0
  %685 = vmatprep.subr.mxu0 0.0
  %686 = vmatpush2.msra.mxu0 0.0
  %687 = vmatprep.subr.mxu0 0.0
  %688 = vmatpush2.msra.mxu0 0.0
  %689 = vmatprep.subr.mxu0 0.0
  %690 = vmatpush2.msra.mxu0 0.0
  %691 = vmatprep.subr.mxu0 0.0
  %692 = vmatpush2.msra.mxu0 0.0
  %693 = vmatprep.subr.mxu0 0.0
  %694 = vmatpush2.msra.mxu0 0.0
  %695 = vmatprep.subr.mxu0 0.0
  %696 = vmatpush2.msra.mxu0 0.0
  %697 = vmatprep.subr.mxu0 0.0
  %698 = vmatpush2.msra.mxu0 0.0
  %699 = vmatprep.subr.mxu0 0.0
  %700 = vmatpush2.msra.mxu0 0.0
  %701 = vmatprep.subr.mxu0 0.0
  %702 = vmatpush2.msra.mxu0 0.0
  %703 = vmatprep.subr.mxu0 0.0
  %704 = vmatpush2.msra.mxu0 0.0
  %705 = vmatprep.subr.mxu0 0.0
  %706 = vmatpush2.msra.mxu0 0.0
  %707 = vmatprep.subr.mxu0 0.0
  %708 = vmatpush2.msra.mxu0 0.0
  %709 = vmatprep.mubr.f32.mxu0 0.0
  %710 = vmatmul.mubr.f32.gmra.mxu0 %v630
  %v711 = vpop.f32.mrf.mxu0
  %v712 = vadd.f32 0.0, %v711
  %v713 = vpop.f32.mrf.mxu0
  %714 = vmatprep.mubr.f32.mxu0 0.0
  %715 = vmatmul.mubr.f32.gmra.mxu0 %v632
  %v716 = vpop.f32.mrf.mxu0
  %v717 = vadd.f32 0.0, %v716
  %v718 = vpop.f32.mrf.mxu0
  %719 = vmatprep.mubr.f32.mxu0 0.0
  %720 = vmatmul.mubr.f32.gmra.mxu0 %v634
  %v721 = vpop.f32.mrf.mxu0
  %v722 = vadd.f32 0.0, %v721
  %v723 = vpop.f32.mrf.mxu0
  %724 = vmatprep.mubr.f32.mxu0 0.0
  %725 = vmatmul.mubr.f32.gmra.mxu0 %v636
  %v726 = vpop.f32.mrf.mxu0
  %v727 = vadd.f32 0.0, %v726
  %v728 = vpop.f32.mrf.mxu0
  %729 = vmatprep.mubr.f32.mxu0 0.0
  %730 = vmatmul.mubr.f32.gmra.mxu0 %v638
  %v731 = vpop.f32.mrf.mxu0
  %v732 = vadd.f32 0.0, %v731
  %v733 = vpop.f32.mrf.mxu0
  %734 = vmatprep.mubr.f32.mxu0 0.0
  %735 = vmatmul.mubr.f32.gmra.mxu0 %v640
  %v736 = vpop.f32.mrf.mxu0
  %v737 = vadd.f32 0.0, %v736
  %v738 = vpop.f32.mrf.mxu0
  %739 = vdwg.mxu0
  %v740 = vadd.f32 %v603, %v712
  %v741 = vadd.f32 %v604, %v717
  %v742 = vadd.f32 %v605, %v722
  %v743 = vadd.f32 %v606, %v727
  %v744 = vadd.f32 %v607, %v732
  %v745 = vadd.f32 %v608, %v737
  %s746 = scalar_lea.vmem %s4, 200
  %v747 = vld [vmem:[%s746] sm:$0xff]
  %v748 = vld [vmem:[%s746 + $0x8] sm:$0xff]
  %v749 = vld [vmem:[%s746 + $0x10] sm:$0xff]
  %v750 = vld [vmem:[%s746 + $0x18] sm:$0xff]
  %v751 = vld [vmem:[%s746 + $0x20] sm:$0x1]
  %vm752 = vcmask 1042432
  %v753 = vrot.slane %v72, 5
  %v754 = vrot.slane %v73, 5
  %v755 = vsel %vm752, %v753, %v754
  %v756 = vrot.slane %v74, 5
  %v757 = vsel %vm752, %v754, %v756
  %v758 = vrot.slane %v75, 5
  %v759 = vsel %vm752, %v756, %v758
  %v760 = vrot.slane %v76, 5
  %v761 = vsel %vm752, %v758, %v760
  %v762 = vrot.slane %v77, 5
  %v763 = vsel %vm752, %v760, %v762
  %v764 = vrot.slane %v78, 5
  %v765 = vsel %vm752, %v762, %v764
  %v766 = vsel %vm119, %v755, 0
  %v768 = vsel %vm119, %v757, 0
  %v770 = vsel %vm119, %v759, 0
  %v772 = vsel %vm119, %v761, 0
  %v774 = vsel %vm119, %v763, 0
  %v776 = vsel %vm119, %v765, 0
  %v779 = vsel %vm132, %v751, 0
  %781 = vmatprep.subr.mxu0 0.0
  %782 = vmatpush1.msra.mxu0 0.0
  %783 = vmatprep.subr.mxu0 0.0
  %784 = vmatpush1.msra.mxu0 0.0
  %785 = vmatprep.subr.mxu0 0.0
  %786 = vmatpush1.msra.mxu0 0.0
  %787 = vmatprep.subr.mxu0 0.0
  %788 = vmatpush1.msra.mxu0 0.0
  %789 = vmatprep.subr.mxu0 0.0
  %790 = vmatpush1.msra.mxu0 0.0
  %791 = vmatprep.subr.mxu0 0.0
  %792 = vmatpush1.msra.mxu0 0.0
  %793 = vmatprep.subr.mxu0 0.0
  %794 = vmatpush1.msra.mxu0 0.0
  %795 = vmatprep.subr.mxu0 0.0
  %796 = vmatpush1.msra.mxu0 0.0
  %797 = vmatprep.subr.mxu0 0.0
  %798 = vmatpush1.msra.mxu0 0.0
  %799 = vmatprep.subr.mxu0 0.0
  %800 = vmatpush1.msra.mxu0 0.0
  %801 = vmatprep.subr.mxu0 0.0
  %802 = vmatpush1.msra.mxu0 0.0
  %803 = vmatprep.subr.mxu0 0.0
  %804 = vmatpush1.msra.mxu0 %v779
  %805 = vmatprep.subr.mxu0 0.0
  %806 = vmatpush1.msra.mxu0 %v750
  %807 = vmatprep.subr.mxu0 0.0
  %808 = vmatpush1.msra.mxu0 %v749
  %809 = vmatprep.subr.mxu0 0.0
  %810 = vmatpush1.msra.mxu0 %v748
  %811 = vmatprep.subr.mxu0 0.0
  %812 = vmatpush1.msra.mxu0 %v747
  %813 = vmatprep.subr.mxu0 0.0
  %814 = vmatpush2.msra.mxu0 0.0
  %815 = vmatprep.subr.mxu0 0.0
  %816 = vmatpush2.msra.mxu0 0.0
  %817 = vmatprep.subr.mxu0 0.0
  %818 = vmatpush2.msra.mxu0 0.0
  %819 = vmatprep.subr.mxu0 0.0
  %820 = vmatpush2.msra.mxu0 0.0
  %821 = vmatprep.subr.mxu0 0.0
  %822 = vmatpush2.msra.mxu0 0.0
  %823 = vmatprep.subr.mxu0 0.0
  %824 = vmatpush2.msra.mxu0 0.0
  %825 = vmatprep.subr.mxu0 0.0
  %826 = vmatpush2.msra.mxu0 0.0
  %827 = vmatprep.subr.mxu0 0.0
  %828 = vmatpush2.msra.mxu0 0.0
  %829 = vmatprep.subr.mxu0 0.0
  %830 = vmatpush2.msra.mxu0 0.0
  %831 = vmatprep.subr.mxu0 0.0
  %832 = vmatpush2.msra.mxu0 0.0
  %833 = vmatprep.subr.mxu0 0.0
  %834 = vmatpush2.msra.mxu0 0.0
  %835 = vmatprep.subr.mxu0 0.0
  %836 = vmatpush2.msra.mxu0 0.0
  %837 = vmatprep.subr.mxu0 0.0
  %838 = vmatpush2.msra.mxu0 0.0
  %839 = vmatprep.subr.mxu0 0.0
  %840 = vmatpush2.msra.mxu0 0.0
  %841 = vmatprep.subr.mxu0 0.0
  %842 = vmatpush2.msra.mxu0 0.0
  %843 = vmatprep.subr.mxu0 0.0
  %844 = vmatpush2.msra.mxu0 0.0
  %845 = vmatprep.mubr.f32.mxu0 0.0
  %846 = vmatmul.mubr.f32.gmra.mxu0 %v766
  %v847 = vpop.f32.mrf.mxu0
  %v848 = vadd.f32 0.0, %v847
  %v849 = vpop.f32.mrf.mxu0
  %850 = vmatprep.mubr.f32.mxu0 0.0
  %851 = vmatmul.mubr.f32.gmra.mxu0 %v768
  %v852 = vpop.f32.mrf.mxu0
  %v853 = vadd.f32 0.0, %v852
  %v854 = vpop.f32.mrf.mxu0
  %855 = vmatprep.mubr.f32.mxu0 0.0
  %856 = vmatmul.mubr.f32.gmra.mxu0 %v770
  %v857 = vpop.f32.mrf.mxu0
  %v858 = vadd.f32 0.0, %v857
  %v859 = vpop.f32.mrf.mxu0
  %860 = vmatprep.mubr.f32.mxu0 0.0
  %861 = vmatmul.mubr.f32.gmra.mxu0 %v772
  %v862 = vpop.f32.mrf.mxu0
  %v863 = vadd.f32 0.0, %v862
  %v864 = vpop.f32.mrf.mxu0
  %865 = vmatprep.mubr.f32.mxu0 0.0
  %866 = vmatmul.mubr.f32.gmra.mxu0 %v774
  %v867 = vpop.f32.mrf.mxu0
  %v868 = vadd.f32 0.0, %v867
  %v869 = vpop.f32.mrf.mxu0
  %870 = vmatprep.mubr.f32.mxu0 0.0
  %871 = vmatmul.mubr.f32.gmra.mxu0 %v776
  %v872 = vpop.f32.mrf.mxu0
  %v873 = vadd.f32 0.0, %v872
  %v874 = vpop.f32.mrf.mxu0
  %875 = vdwg.mxu0
  %v876 = vadd.f32 %v740, %v848
  %v877 = vadd.f32 %v741, %v853
  %v878 = vadd.f32 %v742, %v858
  %v879 = vadd.f32 %v743, %v863
  %v880 = vadd.f32 %v744, %v868
  %v881 = vadd.f32 %v745, %v873
  %v882 = vmax.f32 %v876, 0.0
  %v883 = vmax.f32 %v877, 0.0
  %v884 = vmax.f32 %v878, 0.0
  %v885 = vmax.f32 %v879, 0.0
  %v886 = vmax.f32 %v880, 0.0
  %v887 = vmax.f32 %v881, 0.0
  %v888 = vld [vmem:[%s5] sm:$0xff]
  %v889 = vld [vmem:[%s5 + $0x8] sm:$0xff]
  %v890 = vld [vmem:[%s5 + $0x10] sm:$0xff]
  %v891 = vld [vmem:[%s5 + $0x18] sm:$0xff]
  %v892 = vld [vmem:[%s5 + $0x20] sm:$0xff]
  %v893 = vld [vmem:[%s5 + $0x28] sm:$0xff]
  %v894 = vld [vmem:[%s5 + $0x30] sm:$0xff]
  %v895 = vld [vmem:[%s5 + $0x38] sm:$0xff]
  %s896 = scalar_lea.vmem %s5, 64
  %v897 = vld [vmem:[%s896] sm:$0xff]
  %v898 = vld [vmem:[%s896 + $0x8] sm:$0xff]
  %v899 = vld [vmem:[%s896 + $0x10] sm:$0xff]
  %v900 = vld [vmem:[%s896 + $0x18] sm:$0xff]
  %v901 = vld [vmem:[%s896 + $0x20] sm:$0xff]
  %v902 = vld [vmem:[%s896 + $0x28] sm:$0xff]
  %v903 = vld [vmem:[%s896 + $0x30] sm:$0xff]
  %v904 = vld [vmem:[%s896 + $0x38] sm:$0xff]
  %v911 = vrot.slane %v882, 1
  %v912 = vrot.slane %v883, 1
  %v913 = vsel %vm107, %v911, %v912
  %v914 = vrot.slane %v884, 1
  %v915 = vsel %vm107, %v912, %v914
  %v916 = vrot.slane %v885, 1
  %v917 = vsel %vm107, %v914, %v916
  %v918 = vrot.slane %v886, 1
  %v919 = vsel %vm107, %v916, %v918
  %v920 = vrot.slane %v887, 1
  %v921 = vsel %vm107, %v918, %v920
  %vm922 = vcmask 523264
  %v923 = vsel %vm922, %v913, 0
  %v925 = vsel %vm922, %v915, 0
  %v927 = vsel %vm922, %v917, 0
  %v929 = vsel %vm922, %v919, 0
  %v931 = vsel %vm922, %v921, 0
  %v933 = vsel %vm922, %v920, 0
  %935 = vmatprep.subr.mxu0 0.0
  %936 = vmatpush1.msra.mxu0 0.0
  %937 = vmatprep.subr.mxu0 0.0
  %938 = vmatpush1.msra.mxu0 0.0
  %939 = vmatprep.subr.mxu0 0.0
  %940 = vmatpush1.msra.mxu0 0.0
  %941 = vmatprep.subr.mxu0 0.0
  %942 = vmatpush1.msra.mxu0 0.0
  %943 = vmatprep.subr.mxu0 0.0
  %944 = vmatpush1.msra.mxu0 0.0
  %945 = vmatprep.subr.mxu0 0.0
  %946 = vmatpush1.msra.mxu0 0.0
  %947 = vmatprep.subr.mxu0 0.0
  %948 = vmatpush1.msra.mxu0 0.0
  %949 = vmatprep.subr.mxu0 0.0
  %950 = vmatpush1.msra.mxu0 0.0
  %951 = vmatprep.subr.mxu0 0.0
  %952 = vmatpush1.msra.mxu0 %v904
  %953 = vmatprep.subr.mxu0 0.0
  %954 = vmatpush1.msra.mxu0 %v903
  %955 = vmatprep.subr.mxu0 0.0
  %956 = vmatpush1.msra.mxu0 %v902
  %957 = vmatprep.subr.mxu0 0.0
  %958 = vmatpush1.msra.mxu0 %v901
  %959 = vmatprep.subr.mxu0 0.0
  %960 = vmatpush1.msra.mxu0 %v900
  %961 = vmatprep.subr.mxu0 0.0
  %962 = vmatpush1.msra.mxu0 %v899
  %963 = vmatprep.subr.mxu0 0.0
  %964 = vmatpush1.msra.mxu0 %v898
  %965 = vmatprep.subr.mxu0 0.0
  %966 = vmatpush1.msra.mxu0 %v897
  %967 = vmatprep.subr.mxu0 0.0
  %968 = vmatpush2.msra.mxu0 0.0
  %969 = vmatprep.subr.mxu0 0.0
  %970 = vmatpush2.msra.mxu0 0.0
  %971 = vmatprep.subr.mxu0 0.0
  %972 = vmatpush2.msra.mxu0 0.0
  %973 = vmatprep.subr.mxu0 0.0
  %974 = vmatpush2.msra.mxu0 0.0
  %975 = vmatprep.subr.mxu0 0.0
  %976 = vmatpush2.msra.mxu0 0.0
  %977 = vmatprep.subr.mxu0 0.0
  %978 = vmatpush2.msra.mxu0 0.0
  %979 = vmatprep.subr.mxu0 0.0
  %980 = vmatpush2.msra.mxu0 0.0
  %981 = vmatprep.subr.mxu0 0.0
  %982 = vmatpush2.msra.mxu0 0.0
  %983 = vmatprep.subr.mxu0 0.0
  %984 = vmatpush2.msra.mxu0 0.0
  %985 = vmatprep.subr.mxu0 0.0
  %986 = vmatpush2.msra.mxu0 0.0
  %987 = vmatprep.subr.mxu0 0.0
  %988 = vmatpush2.msra.mxu0 0.0
  %989 = vmatprep.subr.mxu0 0.0
  %990 = vmatpush2.msra.mxu0 0.0
  %991 = vmatprep.subr.mxu0 0.0
  %992 = vmatpush2.msra.mxu0 0.0
  %993 = vmatprep.subr.mxu0 0.0
  %994 = vmatpush2.msra.mxu0 0.0
  %995 = vmatprep.subr.mxu0 0.0
  %996 = vmatpush2.msra.mxu0 0.0
  %997 = vmatprep.subr.mxu0 0.0
  %998 = vmatpush2.msra.mxu0 0.0
  %999 = vmatprep.mubr.f32.mxu0 0.0
  %1000 = vmatmul.mubr.f32.gmra.mxu0 %v923
  %v1001 = vpop.f32.mrf.mxu0
  %v1002 = vadd.f32 0.0, %v1001
  %v1003 = vpop.f32.mrf.mxu0
  %1004 = vmatprep.mubr.f32.mxu0 0.0
  %1005 = vmatmul.mubr.f32.gmra.mxu0 %v925
  %v1006 = vpop.f32.mrf.mxu0
  %v1007 = vadd.f32 0.0, %v1006
  %v1008 = vpop.f32.mrf.mxu0
  %1009 = vmatprep.mubr.f32.mxu0 0.0
  %1010 = vmatmul.mubr.f32.gmra.mxu0 %v927
  %v1011 = vpop.f32.mrf.mxu0
  %v1012 = vpop.f32.mrf.mxu0
  %1013 = vmatprep.mubr.f32.mxu0 0.0
  %1014 = vmatmul.mubr.f32.gmra.mxu0 %v929
  %v1015 = vpop.f32.mrf.mxu0
  %v1016 = vadd.f32 0.0, %v1015
  %v1017 = vpop.f32.mrf.mxu0
  %1018 = vmatprep.mubr.f32.mxu0 0.0
  %1019 = vmatmul.mubr.f32.gmra.mxu0 %v931
  %v1020 = vpop.f32.mrf.mxu0
  %v1021 = vadd.f32 0.0, %v1020
  %v1022 = vpop.f32.mrf.mxu0
  %1023 = vmatprep.mubr.f32.mxu0 0.0
  %1024 = vmatmul.mubr.f32.gmra.mxu0 %v933
  %v1025 = vpop.f32.mrf.mxu0
  %v1026 = vadd.f32 0.0, %v1025
  %v1027 = vpop.f32.mrf.mxu0
  %1028 = vdwg.mxu0
  %v1029 = vsel %vm922, %v882, 0
  %v1031 = vsel %vm922, %v883, 0
  %v1033 = vsel %vm922, %v884, 0
  %v1035 = vsel %vm922, %v885, 0
  %v1037 = vsel %vm922, %v886, 0
  %v1039 = vsel %vm922, %v887, 0
  %1041 = vmatprep.subr.mxu0 0.0
  %1042 = vmatpush1.msra.mxu0 0.0
  %1043 = vmatprep.subr.mxu0 0.0
  %1044 = vmatpush1.msra.mxu0 0.0
  %1045 = vmatprep.subr.mxu0 0.0
  %1046 = vmatpush1.msra.mxu0 0.0
  %1047 = vmatprep.subr.mxu0 0.0
  %1048 = vmatpush1.msra.mxu0 0.0
  %1049 = vmatprep.subr.mxu0 0.0
  %1050 = vmatpush1.msra.mxu0 0.0
  %1051 = vmatprep.subr.mxu0 0.0
  %1052 = vmatpush1.msra.mxu0 0.0
  %1053 = vmatprep.subr.mxu0 0.0
  %1054 = vmatpush1.msra.mxu0 0.0
  %1055 = vmatprep.subr.mxu0 0.0
  %1056 = vmatpush1.msra.mxu0 0.0
  %1057 = vmatprep.subr.mxu0 0.0
  %1058 = vmatpush1.msra.mxu0 %v895
  %1059 = vmatprep.subr.mxu0 0.0
  %1060 = vmatpush1.msra.mxu0 %v894
  %1061 = vmatprep.subr.mxu0 0.0
  %1062 = vmatpush1.msra.mxu0 %v893
  %1063 = vmatprep.subr.mxu0 0.0
  %1064 = vmatpush1.msra.mxu0 %v892
  %1065 = vmatprep.subr.mxu0 0.0
  %1066 = vmatpush1.msra.mxu0 %v891
  %1067 = vmatprep.subr.mxu0 0.0
  %1068 = vmatpush1.msra.mxu0 %v890
  %1069 = vmatprep.subr.mxu0 0.0
  %1070 = vmatpush1.msra.mxu0 %v889
  %1071 = vmatprep.subr.mxu0 0.0
  %1072 = vmatpush1.msra.mxu0 %v888
  %1073 = vmatprep.subr.mxu0 0.0
  %1074 = vmatpush2.msra.mxu0 0.0
  %1075 = vmatprep.subr.mxu0 0.0
  %1076 = vmatpush2.msra.mxu0 0.0
  %1077 = vmatprep.subr.mxu0 0.0
  %1078 = vmatpush2.msra.mxu0 0.0
  %1079 = vmatprep.subr.mxu0 0.0
  %1080 = vmatpush2.msra.mxu0 0.0
  %1081 = vmatprep.subr.mxu0 0.0
  %1082 = vmatpush2.msra.mxu0 0.0
  %1083 = vmatprep.subr.mxu0 0.0
  %1084 = vmatpush2.msra.mxu0 0.0
  %1085 = vmatprep.subr.mxu0 0.0
  %1086 = vmatpush2.msra.mxu0 0.0
  %1087 = vmatprep.subr.mxu0 0.0
  %1088 = vmatpush2.msra.mxu0 0.0
  %1089 = vmatprep.subr.mxu0 0.0
  %1090 = vmatpush2.msra.mxu0 0.0
  %1091 = vmatprep.subr.mxu0 0.0
  %1092 = vmatpush2.msra.mxu0 0.0
  %1093 = vmatprep.subr.mxu0 0.0
  %1094 = vmatpush2.msra.mxu0 0.0
  %1095 = vmatprep.subr.mxu0 0.0
  %1096 = vmatpush2.msra.mxu0 0.0
  %1097 = vmatprep.subr.mxu0 0.0
  %1098 = vmatpush2.msra.mxu0 0.0
  %1099 = vmatprep.subr.mxu0 0.0
  %1100 = vmatpush2.msra.mxu0 0.0
  %1101 = vmatprep.subr.mxu0 0.0
  %1102 = vmatpush2.msra.mxu0 0.0
  %1103 = vmatprep.subr.mxu0 0.0
  %1104 = vmatpush2.msra.mxu0 0.0
  %1105 = vmatprep.mubr.f32.mxu0 0.0
  %1106 = vmatmul.mubr.f32.gmra.mxu0 %v1029
  %v1107 = vpop.f32.mrf.mxu0
  %v1108 = vadd.f32 %v1002, %v1107
  %v1109 = vpop.f32.mrf.mxu0
  %1110 = vmatprep.mubr.f32.mxu0 0.0
  %1111 = vmatmul.mubr.f32.gmra.mxu0 %v1031
  %v1112 = vpop.f32.mrf.mxu0
  %v1113 = vadd.f32 %v1007, %v1112
  %v1114 = vpop.f32.mrf.mxu0
  %1115 = vmatprep.mubr.f32.mxu0 0.0
  %1116 = vmatmul.mubr.f32.gmra.mxu0 %v1033
  %v1117 = vpop.f32.mrf.mxu0
  %v1118 = vpop.f32.mrf.mxu0
  %1119 = vmatprep.mubr.f32.mxu0 0.0
  %1120 = vmatmul.mubr.f32.gmra.mxu0 %v1035
  %v1121 = vpop.f32.mrf.mxu0
  %v1122 = vadd.f32 %v1016, %v1121
  %v1123 = vpop.f32.mrf.mxu0
  %1124 = vmatprep.mubr.f32.mxu0 0.0
  %1125 = vmatmul.mubr.f32.gmra.mxu0 %v1037
  %v1126 = vpop.f32.mrf.mxu0
  %v1127 = vadd.f32 %v1021, %v1126
  %v1128 = vpop.f32.mrf.mxu0
  %1129 = vmatprep.mubr.f32.mxu0 0.0
  %1130 = vmatmul.mubr.f32.gmra.mxu0 %v1039
  %v1131 = vpop.f32.mrf.mxu0
  %v1132 = vadd.f32 %v1026, %v1131
  %v1133 = vpop.f32.mrf.mxu0
  %1134 = vdwg.mxu0
  %s1135 = scalar_lea.vmem %s5, 128
  %v1136 = vld [vmem:[%s1135] sm:$0xff]
  %v1137 = vld [vmem:[%s1135 + $0x8] sm:$0xff]
  %v1138 = vld [vmem:[%s1135 + $0x10] sm:$0xff]
  %v1139 = vld [vmem:[%s1135 + $0x18] sm:$0xff]
  %v1140 = vld [vmem:[%s1135 + $0x20] sm:$0xff]
  %v1141 = vld [vmem:[%s1135 + $0x28] sm:$0xff]
  %v1142 = vld [vmem:[%s1135 + $0x30] sm:$0xff]
  %v1143 = vld [vmem:[%s1135 + $0x38] sm:$0xff]
  %v1144 = vrot.slane %v882, 2
  %v1145 = vrot.slane %v883, 2
  %v1146 = vsel %vm347, %v1144, %v1145
  %v1147 = vrot.slane %v884, 2
  %v1148 = vsel %vm347, %v1145, %v1147
  %v1149 = vrot.slane %v885, 2
  %v1150 = vsel %vm347, %v1147, %v1149
  %v1151 = vrot.slane %v886, 2
  %v1152 = vsel %vm347, %v1149, %v1151
  %v1153 = vrot.slane %v887, 2
  %v1154 = vsel %vm347, %v1151, %v1153
  %v1155 = vsel %vm922, %v1146, 0
  %v1157 = vsel %vm922, %v1148, 0
  %v1159 = vsel %vm922, %v1150, 0
  %v1161 = vsel %vm922, %v1152, 0
  %v1163 = vsel %vm922, %v1154, 0
  %v1165 = vsel %vm922, %v1153, 0
  %1167 = vmatprep.subr.mxu0 0.0
  %1168 = vmatpush1.msra.mxu0 0.0
  %1169 = vmatprep.subr.mxu0 0.0
  %1170 = vmatpush1.msra.mxu0 0.0
  %1171 = vmatprep.subr.mxu0 0.0
  %1172 = vmatpush1.msra.mxu0 0.0
  %1173 = vmatprep.subr.mxu0 0.0
  %1174 = vmatpush1.msra.mxu0 0.0
  %1175 = vmatprep.subr.mxu0 0.0
  %1176 = vmatpush1.msra.mxu0 0.0
  %1177 = vmatprep.subr.mxu0 0.0
  %1178 = vmatpush1.msra.mxu0 0.0
  %1179 = vmatprep.subr.mxu0 0.0
  %1180 = vmatpush1.msra.mxu0 0.0
  %1181 = vmatprep.subr.mxu0 0.0
  %1182 = vmatpush1.msra.mxu0 0.0
  %1183 = vmatprep.subr.mxu0 0.0
  %1184 = vmatpush1.msra.mxu0 %v1143
  %1185 = vmatprep.subr.mxu0 0.0
  %1186 = vmatpush1.msra.mxu0 %v1142
  %1187 = vmatprep.subr.mxu0 0.0
  %1188 = vmatpush1.msra.mxu0 %v1141
  %1189 = vmatprep.subr.mxu0 0.0
  %1190 = vmatpush1.msra.mxu0 %v1140
  %1191 = vmatprep.subr.mxu0 0.0
  %1192 = vmatpush1.msra.mxu0 %v1139
  %1193 = vmatprep.subr.mxu0 0.0
  %1194 = vmatpush1.msra.mxu0 %v1138
  %1195 = vmatprep.subr.mxu0 0.0
  %1196 = vmatpush1.msra.mxu0 %v1137
  %1197 = vmatprep.subr.mxu0 0.0
  %1198 = vmatpush1.msra.mxu0 %v1136
  %1199 = vmatprep.subr.mxu0 0.0
  %1200 = vmatpush2.msra.mxu0 0.0
  %1201 = vmatprep.subr.mxu0 0.0
  %1202 = vmatpush2.msra.mxu0 0.0
  %1203 = vmatprep.subr.mxu0 0.0
  %1204 = vmatpush2.msra.mxu0 0.0
  %1205 = vmatprep.subr.mxu0 0.0
  %1206 = vmatpush2.msra.mxu0 0.0
  %1207 = vmatprep.subr.mxu0 0.0
  %1208 = vmatpush2.msra.mxu0 0.0
  %1209 = vmatprep.subr.mxu0 0.0
  %1210 = vmatpush2.msra.mxu0 0.0
  %1211 = vmatprep.subr.mxu0 0.0
  %1212 = vmatpush2.msra.mxu0 0.0
  %1213 = vmatprep.subr.mxu0 0.0
  %1214 = vmatpush2.msra.mxu0 0.0
  %1215 = vmatprep.subr.mxu0 0.0
  %1216 = vmatpush2.msra.mxu0 0.0
  %1217 = vmatprep.subr.mxu0 0.0
  %1218 = vmatpush2.msra.mxu0 0.0
  %1219 = vmatprep.subr.mxu0 0.0
  %1220 = vmatpush2.msra.mxu0 0.0
  %1221 = vmatprep.subr.mxu0 0.0
  %1222 = vmatpush2.msra.mxu0 0.0
  %1223 = vmatprep.subr.mxu0 0.0
  %1224 = vmatpush2.msra.mxu0 0.0
  %1225 = vmatprep.subr.mxu0 0.0
  %1226 = vmatpush2.msra.mxu0 0.0
  %1227 = vmatprep.subr.mxu0 0.0
  %1228 = vmatpush2.msra.mxu0 0.0
  %1229 = vmatprep.subr.mxu0 0.0
  %1230 = vmatpush2.msra.mxu0 0.0
  %1231 = vmatprep.mubr.f32.mxu0 0.0
  %1232 = vmatmul.mubr.f32.gmra.mxu0 %v1155
  %v1233 = vpop.f32.mrf.mxu0
  %v1234 = vadd.f32 0.0, %v1233
  %v1235 = vpop.f32.mrf.mxu0
  %1236 = vmatprep.mubr.f32.mxu0 0.0
  %1237 = vmatmul.mubr.f32.gmra.mxu0 %v1157
  %v1238 = vpop.f32.mrf.mxu0
  %v1239 = vadd.f32 0.0, %v1238
  %v1240 = vpop.f32.mrf.mxu0
  %1241 = vmatprep.mubr.f32.mxu0 0.0
  %1242 = vmatmul.mubr.f32.gmra.mxu0 %v1159
  %v1243 = vpop.f32.mrf.mxu0
  %v1244 = vpop.f32.mrf.mxu0
  %1245 = vmatprep.mubr.f32.mxu0 0.0
  %1246 = vmatmul.mubr.f32.gmra.mxu0 %v1161
  %v1247 = vpop.f32.mrf.mxu0
  %v1248 = vadd.f32 0.0, %v1247
  %v1249 = vpop.f32.mrf.mxu0
  %1250 = vmatprep.mubr.f32.mxu0 0.0
  %1251 = vmatmul.mubr.f32.gmra.mxu0 %v1163
  %v1252 = vpop.f32.mrf.mxu0
  %v1253 = vadd.f32 0.0, %v1252
  %v1254 = vpop.f32.mrf.mxu0
  %1255 = vmatprep.mubr.f32.mxu0 0.0
  %1256 = vmatmul.mubr.f32.gmra.mxu0 %v1165
  %v1257 = vpop.f32.mrf.mxu0
  %v1258 = vadd.f32 0.0, %v1257
  %v1259 = vpop.f32.mrf.mxu0
  %1260 = vdwg.mxu0
  %v1261 = vadd.f32 %v1108, %v1234
  %v1262 = vadd.f32 %v1113, %v1239
  %v1263 = vadd.f32 %v1122, %v1248
  %v1264 = vadd.f32 %v1127, %v1253
  %v1265 = vadd.f32 %v1132, %v1258
  %s1266 = scalar_lea.vmem %s5, 192
  %v1267 = vld [vmem:[%s1266] sm:$0xff]
  %v1268 = vld [vmem:[%s1266 + $0x8] sm:$0xff]
  %v1269 = vld [vmem:[%s1266 + $0x10] sm:$0xff]
  %v1270 = vld [vmem:[%s1266 + $0x18] sm:$0xff]
  %v1271 = vld [vmem:[%s1266 + $0x20] sm:$0xff]
  %v1272 = vld [vmem:[%s1266 + $0x28] sm:$0xff]
  %v1273 = vld [vmem:[%s1266 + $0x30] sm:$0xff]
  %v1274 = vld [vmem:[%s1266 + $0x38] sm:$0xff]
  %v1275 = vrot.slane %v882, 3
  %v1276 = vrot.slane %v883, 3
  %v1277 = vsel %vm481, %v1275, %v1276
  %v1278 = vrot.slane %v884, 3
  %v1279 = vsel %vm481, %v1276, %v1278
  %v1280 = vrot.slane %v885, 3
  %v1281 = vsel %vm481, %v1278, %v1280
  %v1282 = vrot.slane %v886, 3
  %v1283 = vsel %vm481, %v1280, %v1282
  %v1284 = vrot.slane %v887, 3
  %v1285 = vsel %vm481, %v1282, %v1284
  %v1286 = vsel %vm922, %v1277, 0
  %v1288 = vsel %vm922, %v1279, 0
  %v1290 = vsel %vm922, %v1281, 0
  %v1292 = vsel %vm922, %v1283, 0
  %v1294 = vsel %vm922, %v1285, 0
  %v1296 = vsel %vm922, %v1284, 0
  %1298 = vmatprep.subr.mxu0 0.0
  %1299 = vmatpush1.msra.mxu0 0.0
  %1300 = vmatprep.subr.mxu0 0.0
  %1301 = vmatpush1.msra.mxu0 0.0
  %1302 = vmatprep.subr.mxu0 0.0
  %1303 = vmatpush1.msra.mxu0 0.0
  %1304 = vmatprep.subr.mxu0 0.0
  %1305 = vmatpush1.msra.mxu0 0.0
  %1306 = vmatprep.subr.mxu0 0.0
  %1307 = vmatpush1.msra.mxu0 0.0
  %1308 = vmatprep.subr.mxu0 0.0
  %1309 = vmatpush1.msra.mxu0 0.0
  %1310 = vmatprep.subr.mxu0 0.0
  %1311 = vmatpush1.msra.mxu0 0.0
  %1312 = vmatprep.subr.mxu0 0.0
  %1313 = vmatpush1.msra.mxu0 0.0
  %1314 = vmatprep.subr.mxu0 0.0
  %1315 = vmatpush1.msra.mxu0 %v1274
  %1316 = vmatprep.subr.mxu0 0.0
  %1317 = vmatpush1.msra.mxu0 %v1273
  %1318 = vmatprep.subr.mxu0 0.0
  %1319 = vmatpush1.msra.mxu0 %v1272
  %1320 = vmatprep.subr.mxu0 0.0
  %1321 = vmatpush1.msra.mxu0 %v1271
  %1322 = vmatprep.subr.mxu0 0.0
  %1323 = vmatpush1.msra.mxu0 %v1270
  %1324 = vmatprep.subr.mxu0 0.0
  %1325 = vmatpush1.msra.mxu0 %v1269
  %1326 = vmatprep.subr.mxu0 0.0
  %1327 = vmatpush1.msra.mxu0 %v1268
  %1328 = vmatprep.subr.mxu0 0.0
  %1329 = vmatpush1.msra.mxu0 %v1267
  %1330 = vmatprep.subr.mxu0 0.0
  %1331 = vmatpush2.msra.mxu0 0.0
  %1332 = vmatprep.subr.mxu0 0.0
  %1333 = vmatpush2.msra.mxu0 0.0
  %1334 = vmatprep.subr.mxu0 0.0
  %1335 = vmatpush2.msra.mxu0 0.0
  %1336 = vmatprep.subr.mxu0 0.0
  %1337 = vmatpush2.msra.mxu0 0.0
  %1338 = vmatprep.subr.mxu0 0.0
  %1339 = vmatpush2.msra.mxu0 0.0
  %1340 = vmatprep.subr.mxu0 0.0
  %1341 = vmatpush2.msra.mxu0 0.0
  %1342 = vmatprep.subr.mxu0 0.0
  %1343 = vmatpush2.msra.mxu0 0.0
  %1344 = vmatprep.subr.mxu0 0.0
  %1345 = vmatpush2.msra.mxu0 0.0
  %1346 = vmatprep.subr.mxu0 0.0
  %1347 = vmatpush2.msra.mxu0 0.0
  %1348 = vmatprep.subr.mxu0 0.0
  %1349 = vmatpush2.msra.mxu0 0.0
  %1350 = vmatprep.subr.mxu0 0.0
  %1351 = vmatpush2.msra.mxu0 0.0
  %1352 = vmatprep.subr.mxu0 0.0
  %1353 = vmatpush2.msra.mxu0 0.0
  %1354 = vmatprep.subr.mxu0 0.0
  %1355 = vmatpush2.msra.mxu0 0.0
  %1356 = vmatprep.subr.mxu0 0.0
  %1357 = vmatpush2.msra.mxu0 0.0
  %1358 = vmatprep.subr.mxu0 0.0
  %1359 = vmatpush2.msra.mxu0 0.0
  %1360 = vmatprep.subr.mxu0 0.0
  %1361 = vmatpush2.msra.mxu0 0.0
  %1362 = vmatprep.mubr.f32.mxu0 0.0
  %1363 = vmatmul.mubr.f32.gmra.mxu0 %v1286
  %v1364 = vpop.f32.mrf.mxu0
  %v1365 = vadd.f32 0.0, %v1364
  %v1366 = vpop.f32.mrf.mxu0
  %1367 = vmatprep.mubr.f32.mxu0 0.0
  %1368 = vmatmul.mubr.f32.gmra.mxu0 %v1288
  %v1369 = vpop.f32.mrf.mxu0
  %v1370 = vadd.f32 0.0, %v1369
  %v1371 = vpop.f32.mrf.mxu0
  %1372 = vmatprep.mubr.f32.mxu0 0.0
  %1373 = vmatmul.mubr.f32.gmra.mxu0 %v1290
  %v1374 = vpop.f32.mrf.mxu0
  %v1375 = vpop.f32.mrf.mxu0
  %1376 = vmatprep.mubr.f32.mxu0 0.0
  %1377 = vmatmul.mubr.f32.gmra.mxu0 %v1292
  %v1378 = vpop.f32.mrf.mxu0
  %v1379 = vadd.f32 0.0, %v1378
  %v1380 = vpop.f32.mrf.mxu0
  %1381 = vmatprep.mubr.f32.mxu0 0.0
  %1382 = vmatmul.mubr.f32.gmra.mxu0 %v1294
  %v1383 = vpop.f32.mrf.mxu0
  %v1384 = vadd.f32 0.0, %v1383
  %v1385 = vpop.f32.mrf.mxu0
  %1386 = vmatprep.mubr.f32.mxu0 0.0
  %1387 = vmatmul.mubr.f32.gmra.mxu0 %v1296
  %v1388 = vpop.f32.mrf.mxu0
  %v1389 = vadd.f32 0.0, %v1388
  %v1390 = vpop.f32.mrf.mxu0
  %1391 = vdwg.mxu0
  %v1392 = vadd.f32 %v1261, %v1365
  %v1393 = vadd.f32 %v1262, %v1370
  %v1394 = vadd.f32 %v1263, %v1379
  %v1395 = vadd.f32 %v1264, %v1384
  %v1396 = vadd.f32 %v1265, %v1389
  %s1397 = scalar_lea.vmem %s5, 256
  %v1398 = vld [vmem:[%s1397] sm:$0xff]
  %v1399 = vld [vmem:[%s1397 + $0x8] sm:$0xff]
  %v1400 = vld [vmem:[%s1397 + $0x10] sm:$0xff]
  %v1401 = vld [vmem:[%s1397 + $0x18] sm:$0xff]
  %v1402 = vld [vmem:[%s1397 + $0x20] sm:$0xff]
  %v1403 = vld [vmem:[%s1397 + $0x28] sm:$0xff]
  %v1404 = vld [vmem:[%s1397 + $0x30] sm:$0xff]
  %v1405 = vld [vmem:[%s1397 + $0x38] sm:$0xff]
  %v1406 = vrot.slane %v882, 4
  %v1407 = vrot.slane %v883, 4
  %v1408 = vsel %vm616, %v1406, %v1407
  %v1409 = vrot.slane %v884, 4
  %v1410 = vsel %vm616, %v1407, %v1409
  %v1411 = vrot.slane %v885, 4
  %v1412 = vsel %vm616, %v1409, %v1411
  %v1413 = vrot.slane %v886, 4
  %v1414 = vsel %vm616, %v1411, %v1413
  %v1415 = vrot.slane %v887, 4
  %v1416 = vsel %vm616, %v1413, %v1415
  %v1417 = vsel %vm922, %v1408, 0
  %v1419 = vsel %vm922, %v1410, 0
  %v1421 = vsel %vm922, %v1412, 0
  %v1423 = vsel %vm922, %v1414, 0
  %v1425 = vsel %vm922, %v1416, 0
  %v1427 = vsel %vm922, %v1415, 0
  %1429 = vmatprep.subr.mxu0 0.0
  %1430 = vmatpush1.msra.mxu0 0.0
  %1431 = vmatprep.subr.mxu0 0.0
  %1432 = vmatpush1.msra.mxu0 0.0
  %1433 = vmatprep.subr.mxu0 0.0
  %1434 = vmatpush1.msra.mxu0 0.0
  %1435 = vmatprep.subr.mxu0 0.0
  %1436 = vmatpush1.msra.mxu0 0.0
  %1437 = vmatprep.subr.mxu0 0.0
  %1438 = vmatpush1.msra.mxu0 0.0
  %1439 = vmatprep.subr.mxu0 0.0
  %1440 = vmatpush1.msra.mxu0 0.0
  %1441 = vmatprep.subr.mxu0 0.0
  %1442 = vmatpush1.msra.mxu0 0.0
  %1443 = vmatprep.subr.mxu0 0.0
  %1444 = vmatpush1.msra.mxu0 0.0
  %1445 = vmatprep.subr.mxu0 0.0
  %1446 = vmatpush1.msra.mxu0 %v1405
  %1447 = vmatprep.subr.mxu0 0.0
  %1448 = vmatpush1.msra.mxu0 %v1404
  %1449 = vmatprep.subr.mxu0 0.0
  %1450 = vmatpush1.msra.mxu0 %v1403
  %1451 = vmatprep.subr.mxu0 0.0
  %1452 = vmatpush1.msra.mxu0 %v1402
  %1453 = vmatprep.subr.mxu0 0.0
  %1454 = vmatpush1.msra.mxu0 %v1401
  %1455 = vmatprep.subr.mxu0 0.0
  %1456 = vmatpush1.msra.mxu0 %v1400
  %1457 = vmatprep.subr.mxu0 0.0
  %1458 = vmatpush1.msra.mxu0 %v1399
  %1459 = vmatprep.subr.mxu0 0.0
  %1460 = vmatpush1.msra.mxu0 %v1398
  %1461 = vmatprep.subr.mxu0 0.0
  %1462 = vmatpush2.msra.mxu0 0.0
  %1463 = vmatprep.subr.mxu0 0.0
  %1464 = vmatpush2.msra.mxu0 0.0
  %1465 = vmatprep.subr.mxu0 0.0
  %1466 = vmatpush2.msra.mxu0 0.0
  %1467 = vmatprep.subr.mxu0 0.0
  %1468 = vmatpush2.msra.mxu0 0.0
  %1469 = vmatprep.subr.mxu0 0.0
  %1470 = vmatpush2.msra.mxu0 0.0
  %1471 = vmatprep.subr.mxu0 0.0
  %1472 = vmatpush2.msra.mxu0 0.0
  %1473 = vmatprep.subr.mxu0 0.0
  %1474 = vmatpush2.msra.mxu0 0.0
  %1475 = vmatprep.subr.mxu0 0.0
  %1476 = vmatpush2.msra.mxu0 0.0
  %1477 = vmatprep.subr.mxu0 0.0
  %1478 = vmatpush2.msra.mxu0 0.0
  %1479 = vmatprep.subr.mxu0 0.0
  %1480 = vmatpush2.msra.mxu0 0.0
  %1481 = vmatprep.subr.mxu0 0.0
  %1482 = vmatpush2.msra.mxu0 0.0
  %1483 = vmatprep.subr.mxu0 0.0
  %1484 = vmatpush2.msra.mxu0 0.0
  %1485 = vmatprep.subr.mxu0 0.0
  %1486 = vmatpush2.msra.mxu0 0.0
  %1487 = vmatprep.subr.mxu0 0.0
  %1488 = vmatpush2.msra.mxu0 0.0
  %1489 = vmatprep.subr.mxu0 0.0
  %1490 = vmatpush2.msra.mxu0 0.0
  %1491 = vmatprep.subr.mxu0 0.0
  %1492 = vmatpush2.msra.mxu0 0.0
  %1493 = vmatprep.mubr.f32.mxu0 0.0
  %1494 = vmatmul.mubr.f32.gmra.mxu0 %v1417
  %v1495 = vpop.f32.mrf.mxu0
  %v1496 = vadd.f32 0.0, %v1495
  %v1497 = vpop.f32.mrf.mxu0
  %1498 = vmatprep.mubr.f32.mxu0 0.0
  %1499 = vmatmul.mubr.f32.gmra.mxu0 %v1419
  %v1500 = vpop.f32.mrf.mxu0
  %v1501 = vadd.f32 0.0, %v1500
  %v1502 = vpop.f32.mrf.mxu0
  %1503 = vmatprep.mubr.f32.mxu0 0.0
  %1504 = vmatmul.mubr.f32.gmra.mxu0 %v1421
  %v1505 = vpop.f32.mrf.mxu0
  %v1506 = vpop.f32.mrf.mxu0
  %1507 = vmatprep.mubr.f32.mxu0 0.0
  %1508 = vmatmul.mubr.f32.gmra.mxu0 %v1423
  %v1509 = vpop.f32.mrf.mxu0
  %v1510 = vadd.f32 0.0, %v1509
  %v1511 = vpop.f32.mrf.mxu0
  %1512 = vmatprep.mubr.f32.mxu0 0.0
  %1513 = vmatmul.mubr.f32.gmra.mxu0 %v1425
  %v1514 = vpop.f32.mrf.mxu0
  %v1515 = vadd.f32 0.0, %v1514
  %v1516 = vpop.f32.mrf.mxu0
  %1517 = vmatprep.mubr.f32.mxu0 0.0
  %1518 = vmatmul.mubr.f32.gmra.mxu0 %v1427
  %v1519 = vpop.f32.mrf.mxu0
  %v1520 = vadd.f32 0.0, %v1519
  %v1521 = vpop.f32.mrf.mxu0
  %1522 = vdwg.mxu0
  %v1523 = vadd.f32 %v1392, %v1496
  %v1524 = vadd.f32 %v1393, %v1501
  %v1525 = vadd.f32 %v1394, %v1510
  %v1526 = vadd.f32 %v1395, %v1515
  %v1527 = vadd.f32 %v1396, %v1520
  %v1528 = vmax.f32 %v1523, 0.0
  %v1529 = vmax.f32 %v1524, 0.0
  %v1530 = vmax.f32 %v1525, 0.0
  %v1531 = vmax.f32 %v1526, 0.0
  %v1532 = vmax.f32 %v1527, 0.0
  %v1533 = vld [vmem:[%s6] sm:$0xff]
  %v1534 = vld [vmem:[%s6 + $0x8] sm:$0xff]
  %v1535 = vld [vmem:[%s6 + $0x10] sm:$0xff]
  %v1536 = vld [vmem:[%s6 + $0x18] sm:$0xff]
  %v1537 = vld [vmem:[%s6 + $0x20] sm:$0x1]
  %s1538 = scalar_lea.vmem %s6, 40
  %v1539 = vld [vmem:[%s1538] sm:$0xff]
  %v1540 = vld [vmem:[%s1538 + $0x8] sm:$0xff]
  %v1541 = vld [vmem:[%s1538 + $0x10] sm:$0xff]
  %v1542 = vld [vmem:[%s1538 + $0x18] sm:$0xff]
  %v1543 = vld [vmem:[%s1538 + $0x20] sm:$0x1]
  %v1546 = vrot.slane %v79, 1
  %v1547 = vrot.slane %v80, 1
  %v1548 = vsel %vm107, %v1546, %v1547
  %v1549 = vsel %vm119, %v1548, 0
  %v1551 = vsel %vm119, %v1547, 0
  %v1554 = vsel %vm132, %v1543, 0
  %1556 = vmatprep.subr.mxu0 0.0
  %1557 = vmatpush1.msra.mxu0 0.0
  %1558 = vmatprep.subr.mxu0 0.0
  %1559 = vmatpush1.msra.mxu0 0.0
  %1560 = vmatprep.subr.mxu0 0.0
  %1561 = vmatpush1.msra.mxu0 0.0
  %1562 = vmatprep.subr.mxu0 0.0
  %1563 = vmatpush1.msra.mxu0 0.0
  %1564 = vmatprep.subr.mxu0 0.0
  %1565 = vmatpush1.msra.mxu0 0.0
  %1566 = vmatprep.subr.mxu0 0.0
  %1567 = vmatpush1.msra.mxu0 0.0
  %1568 = vmatprep.subr.mxu0 0.0
  %1569 = vmatpush1.msra.mxu0 0.0
  %1570 = vmatprep.subr.mxu0 0.0
  %1571 = vmatpush1.msra.mxu0 0.0
  %1572 = vmatprep.subr.mxu0 0.0
  %1573 = vmatpush1.msra.mxu0 0.0
  %1574 = vmatprep.subr.mxu0 0.0
  %1575 = vmatpush1.msra.mxu0 0.0
  %1576 = vmatprep.subr.mxu0 0.0
  %1577 = vmatpush1.msra.mxu0 0.0
  %1578 = vmatprep.subr.mxu0 0.0
  %1579 = vmatpush1.msra.mxu0 %v1554
  %1580 = vmatprep.subr.mxu0 0.0
  %1581 = vmatpush1.msra.mxu0 %v1542
  %1582 = vmatprep.subr.mxu0 0.0
  %1583 = vmatpush1.msra.mxu0 %v1541
  %1584 = vmatprep.subr.mxu0 0.0
  %1585 = vmatpush1.msra.mxu0 %v1540
  %1586 = vmatprep.subr.mxu0 0.0
  %1587 = vmatpush1.msra.mxu0 %v1539
  %1588 = vmatprep.subr.mxu0 0.0
  %1589 = vmatpush2.msra.mxu0 0.0
  %1590 = vmatprep.subr.mxu0 0.0
  %1591 = vmatpush2.msra.mxu0 0.0
  %1592 = vmatprep.subr.mxu0 0.0
  %1593 = vmatpush2.msra.mxu0 0.0
  %1594 = vmatprep.subr.mxu0 0.0
  %1595 = vmatpush2.msra.mxu0 0.0
  %1596 = vmatprep.subr.mxu0 0.0
  %1597 = vmatpush2.msra.mxu0 0.0
  %1598 = vmatprep.subr.mxu0 0.0
  %1599 = vmatpush2.msra.mxu0 0.0
  %1600 = vmatprep.subr.mxu0 0.0
  %1601 = vmatpush2.msra.mxu0 0.0
  %1602 = vmatprep.subr.mxu0 0.0
  %1603 = vmatpush2.msra.mxu0 0.0
  %1604 = vmatprep.subr.mxu0 0.0
  %1605 = vmatpush2.msra.mxu0 0.0
  %1606 = vmatprep.subr.mxu0 0.0
  %1607 = vmatpush2.msra.mxu0 0.0
  %1608 = vmatprep.subr.mxu0 0.0
  %1609 = vmatpush2.msra.mxu0 0.0
  %1610 = vmatprep.subr.mxu0 0.0
  %1611 = vmatpush2.msra.mxu0 0.0
  %1612 = vmatprep.subr.mxu0 0.0
  %1613 = vmatpush2.msra.mxu0 0.0
  %1614 = vmatprep.subr.mxu0 0.0
  %1615 = vmatpush2.msra.mxu0 0.0
  %1616 = vmatprep.subr.mxu0 0.0
  %1617 = vmatpush2.msra.mxu0 0.0
  %1618 = vmatprep.subr.mxu0 0.0
  %1619 = vmatpush2.msra.mxu0 0.0
  %1620 = vmatprep.mubr.f32.mxu0 0.0
  %1621 = vmatmul.mubr.f32.gmra.mxu0 %v1549
  %v1622 = vpop.f32.mrf.mxu0
  %v1623 = vadd.f32 0.0, %v1622
  %v1624 = vpop.f32.mrf.mxu0
  %1625 = vmatprep.mubr.f32.mxu0 0.0
  %1626 = vmatmul.mubr.f32.gmra.mxu0 %v1551
  %v1627 = vpop.f32.mrf.mxu0
  %v1628 = vadd.f32 0.0, %v1627
  %v1629 = vpop.f32.mrf.mxu0
  %1630 = vdwg.mxu0
  %v1631 = vsel %vm119, %v79, 0
  %v1633 = vsel %vm119, %v80, 0
  %v1636 = vsel %vm132, %v1537, 0
  %1638 = vmatprep.subr.mxu0 0.0
  %1639 = vmatpush1.msra.mxu0 0.0
  %1640 = vmatprep.subr.mxu0 0.0
  %1641 = vmatpush1.msra.mxu0 0.0
  %1642 = vmatprep.subr.mxu0 0.0
  %1643 = vmatpush1.msra.mxu0 0.0
  %1644 = vmatprep.subr.mxu0 0.0
  %1645 = vmatpush1.msra.mxu0 0.0
  %1646 = vmatprep.subr.mxu0 0.0
  %1647 = vmatpush1.msra.mxu0 0.0
  %1648 = vmatprep.subr.mxu0 0.0
  %1649 = vmatpush1.msra.mxu0 0.0
  %1650 = vmatprep.subr.mxu0 0.0
  %1651 = vmatpush1.msra.mxu0 0.0
  %1652 = vmatprep.subr.mxu0 0.0
  %1653 = vmatpush1.msra.mxu0 0.0
  %1654 = vmatprep.subr.mxu0 0.0
  %1655 = vmatpush1.msra.mxu0 0.0
  %1656 = vmatprep.subr.mxu0 0.0
  %1657 = vmatpush1.msra.mxu0 0.0
  %1658 = vmatprep.subr.mxu0 0.0
  %1659 = vmatpush1.msra.mxu0 0.0
  %1660 = vmatprep.subr.mxu0 0.0
  %1661 = vmatpush1.msra.mxu0 %v1636
  %1662 = vmatprep.subr.mxu0 0.0
  %1663 = vmatpush1.msra.mxu0 %v1536
  %1664 = vmatprep.subr.mxu0 0.0
  %1665 = vmatpush1.msra.mxu0 %v1535
  %1666 = vmatprep.subr.mxu0 0.0
  %1667 = vmatpush1.msra.mxu0 %v1534
  %1668 = vmatprep.subr.mxu0 0.0
  %1669 = vmatpush1.msra.mxu0 %v1533
  %1670 = vmatprep.subr.mxu0 0.0
  %1671 = vmatpush2.msra.mxu0 0.0
  %1672 = vmatprep.subr.mxu0 0.0
  %1673 = vmatpush2.msra.mxu0 0.0
  %1674 = vmatprep.subr.mxu0 0.0
  %1675 = vmatpush2.msra.mxu0 0.0
  %1676 = vmatprep.subr.mxu0 0.0
  %1677 = vmatpush2.msra.mxu0 0.0
  %1678 = vmatprep.subr.mxu0 0.0
  %1679 = vmatpush2.msra.mxu0 0.0
  %1680 = vmatprep.subr.mxu0 0.0
  %1681 = vmatpush2.msra.mxu0 0.0
  %1682 = vmatprep.subr.mxu0 0.0
  %1683 = vmatpush2.msra.mxu0 0.0
  %1684 = vmatprep.subr.mxu0 0.0
  %1685 = vmatpush2.msra.mxu0 0.0
  %1686 = vmatprep.subr.mxu0 0.0
  %1687 = vmatpush2.msra.mxu0 0.0
  %1688 = vmatprep.subr.mxu0 0.0
  %1689 = vmatpush2.msra.mxu0 0.0
  %1690 = vmatprep.subr.mxu0 0.0
  %1691 = vmatpush2.msra.mxu0 0.0
  %1692 = vmatprep.subr.mxu0 0.0
  %1693 = vmatpush2.msra.mxu0 0.0
  %1694 = vmatprep.subr.mxu0 0.0
  %1695 = vmatpush2.msra.mxu0 0.0
  %1696 = vmatprep.subr.mxu0 0.0
  %1697 = vmatpush2.msra.mxu0 0.0
  %1698 = vmatprep.subr.mxu0 0.0
  %1699 = vmatpush2.msra.mxu0 0.0
  %1700 = vmatprep.subr.mxu0 0.0
  %1701 = vmatpush2.msra.mxu0 0.0
  %1702 = vmatprep.mubr.f32.mxu0 0.0
  %1703 = vmatmul.mubr.f32.gmra.mxu0 %v1631
  %v1704 = vpop.f32.mrf.mxu0
  %v1705 = vadd.f32 %v1623, %v1704
  %v1706 = vpop.f32.mrf.mxu0
  %1707 = vmatprep.mubr.f32.mxu0 0.0
  %1708 = vmatmul.mubr.f32.gmra.mxu0 %v1633
  %v1709 = vpop.f32.mrf.mxu0
  %v1710 = vadd.f32 %v1628, %v1709
  %v1711 = vpop.f32.mrf.mxu0
  %1712 = vdwg.mxu0
  %s1713 = scalar_lea.vmem %s6, 80
  %v1714 = vld [vmem:[%s1713] sm:$0xff]
  %v1715 = vld [vmem:[%s1713 + $0x8] sm:$0xff]
  %v1716 = vld [vmem:[%s1713 + $0x10] sm:$0xff]
  %v1717 = vld [vmem:[%s1713 + $0x18] sm:$0xff]
  %v1718 = vld [vmem:[%s1713 + $0x20] sm:$0x1]
  %v1720 = vrot.slane %v79, 2
  %v1721 = vrot.slane %v80, 2
  %v1722 = vsel %vm347, %v1720, %v1721
  %v1723 = vrot.slane %v81, 2
  %v1724 = vsel %vm347, %v1721, %v1723
  %v1725 = vsel %vm119, %v1722, 0
  %v1727 = vsel %vm119, %v1724, 0
  %v1730 = vsel %vm132, %v1718, 0
  %1732 = vmatprep.subr.mxu0 0.0
  %1733 = vmatpush1.msra.mxu0 0.0
  %1734 = vmatprep.subr.mxu0 0.0
  %1735 = vmatpush1.msra.mxu0 0.0
  %1736 = vmatprep.subr.mxu0 0.0
  %1737 = vmatpush1.msra.mxu0 0.0
  %1738 = vmatprep.subr.mxu0 0.0
  %1739 = vmatpush1.msra.mxu0 0.0
  %1740 = vmatprep.subr.mxu0 0.0
  %1741 = vmatpush1.msra.mxu0 0.0
  %1742 = vmatprep.subr.mxu0 0.0
  %1743 = vmatpush1.msra.mxu0 0.0
  %1744 = vmatprep.subr.mxu0 0.0
  %1745 = vmatpush1.msra.mxu0 0.0
  %1746 = vmatprep.subr.mxu0 0.0
  %1747 = vmatpush1.msra.mxu0 0.0
  %1748 = vmatprep.subr.mxu0 0.0
  %1749 = vmatpush1.msra.mxu0 0.0
  %1750 = vmatprep.subr.mxu0 0.0
  %1751 = vmatpush1.msra.mxu0 0.0
  %1752 = vmatprep.subr.mxu0 0.0
  %1753 = vmatpush1.msra.mxu0 0.0
  %1754 = vmatprep.subr.mxu0 0.0
  %1755 = vmatpush1.msra.mxu0 %v1730
  %1756 = vmatprep.subr.mxu0 0.0
  %1757 = vmatpush1.msra.mxu0 %v1717
  %1758 = vmatprep.subr.mxu0 0.0
  %1759 = vmatpush1.msra.mxu0 %v1716
  %1760 = vmatprep.subr.mxu0 0.0
  %1761 = vmatpush1.msra.mxu0 %v1715
  %1762 = vmatprep.subr.mxu0 0.0
  %1763 = vmatpush1.msra.mxu0 %v1714
  %1764 = vmatprep.subr.mxu0 0.0
  %1765 = vmatpush2.msra.mxu0 0.0
  %1766 = vmatprep.subr.mxu0 0.0
  %1767 = vmatpush2.msra.mxu0 0.0
  %1768 = vmatprep.subr.mxu0 0.0
  %1769 = vmatpush2.msra.mxu0 0.0
  %1770 = vmatprep.subr.mxu0 0.0
  %1771 = vmatpush2.msra.mxu0 0.0
  %1772 = vmatprep.subr.mxu0 0.0
  %1773 = vmatpush2.msra.mxu0 0.0
  %1774 = vmatprep.subr.mxu0 0.0
  %1775 = vmatpush2.msra.mxu0 0.0
  %1776 = vmatprep.subr.mxu0 0.0
  %1777 = vmatpush2.msra.mxu0 0.0
  %1778 = vmatprep.subr.mxu0 0.0
  %1779 = vmatpush2.msra.mxu0 0.0
  %1780 = vmatprep.subr.mxu0 0.0
  %1781 = vmatpush2.msra.mxu0 0.0
  %1782 = vmatprep.subr.mxu0 0.0
  %1783 = vmatpush2.msra.mxu0 0.0
  %1784 = vmatprep.subr.mxu0 0.0
  %1785 = vmatpush2.msra.mxu0 0.0
  %1786 = vmatprep.subr.mxu0 0.0
  %1787 = vmatpush2.msra.mxu0 0.0
  %1788 = vmatprep.subr.mxu0 0.0
  %1789 = vmatpush2.msra.mxu0 0.0
  %1790 = vmatprep.subr.mxu0 0.0
  %1791 = vmatpush2.msra.mxu0 0.0
  %1792 = vmatprep.subr.mxu0 0.0
  %1793 = vmatpush2.msra.mxu0 0.0
  %1794 = vmatprep.subr.mxu0 0.0
  %1795 = vmatpush2.msra.mxu0 0.0
  %1796 = vmatprep.mubr.f32.mxu0 0.0
  %1797 = vmatmul.mubr.f32.gmra.mxu0 %v1725
  %v1798 = vpop.f32.mrf.mxu0
  %v1799 = vadd.f32 0.0, %v1798
  %v1800 = vpop.f32.mrf.mxu0
  %1801 = vmatprep.mubr.f32.mxu0 0.0
  %1802 = vmatmul.mubr.f32.gmra.mxu0 %v1727
  %v1803 = vpop.f32.mrf.mxu0
  %v1804 = vadd.f32 0.0, %v1803
  %v1805 = vpop.f32.mrf.mxu0
  %1806 = vdwg.mxu0
  %v1807 = vadd.f32 %v1705, %v1799
  %v1808 = vadd.f32 %v1710, %v1804
  %s1809 = scalar_lea.vmem %s6, 120
  %v1810 = vld [vmem:[%s1809] sm:$0xff]
  %v1811 = vld [vmem:[%s1809 + $0x8] sm:$0xff]
  %v1812 = vld [vmem:[%s1809 + $0x10] sm:$0xff]
  %v1813 = vld [vmem:[%s1809 + $0x18] sm:$0xff]
  %v1814 = vld [vmem:[%s1809 + $0x20] sm:$0x1]
  %v1815 = vrot.slane %v79, 3
  %v1816 = vrot.slane %v80, 3
  %v1817 = vsel %vm481, %v1815, %v1816
  %v1818 = vrot.slane %v81, 3
  %v1819 = vsel %vm481, %v1816, %v1818
  %v1820 = vsel %vm119, %v1817, 0
  %v1822 = vsel %vm119, %v1819, 0
  %v1825 = vsel %vm132, %v1814, 0
  %1827 = vmatprep.subr.mxu0 0.0
  %1828 = vmatpush1.msra.mxu0 0.0
  %1829 = vmatprep.subr.mxu0 0.0
  %1830 = vmatpush1.msra.mxu0 0.0
  %1831 = vmatprep.subr.mxu0 0.0
  %1832 = vmatpush1.msra.mxu0 0.0
  %1833 = vmatprep.subr.mxu0 0.0
  %1834 = vmatpush1.msra.mxu0 0.0
  %1835 = vmatprep.subr.mxu0 0.0
  %1836 = vmatpush1.msra.mxu0 0.0
  %1837 = vmatprep.subr.mxu0 0.0
  %1838 = vmatpush1.msra.mxu0 0.0
  %1839 = vmatprep.subr.mxu0 0.0
  %1840 = vmatpush1.msra.mxu0 0.0
  %1841 = vmatprep.subr.mxu0 0.0
  %1842 = vmatpush1.msra.mxu0 0.0
  %1843 = vmatprep.subr.mxu0 0.0
  %1844 = vmatpush1.msra.mxu0 0.0
  %1845 = vmatprep.subr.mxu0 0.0
  %1846 = vmatpush1.msra.mxu0 0.0
  %1847 = vmatprep.subr.mxu0 0.0
  %1848 = vmatpush1.msra.mxu0 0.0
  %1849 = vmatprep.subr.mxu0 0.0
  %1850 = vmatpush1.msra.mxu0 %v1825
  %1851 = vmatprep.subr.mxu0 0.0
  %1852 = vmatpush1.msra.mxu0 %v1813
  %1853 = vmatprep.subr.mxu0 0.0
  %1854 = vmatpush1.msra.mxu0 %v1812
  %1855 = vmatprep.subr.mxu0 0.0
  %1856 = vmatpush1.msra.mxu0 %v1811
  %1857 = vmatprep.subr.mxu0 0.0
  %1858 = vmatpush1.msra.mxu0 %v1810
  %1859 = vmatprep.subr.mxu0 0.0
  %1860 = vmatpush2.msra.mxu0 0.0
  %1861 = vmatprep.subr.mxu0 0.0
  %1862 = vmatpush2.msra.mxu0 0.0
  %1863 = vmatprep.subr.mxu0 0.0
  %1864 = vmatpush2.msra.mxu0 0.0
  %1865 = vmatprep.subr.mxu0 0.0
  %1866 = vmatpush2.msra.mxu0 0.0
  %1867 = vmatprep.subr.mxu0 0.0
  %1868 = vmatpush2.msra.mxu0 0.0
  %1869 = vmatprep.subr.mxu0 0.0
  %1870 = vmatpush2.msra.mxu0 0.0
  %1871 = vmatprep.subr.mxu0 0.0
  %1872 = vmatpush2.msra.mxu0 0.0
  %1873 = vmatprep.subr.mxu0 0.0
  %1874 = vmatpush2.msra.mxu0 0.0
  %1875 = vmatprep.subr.mxu0 0.0
  %1876 = vmatpush2.msra.mxu0 0.0
  %1877 = vmatprep.subr.mxu0 0.0
  %1878 = vmatpush2.msra.mxu0 0.0
  %1879 = vmatprep.subr.mxu0 0.0
  %1880 = vmatpush2.msra.mxu0 0.0
  %1881 = vmatprep.subr.mxu0 0.0
  %1882 = vmatpush2.msra.mxu0 0.0
  %1883 = vmatprep.subr.mxu0 0.0
  %1884 = vmatpush2.msra.mxu0 0.0
  %1885 = vmatprep.subr.mxu0 0.0
  %1886 = vmatpush2.msra.mxu0 0.0
  %1887 = vmatprep.subr.mxu0 0.0
  %1888 = vmatpush2.msra.mxu0 0.0
  %1889 = vmatprep.subr.mxu0 0.0
  %1890 = vmatpush2.msra.mxu0 0.0
  %1891 = vmatprep.mubr.f32.mxu0 0.0
  %1892 = vmatmul.mubr.f32.gmra.mxu0 %v1820
  %v1893 = vpop.f32.mrf.mxu0
  %v1894 = vadd.f32 0.0, %v1893
  %v1895 = vpop.f32.mrf.mxu0
  %1896 = vmatprep.mubr.f32.mxu0 0.0
  %1897 = vmatmul.mubr.f32.gmra.mxu0 %v1822
  %v1898 = vpop.f32.mrf.mxu0
  %v1899 = vadd.f32 0.0, %v1898
  %v1900 = vpop.f32.mrf.mxu0
  %1901 = vdwg.mxu0
  %v1902 = vadd.f32 %v1807, %v1894
  %v1903 = vadd.f32 %v1808, %v1899
  %s1904 = scalar_lea.vmem %s6, 160
  %v1905 = vld [vmem:[%s1904] sm:$0xff]
  %v1906 = vld [vmem:[%s1904 + $0x8] sm:$0xff]
  %v1907 = vld [vmem:[%s1904 + $0x10] sm:$0xff]
  %v1908 = vld [vmem:[%s1904 + $0x18] sm:$0xff]
  %v1909 = vld [vmem:[%s1904 + $0x20] sm:$0x1]
  %v1910 = vrot.slane %v79, 4
  %v1911 = vrot.slane %v80, 4
  %v1912 = vsel %vm616, %v1910, %v1911
  %v1913 = vrot.slane %v81, 4
  %v1914 = vsel %vm616, %v1911, %v1913
  %v1915 = vsel %vm119, %v1912, 0
  %v1917 = vsel %vm119, %v1914, 0
  %v1920 = vsel %vm132, %v1909, 0
  %1922 = vmatprep.subr.mxu0 0.0
  %1923 = vmatpush1.msra.mxu0 0.0
  %1924 = vmatprep.subr.mxu0 0.0
  %1925 = vmatpush1.msra.mxu0 0.0
  %1926 = vmatprep.subr.mxu0 0.0
  %1927 = vmatpush1.msra.mxu0 0.0
  %1928 = vmatprep.subr.mxu0 0.0
  %1929 = vmatpush1.msra.mxu0 0.0
  %1930 = vmatprep.subr.mxu0 0.0
  %1931 = vmatpush1.msra.mxu0 0.0
  %1932 = vmatprep.subr.mxu0 0.0
  %1933 = vmatpush1.msra.mxu0 0.0
  %1934 = vmatprep.subr.mxu0 0.0
  %1935 = vmatpush1.msra.mxu0 0.0
  %1936 = vmatprep.subr.mxu0 0.0
  %1937 = vmatpush1.msra.mxu0 0.0
  %1938 = vmatprep.subr.mxu0 0.0
  %1939 = vmatpush1.msra.mxu0 0.0
  %1940 = vmatprep.subr.mxu0 0.0
  %1941 = vmatpush1.msra.mxu0 0.0
  %1942 = vmatprep.subr.mxu0 0.0
  %1943 = vmatpush1.msra.mxu0 0.0
  %1944 = vmatprep.subr.mxu0 0.0
  %1945 = vmatpush1.msra.mxu0 %v1920
  %1946 = vmatprep.subr.mxu0 0.0
  %1947 = vmatpush1.msra.mxu0 %v1908
  %1948 = vmatprep.subr.mxu0 0.0
  %1949 = vmatpush1.msra.mxu0 %v1907
  %1950 = vmatprep.subr.mxu0 0.0
  %1951 = vmatpush1.msra.mxu0 %v1906
  %1952 = vmatprep.subr.mxu0 0.0
  %1953 = vmatpush1.msra.mxu0 %v1905
  %1954 = vmatprep.subr.mxu0 0.0
  %1955 = vmatpush2.msra.mxu0 0.0
  %1956 = vmatprep.subr.mxu0 0.0
  %1957 = vmatpush2.msra.mxu0 0.0
  %1958 = vmatprep.subr.mxu0 0.0
  %1959 = vmatpush2.msra.mxu0 0.0
  %1960 = vmatprep.subr.mxu0 0.0
  %1961 = vmatpush2.msra.mxu0 0.0
  %1962 = vmatprep.subr.mxu0 0.0
  %1963 = vmatpush2.msra.mxu0 0.0
  %1964 = vmatprep.subr.mxu0 0.0
  %1965 = vmatpush2.msra.mxu0 0.0
  %1966 = vmatprep.subr.mxu0 0.0
  %1967 = vmatpush2.msra.mxu0 0.0
  %1968 = vmatprep.subr.mxu0 0.0
  %1969 = vmatpush2.msra.mxu0 0.0
  %1970 = vmatprep.subr.mxu0 0.0
  %1971 = vmatpush2.msra.mxu0 0.0
  %1972 = vmatprep.subr.mxu0 0.0
  %1973 = vmatpush2.msra.mxu0 0.0
  %1974 = vmatprep.subr.mxu0 0.0
  %1975 = vmatpush2.msra.mxu0 0.0
  %1976 = vmatprep.subr.mxu0 0.0
  %1977 = vmatpush2.msra.mxu0 0.0
  %1978 = vmatprep.subr.mxu0 0.0
  %1979 = vmatpush2.msra.mxu0 0.0
  %1980 = vmatprep.subr.mxu0 0.0
  %1981 = vmatpush2.msra.mxu0 0.0
  %1982 = vmatprep.subr.mxu0 0.0
  %1983 = vmatpush2.msra.mxu0 0.0
  %1984 = vmatprep.subr.mxu0 0.0
  %1985 = vmatpush2.msra.mxu0 0.0
  %1986 = vmatprep.mubr.f32.mxu0 0.0
  %1987 = vmatmul.mubr.f32.gmra.mxu0 %v1915
  %v1988 = vpop.f32.mrf.mxu0
  %v1989 = vadd.f32 0.0, %v1988
  %v1990 = vpop.f32.mrf.mxu0
  %1991 = vmatprep.mubr.f32.mxu0 0.0
  %1992 = vmatmul.mubr.f32.gmra.mxu0 %v1917
  %v1993 = vpop.f32.mrf.mxu0
  %v1994 = vadd.f32 0.0, %v1993
  %v1995 = vpop.f32.mrf.mxu0
  %1996 = vdwg.mxu0
  %v1997 = vadd.f32 %v1902, %v1989
  %v1998 = vadd.f32 %v1903, %v1994
  %s1999 = scalar_lea.vmem %s6, 200
  %v2000 = vld [vmem:[%s1999] sm:$0xff]
  %v2001 = vld [vmem:[%s1999 + $0x8] sm:$0xff]
  %v2002 = vld [vmem:[%s1999 + $0x10] sm:$0xff]
  %v2003 = vld [vmem:[%s1999 + $0x18] sm:$0xff]
  %v2004 = vld [vmem:[%s1999 + $0x20] sm:$0x1]
  %v2005 = vrot.slane %v79, 5
  %v2006 = vrot.slane %v80, 5
  %v2007 = vsel %vm752, %v2005, %v2006
  %v2008 = vrot.slane %v81, 5
  %v2009 = vsel %vm752, %v2006, %v2008
  %v2010 = vsel %vm119, %v2007, 0
  %v2012 = vsel %vm119, %v2009, 0
  %v2015 = vsel %vm132, %v2004, 0
  %2017 = vmatprep.subr.mxu0 0.0
  %2018 = vmatpush1.msra.mxu0 0.0
  %2019 = vmatprep.subr.mxu0 0.0
  %2020 = vmatpush1.msra.mxu0 0.0
  %2021 = vmatprep.subr.mxu0 0.0
  %2022 = vmatpush1.msra.mxu0 0.0
  %2023 = vmatprep.subr.mxu0 0.0
  %2024 = vmatpush1.msra.mxu0 0.0
  %2025 = vmatprep.subr.mxu0 0.0
  %2026 = vmatpush1.msra.mxu0 0.0
  %2027 = vmatprep.subr.mxu0 0.0
  %2028 = vmatpush1.msra.mxu0 0.0
  %2029 = vmatprep.subr.mxu0 0.0
  %2030 = vmatpush1.msra.mxu0 0.0
  %2031 = vmatprep.subr.mxu0 0.0
  %2032 = vmatpush1.msra.mxu0 0.0
  %2033 = vmatprep.subr.mxu0 0.0
  %2034 = vmatpush1.msra.mxu0 0.0
  %2035 = vmatprep.subr.mxu0 0.0
  %2036 = vmatpush1.msra.mxu0 0.0
  %2037 = vmatprep.subr.mxu0 0.0
  %2038 = vmatpush1.msra.mxu0 0.0
  %2039 = vmatprep.subr.mxu0 0.0
  %2040 = vmatpush1.msra.mxu0 %v2015
  %2041 = vmatprep.subr.mxu0 0.0
  %2042 = vmatpush1.msra.mxu0 %v2003
  %2043 = vmatprep.subr.mxu0 0.0
  %2044 = vmatpush1.msra.mxu0 %v2002
  %2045 = vmatprep.subr.mxu0 0.0
  %2046 = vmatpush1.msra.mxu0 %v2001
  %2047 = vmatprep.subr.mxu0 0.0
  %2048 = vmatpush1.msra.mxu0 %v2000
  %2049 = vmatprep.subr.mxu0 0.0
  %2050 = vmatpush2.msra.mxu0 0.0
  %2051 = vmatprep.subr.mxu0 0.0
  %2052 = vmatpush2.msra.mxu0 0.0
  %2053 = vmatprep.subr.mxu0 0.0
  %2054 = vmatpush2.msra.mxu0 0.0
  %2055 = vmatprep.subr.mxu0 0.0
  %2056 = vmatpush2.msra.mxu0 0.0
  %2057 = vmatprep.subr.mxu0 0.0
  %2058 = vmatpush2.msra.mxu0 0.0
  %2059 = vmatprep.subr.mxu0 0.0
  %2060 = vmatpush2.msra.mxu0 0.0
  %2061 = vmatprep.subr.mxu0 0.0
  %2062 = vmatpush2.msra.mxu0 0.0
  %2063 = vmatprep.subr.mxu0 0.0
  %2064 = vmatpush2.msra.mxu0 0.0
  %2065 = vmatprep.subr.mxu0 0.0
  %2066 = vmatpush2.msra.mxu0 0.0
  %2067 = vmatprep.subr.mxu0 0.0
  %2068 = vmatpush2.msra.mxu0 0.0
  %2069 = vmatprep.subr.mxu0 0.0
  %2070 = vmatpush2.msra.mxu0 0.0
  %2071 = vmatprep.subr.mxu0 0.0
  %2072 = vmatpush2.msra.mxu0 0.0
  %2073 = vmatprep.subr.mxu0 0.0
  %2074 = vmatpush2.msra.mxu0 0.0
  %2075 = vmatprep.subr.mxu0 0.0
  %2076 = vmatpush2.msra.mxu0 0.0
  %2077 = vmatprep.subr.mxu0 0.0
  %2078 = vmatpush2.msra.mxu0 0.0
  %2079 = vmatprep.subr.mxu0 0.0
  %2080 = vmatpush2.msra.mxu0 0.0
  %2081 = vmatprep.mubr.f32.mxu0 0.0
  %2082 = vmatmul.mubr.f32.gmra.mxu0 %v2010
  %v2083 = vpop.f32.mrf.mxu0
  %v2084 = vadd.f32 0.0, %v2083
  %v2085 = vpop.f32.mrf.mxu0
  %2086 = vmatprep.mubr.f32.mxu0 0.0
  %2087 = vmatmul.mubr.f32.gmra.mxu0 %v2012
  %v2088 = vpop.f32.mrf.mxu0
  %v2089 = vadd.f32 0.0, %v2088
  %v2090 = vpop.f32.mrf.mxu0
  %2091 = vdwg.mxu0
  %v2092 = vadd.f32 %v1997, %v2084
  %v2093 = vadd.f32 %v1998, %v2089
  %v2094 = vmax.f32 %v2092, 0.0
  %v2095 = vmax.f32 %v2093, 0.0
  %v2096 = vld [vmem:[%s7] sm:$0xff]
  %v2097 = vld [vmem:[%s7 + $0x8] sm:$0xff]
  %v2098 = vld [vmem:[%s7 + $0x10] sm:$0xff]
  %v2099 = vld [vmem:[%s7 + $0x18] sm:$0xff]
  %v2100 = vld [vmem:[%s7 + $0x20] sm:$0xff]
  %v2101 = vld [vmem:[%s7 + $0x28] sm:$0xff]
  %v2102 = vld [vmem:[%s7 + $0x30] sm:$0xff]
  %v2103 = vld [vmem:[%s7 + $0x38] sm:$0xff]
  %s2104 = scalar_lea.vmem %s7, 64
  %v2105 = vld [vmem:[%s2104] sm:$0xff]
  %v2106 = vld [vmem:[%s2104 + $0x8] sm:$0xff]
  %v2107 = vld [vmem:[%s2104 + $0x10] sm:$0xff]
  %v2108 = vld [vmem:[%s2104 + $0x18] sm:$0xff]
  %v2109 = vld [vmem:[%s2104 + $0x20] sm:$0xff]
  %v2110 = vld [vmem:[%s2104 + $0x28] sm:$0xff]
  %v2111 = vld [vmem:[%s2104 + $0x30] sm:$0xff]
  %v2112 = vld [vmem:[%s2104 + $0x38] sm:$0xff]
  %v2115 = vrot.slane %v2094, 1
  %v2116 = vrot.slane %v2095, 1
  %v2117 = vsel %vm107, %v2115, %v2116
  %v2118 = vsel %vm922, %v2117, 0
  %v2120 = vsel %vm922, %v2116, 0
  %2122 = vmatprep.subr.mxu0 0.0
  %2123 = vmatpush1.msra.mxu0 0.0
  %2124 = vmatprep.subr.mxu0 0.0
  %2125 = vmatpush1.msra.mxu0 0.0
  %2126 = vmatprep.subr.mxu0 0.0
  %2127 = vmatpush1.msra.mxu0 0.0
  %2128 = vmatprep.subr.mxu0 0.0
  %2129 = vmatpush1.msra.mxu0 0.0
  %2130 = vmatprep.subr.mxu0 0.0
  %2131 = vmatpush1.msra.mxu0 0.0
  %2132 = vmatprep.subr.mxu0 0.0
  %2133 = vmatpush1.msra.mxu0 0.0
  %2134 = vmatprep.subr.mxu0 0.0
  %2135 = vmatpush1.msra.mxu0 0.0
  %2136 = vmatprep.subr.mxu0 0.0
  %2137 = vmatpush1.msra.mxu0 0.0
  %2138 = vmatprep.subr.mxu0 0.0
  %2139 = vmatpush1.msra.mxu0 %v2112
  %2140 = vmatprep.subr.mxu0 0.0
  %2141 = vmatpush1.msra.mxu0 %v2111
  %2142 = vmatprep.subr.mxu0 0.0
  %2143 = vmatpush1.msra.mxu0 %v2110
  %2144 = vmatprep.subr.mxu0 0.0
  %2145 = vmatpush1.msra.mxu0 %v2109
  %2146 = vmatprep.subr.mxu0 0.0
  %2147 = vmatpush1.msra.mxu0 %v2108
  %2148 = vmatprep.subr.mxu0 0.0
  %2149 = vmatpush1.msra.mxu0 %v2107
  %2150 = vmatprep.subr.mxu0 0.0
  %2151 = vmatpush1.msra.mxu0 %v2106
  %2152 = vmatprep.subr.mxu0 0.0
  %2153 = vmatpush1.msra.mxu0 %v2105
  %2154 = vmatprep.subr.mxu0 0.0
  %2155 = vmatpush2.msra.mxu0 0.0
  %2156 = vmatprep.subr.mxu0 0.0
  %2157 = vmatpush2.msra.mxu0 0.0
  %2158 = vmatprep.subr.mxu0 0.0
  %2159 = vmatpush2.msra.mxu0 0.0
  %2160 = vmatprep.subr.mxu0 0.0
  %2161 = vmatpush2.msra.mxu0 0.0
  %2162 = vmatprep.subr.mxu0 0.0
  %2163 = vmatpush2.msra.mxu0 0.0
  %2164 = vmatprep.subr.mxu0 0.0
  %2165 = vmatpush2.msra.mxu0 0.0
  %2166 = vmatprep.subr.mxu0 0.0
  %2167 = vmatpush2.msra.mxu0 0.0
  %2168 = vmatprep.subr.mxu0 0.0
  %2169 = vmatpush2.msra.mxu0 0.0
  %2170 = vmatprep.subr.mxu0 0.0
  %2171 = vmatpush2.msra.mxu0 0.0
  %2172 = vmatprep.subr.mxu0 0.0
  %2173 = vmatpush2.msra.mxu0 0.0
  %2174 = vmatprep.subr.mxu0 0.0
  %2175 = vmatpush2.msra.mxu0 0.0
  %2176 = vmatprep.subr.mxu0 0.0
  %2177 = vmatpush2.msra.mxu0 0.0
  %2178 = vmatprep.subr.mxu0 0.0
  %2179 = vmatpush2.msra.mxu0 0.0
  %2180 = vmatprep.subr.mxu0 0.0
  %2181 = vmatpush2.msra.mxu0 0.0
  %2182 = vmatprep.subr.mxu0 0.0
  %2183 = vmatpush2.msra.mxu0 0.0
  %2184 = vmatprep.subr.mxu0 0.0
  %2185 = vmatpush2.msra.mxu0 0.0
  %2186 = vmatprep.mubr.f32.mxu0 0.0
  %2187 = vmatmul.mubr.f32.gmra.mxu0 %v2118
  %v2188 = vpop.f32.mrf.mxu0
  %v2189 = vadd.f32 0.0, %v2188
  %v2190 = vpop.f32.mrf.mxu0
  %2191 = vmatprep.mubr.f32.mxu0 0.0
  %2192 = vmatmul.mubr.f32.gmra.mxu0 %v2120
  %v2193 = vpop.f32.mrf.mxu0
  %v2194 = vadd.f32 0.0, %v2193
  %v2195 = vpop.f32.mrf.mxu0
  %2196 = vdwg.mxu0
  %v2197 = vsel %vm922, %v2094, 0
  %v2199 = vsel %vm922, %v2095, 0
  %2201 = vmatprep.subr.mxu0 0.0
  %2202 = vmatpush1.msra.mxu0 0.0
  %2203 = vmatprep.subr.mxu0 0.0
  %2204 = vmatpush1.msra.mxu0 0.0
  %2205 = vmatprep.subr.mxu0 0.0
  %2206 = vmatpush1.msra.mxu0 0.0
  %2207 = vmatprep.subr.mxu0 0.0
  %2208 = vmatpush1.msra.mxu0 0.0
  %2209 = vmatprep.subr.mxu0 0.0
  %2210 = vmatpush1.msra.mxu0 0.0
  %2211 = vmatprep.subr.mxu0 0.0
  %2212 = vmatpush1.msra.mxu0 0.0
  %2213 = vmatprep.subr.mxu0 0.0
  %2214 = vmatpush1.msra.mxu0 0.0
  %2215 = vmatprep.subr.mxu0 0.0
  %2216 = vmatpush1.msra.mxu0 0.0
  %2217 = vmatprep.subr.mxu0 0.0
  %2218 = vmatpush1.msra.mxu0 %v2103
  %2219 = vmatprep.subr.mxu0 0.0
  %2220 = vmatpush1.msra.mxu0 %v2102
  %2221 = vmatprep.subr.mxu0 0.0
  %2222 = vmatpush1.msra.mxu0 %v2101
  %2223 = vmatprep.subr.mxu0 0.0
  %2224 = vmatpush1.msra.mxu0 %v2100
  %2225 = vmatprep.subr.mxu0 0.0
  %2226 = vmatpush1.msra.mxu0 %v2099
  %2227 = vmatprep.subr.mxu0 0.0
  %2228 = vmatpush1.msra.mxu0 %v2098
  %2229 = vmatprep.subr.mxu0 0.0
  %2230 = vmatpush1.msra.mxu0 %v2097
  %2231 = vmatprep.subr.mxu0 0.0
  %2232 = vmatpush1.msra.mxu0 %v2096
  %2233 = vmatprep.subr.mxu0 0.0
  %2234 = vmatpush2.msra.mxu0 0.0
  %2235 = vmatprep.subr.mxu0 0.0
  %2236 = vmatpush2.msra.mxu0 0.0
  %2237 = vmatprep.subr.mxu0 0.0
  %2238 = vmatpush2.msra.mxu0 0.0
  %2239 = vmatprep.subr.mxu0 0.0
  %2240 = vmatpush2.msra.mxu0 0.0
  %2241 = vmatprep.subr.mxu0 0.0
  %2242 = vmatpush2.msra.mxu0 0.0
  %2243 = vmatprep.subr.mxu0 0.0
  %2244 = vmatpush2.msra.mxu0 0.0
  %2245 = vmatprep.subr.mxu0 0.0
  %2246 = vmatpush2.msra.mxu0 0.0
  %2247 = vmatprep.subr.mxu0 0.0
  %2248 = vmatpush2.msra.mxu0 0.0
  %2249 = vmatprep.subr.mxu0 0.0
  %2250 = vmatpush2.msra.mxu0 0.0
  %2251 = vmatprep.subr.mxu0 0.0
  %2252 = vmatpush2.msra.mxu0 0.0
  %2253 = vmatprep.subr.mxu0 0.0
  %2254 = vmatpush2.msra.mxu0 0.0
  %2255 = vmatprep.subr.mxu0 0.0
  %2256 = vmatpush2.msra.mxu0 0.0
  %2257 = vmatprep.subr.mxu0 0.0
  %2258 = vmatpush2.msra.mxu0 0.0
  %2259 = vmatprep.subr.mxu0 0.0
  %2260 = vmatpush2.msra.mxu0 0.0
  %2261 = vmatprep.subr.mxu0 0.0
  %2262 = vmatpush2.msra.mxu0 0.0
  %2263 = vmatprep.subr.mxu0 0.0
  %2264 = vmatpush2.msra.mxu0 0.0
  %2265 = vmatprep.mubr.f32.mxu0 0.0
  %2266 = vmatmul.mubr.f32.gmra.mxu0 %v2197
  %v2267 = vpop.f32.mrf.mxu0
  %v2268 = vadd.f32 %v2189, %v2267
  %v2269 = vpop.f32.mrf.mxu0
  %2270 = vmatprep.mubr.f32.mxu0 0.0
  %2271 = vmatmul.mubr.f32.gmra.mxu0 %v2199
  %v2272 = vpop.f32.mrf.mxu0
  %v2273 = vadd.f32 %v2194, %v2272
  %v2274 = vpop.f32.mrf.mxu0
  %2275 = vdwg.mxu0
  %s2276 = scalar_lea.vmem %s7, 128
  %v2277 = vld [vmem:[%s2276] sm:$0xff]
  %v2278 = vld [vmem:[%s2276 + $0x8] sm:$0xff]
  %v2279 = vld [vmem:[%s2276 + $0x10] sm:$0xff]
  %v2280 = vld [vmem:[%s2276 + $0x18] sm:$0xff]
  %v2281 = vld [vmem:[%s2276 + $0x20] sm:$0xff]
  %v2282 = vld [vmem:[%s2276 + $0x28] sm:$0xff]
  %v2283 = vld [vmem:[%s2276 + $0x30] sm:$0xff]
  %v2284 = vld [vmem:[%s2276 + $0x38] sm:$0xff]
  %v2285 = vrot.slane %v2094, 2
  %v2286 = vrot.slane %v2095, 2
  %v2287 = vsel %vm347, %v2285, %v2286
  %v2288 = vsel %vm922, %v2287, 0
  %v2290 = vsel %vm922, %v2286, 0
  %2292 = vmatprep.subr.mxu0 0.0
  %2293 = vmatpush1.msra.mxu0 0.0
  %2294 = vmatprep.subr.mxu0 0.0
  %2295 = vmatpush1.msra.mxu0 0.0
  %2296 = vmatprep.subr.mxu0 0.0
  %2297 = vmatpush1.msra.mxu0 0.0
  %2298 = vmatprep.subr.mxu0 0.0
  %2299 = vmatpush1.msra.mxu0 0.0
  %2300 = vmatprep.subr.mxu0 0.0
  %2301 = vmatpush1.msra.mxu0 0.0
  %2302 = vmatprep.subr.mxu0 0.0
  %2303 = vmatpush1.msra.mxu0 0.0
  %2304 = vmatprep.subr.mxu0 0.0
  %2305 = vmatpush1.msra.mxu0 0.0
  %2306 = vmatprep.subr.mxu0 0.0
  %2307 = vmatpush1.msra.mxu0 0.0
  %2308 = vmatprep.subr.mxu0 0.0
  %2309 = vmatpush1.msra.mxu0 %v2284
  %2310 = vmatprep.subr.mxu0 0.0
  %2311 = vmatpush1.msra.mxu0 %v2283
  %2312 = vmatprep.subr.mxu0 0.0
  %2313 = vmatpush1.msra.mxu0 %v2282
  %2314 = vmatprep.subr.mxu0 0.0
  %2315 = vmatpush1.msra.mxu0 %v2281
  %2316 = vmatprep.subr.mxu0 0.0
  %2317 = vmatpush1.msra.mxu0 %v2280
  %2318 = vmatprep.subr.mxu0 0.0
  %2319 = vmatpush1.msra.mxu0 %v2279
  %2320 = vmatprep.subr.mxu0 0.0
  %2321 = vmatpush1.msra.mxu0 %v2278
  %2322 = vmatprep.subr.mxu0 0.0
  %2323 = vmatpush1.msra.mxu0 %v2277
  %2324 = vmatprep.subr.mxu0 0.0
  %2325 = vmatpush2.msra.mxu0 0.0
  %2326 = vmatprep.subr.mxu0 0.0
  %2327 = vmatpush2.msra.mxu0 0.0
  %2328 = vmatprep.subr.mxu0 0.0
  %2329 = vmatpush2.msra.mxu0 0.0
  %2330 = vmatprep.subr.mxu0 0.0
  %2331 = vmatpush2.msra.mxu0 0.0
  %2332 = vmatprep.subr.mxu0 0.0
  %2333 = vmatpush2.msra.mxu0 0.0
  %2334 = vmatprep.subr.mxu0 0.0
  %2335 = vmatpush2.msra.mxu0 0.0
  %2336 = vmatprep.subr.mxu0 0.0
  %2337 = vmatpush2.msra.mxu0 0.0
  %2338 = vmatprep.subr.mxu0 0.0
  %2339 = vmatpush2.msra.mxu0 0.0
  %2340 = vmatprep.subr.mxu0 0.0
  %2341 = vmatpush2.msra.mxu0 0.0
  %2342 = vmatprep.subr.mxu0 0.0
  %2343 = vmatpush2.msra.mxu0 0.0
  %2344 = vmatprep.subr.mxu0 0.0
  %2345 = vmatpush2.msra.mxu0 0.0
  %2346 = vmatprep.subr.mxu0 0.0
  %2347 = vmatpush2.msra.mxu0 0.0
  %2348 = vmatprep.subr.mxu0 0.0
  %2349 = vmatpush2.msra.mxu0 0.0
  %2350 = vmatprep.subr.mxu0 0.0
  %2351 = vmatpush2.msra.mxu0 0.0
  %2352 = vmatprep.subr.mxu0 0.0
  %2353 = vmatpush2.msra.mxu0 0.0
  %2354 = vmatprep.subr.mxu0 0.0
  %2355 = vmatpush2.msra.mxu0 0.0
  %2356 = vmatprep.mubr.f32.mxu0 0.0
  %2357 = vmatmul.mubr.f32.gmra.mxu0 %v2288
  %v2358 = vpop.f32.mrf.mxu0
  %v2359 = vadd.f32 0.0, %v2358
  %v2360 = vpop.f32.mrf.mxu0
  %2361 = vmatprep.mubr.f32.mxu0 0.0
  %2362 = vmatmul.mubr.f32.gmra.mxu0 %v2290
  %v2363 = vpop.f32.mrf.mxu0
  %v2364 = vadd.f32 0.0, %v2363
  %v2365 = vpop.f32.mrf.mxu0
  %2366 = vdwg.mxu0
  %v2367 = vadd.f32 %v2268, %v2359
  %v2368 = vadd.f32 %v2273, %v2364
  %s2369 = scalar_lea.vmem %s7, 192
  %v2370 = vld [vmem:[%s2369] sm:$0xff]
  %v2371 = vld [vmem:[%s2369 + $0x8] sm:$0xff]
  %v2372 = vld [vmem:[%s2369 + $0x10] sm:$0xff]
  %v2373 = vld [vmem:[%s2369 + $0x18] sm:$0xff]
  %v2374 = vld [vmem:[%s2369 + $0x20] sm:$0xff]
  %v2375 = vld [vmem:[%s2369 + $0x28] sm:$0xff]
  %v2376 = vld [vmem:[%s2369 + $0x30] sm:$0xff]
  %v2377 = vld [vmem:[%s2369 + $0x38] sm:$0xff]
  %v2378 = vrot.slane %v2094, 3
  %v2379 = vrot.slane %v2095, 3
  %v2380 = vsel %vm481, %v2378, %v2379
  %v2381 = vsel %vm922, %v2380, 0
  %v2383 = vsel %vm922, %v2379, 0
  %2385 = vmatprep.subr.mxu0 0.0
  %2386 = vmatpush1.msra.mxu0 0.0
  %2387 = vmatprep.subr.mxu0 0.0
  %2388 = vmatpush1.msra.mxu0 0.0
  %2389 = vmatprep.subr.mxu0 0.0
  %2390 = vmatpush1.msra.mxu0 0.0
  %2391 = vmatprep.subr.mxu0 0.0
  %2392 = vmatpush1.msra.mxu0 0.0
  %2393 = vmatprep.subr.mxu0 0.0
  %2394 = vmatpush1.msra.mxu0 0.0
  %2395 = vmatprep.subr.mxu0 0.0
  %2396 = vmatpush1.msra.mxu0 0.0
  %2397 = vmatprep.subr.mxu0 0.0
  %2398 = vmatpush1.msra.mxu0 0.0
  %2399 = vmatprep.subr.mxu0 0.0
  %2400 = vmatpush1.msra.mxu0 0.0
  %2401 = vmatprep.subr.mxu0 0.0
  %2402 = vmatpush1.msra.mxu0 %v2377
  %2403 = vmatprep.subr.mxu0 0.0
  %2404 = vmatpush1.msra.mxu0 %v2376
  %2405 = vmatprep.subr.mxu0 0.0
  %2406 = vmatpush1.msra.mxu0 %v2375
  %2407 = vmatprep.subr.mxu0 0.0
  %2408 = vmatpush1.msra.mxu0 %v2374
  %2409 = vmatprep.subr.mxu0 0.0
  %2410 = vmatpush1.msra.mxu0 %v2373
  %2411 = vmatprep.subr.mxu0 0.0
  %2412 = vmatpush1.msra.mxu0 %v2372
  %2413 = vmatprep.subr.mxu0 0.0
  %2414 = vmatpush1.msra.mxu0 %v2371
  %2415 = vmatprep.subr.mxu0 0.0
  %2416 = vmatpush1.msra.mxu0 %v2370
  %2417 = vmatprep.subr.mxu0 0.0
  %2418 = vmatpush2.msra.mxu0 0.0
  %2419 = vmatprep.subr.mxu0 0.0
  %2420 = vmatpush2.msra.mxu0 0.0
  %2421 = vmatprep.subr.mxu0 0.0
  %2422 = vmatpush2.msra.mxu0 0.0
  %2423 = vmatprep.subr.mxu0 0.0
  %2424 = vmatpush2.msra.mxu0 0.0
  %2425 = vmatprep.subr.mxu0 0.0
  %2426 = vmatpush2.msra.mxu0 0.0
  %2427 = vmatprep.subr.mxu0 0.0
  %2428 = vmatpush2.msra.mxu0 0.0
  %2429 = vmatprep.subr.mxu0 0.0
  %2430 = vmatpush2.msra.mxu0 0.0
  %2431 = vmatprep.subr.mxu0 0.0
  %2432 = vmatpush2.msra.mxu0 0.0
  %2433 = vmatprep.subr.mxu0 0.0
  %2434 = vmatpush2.msra.mxu0 0.0
  %2435 = vmatprep.subr.mxu0 0.0
  %2436 = vmatpush2.msra.mxu0 0.0
  %2437 = vmatprep.subr.mxu0 0.0
  %2438 = vmatpush2.msra.mxu0 0.0
  %2439 = vmatprep.subr.mxu0 0.0
  %2440 = vmatpush2.msra.mxu0 0.0
  %2441 = vmatprep.subr.mxu0 0.0
  %2442 = vmatpush2.msra.mxu0 0.0
  %2443 = vmatprep.subr.mxu0 0.0
  %2444 = vmatpush2.msra.mxu0 0.0
  %2445 = vmatprep.subr.mxu0 0.0
  %2446 = vmatpush2.msra.mxu0 0.0
  %2447 = vmatprep.subr.mxu0 0.0
  %2448 = vmatpush2.msra.mxu0 0.0
  %2449 = vmatprep.mubr.f32.mxu0 0.0
  %2450 = vmatmul.mubr.f32.gmra.mxu0 %v2381
  %v2451 = vpop.f32.mrf.mxu0
  %v2452 = vadd.f32 0.0, %v2451
  %v2453 = vpop.f32.mrf.mxu0
  %2454 = vmatprep.mubr.f32.mxu0 0.0
  %2455 = vmatmul.mubr.f32.gmra.mxu0 %v2383
  %v2456 = vpop.f32.mrf.mxu0
  %v2457 = vadd.f32 0.0, %v2456
  %v2458 = vpop.f32.mrf.mxu0
  %2459 = vdwg.mxu0
  %v2460 = vadd.f32 %v2367, %v2452
  %v2461 = vadd.f32 %v2368, %v2457
  %s2462 = scalar_lea.vmem %s7, 256
  %v2463 = vld [vmem:[%s2462] sm:$0xff]
  %v2464 = vld [vmem:[%s2462 + $0x8] sm:$0xff]
  %v2465 = vld [vmem:[%s2462 + $0x10] sm:$0xff]
  %v2466 = vld [vmem:[%s2462 + $0x18] sm:$0xff]
  %v2467 = vld [vmem:[%s2462 + $0x20] sm:$0xff]
  %v2468 = vld [vmem:[%s2462 + $0x28] sm:$0xff]
  %v2469 = vld [vmem:[%s2462 + $0x30] sm:$0xff]
  %v2470 = vld [vmem:[%s2462 + $0x38] sm:$0xff]
  %v2471 = vrot.slane %v2094, 4
  %v2472 = vrot.slane %v2095, 4
  %v2473 = vsel %vm616, %v2471, %v2472
  %v2474 = vsel %vm922, %v2473, 0
  %v2476 = vsel %vm922, %v2472, 0
  %2478 = vmatprep.subr.mxu0 0.0
  %2479 = vmatpush1.msra.mxu0 0.0
  %2480 = vmatprep.subr.mxu0 0.0
  %2481 = vmatpush1.msra.mxu0 0.0
  %2482 = vmatprep.subr.mxu0 0.0
  %2483 = vmatpush1.msra.mxu0 0.0
  %2484 = vmatprep.subr.mxu0 0.0
  %2485 = vmatpush1.msra.mxu0 0.0
  %2486 = vmatprep.subr.mxu0 0.0
  %2487 = vmatpush1.msra.mxu0 0.0
  %2488 = vmatprep.subr.mxu0 0.0
  %2489 = vmatpush1.msra.mxu0 0.0
  %2490 = vmatprep.subr.mxu0 0.0
  %2491 = vmatpush1.msra.mxu0 0.0
  %2492 = vmatprep.subr.mxu0 0.0
  %2493 = vmatpush1.msra.mxu0 0.0
  %2494 = vmatprep.subr.mxu0 0.0
  %2495 = vmatpush1.msra.mxu0 %v2470
  %2496 = vmatprep.subr.mxu0 0.0
  %2497 = vmatpush1.msra.mxu0 %v2469
  %2498 = vmatprep.subr.mxu0 0.0
  %2499 = vmatpush1.msra.mxu0 %v2468
  %2500 = vmatprep.subr.mxu0 0.0
  %2501 = vmatpush1.msra.mxu0 %v2467
  %2502 = vmatprep.subr.mxu0 0.0
  %2503 = vmatpush1.msra.mxu0 %v2466
  %2504 = vmatprep.subr.mxu0 0.0
  %2505 = vmatpush1.msra.mxu0 %v2465
  %2506 = vmatprep.subr.mxu0 0.0
  %2507 = vmatpush1.msra.mxu0 %v2464
  %2508 = vmatprep.subr.mxu0 0.0
  %2509 = vmatpush1.msra.mxu0 %v2463
  %2510 = vmatprep.subr.mxu0 0.0
  %2511 = vmatpush2.msra.mxu0 0.0
  %2512 = vmatprep.subr.mxu0 0.0
  %2513 = vmatpush2.msra.mxu0 0.0
  %2514 = vmatprep.subr.mxu0 0.0
  %2515 = vmatpush2.msra.mxu0 0.0
  %2516 = vmatprep.subr.mxu0 0.0
  %2517 = vmatpush2.msra.mxu0 0.0
  %2518 = vmatprep.subr.mxu0 0.0
  %2519 = vmatpush2.msra.mxu0 0.0
  %2520 = vmatprep.subr.mxu0 0.0
  %2521 = vmatpush2.msra.mxu0 0.0
  %2522 = vmatprep.subr.mxu0 0.0
  %2523 = vmatpush2.msra.mxu0 0.0
  %2524 = vmatprep.subr.mxu0 0.0
  %2525 = vmatpush2.msra.mxu0 0.0
  %2526 = vmatprep.subr.mxu0 0.0
  %2527 = vmatpush2.msra.mxu0 0.0
  %2528 = vmatprep.subr.mxu0 0.0
  %2529 = vmatpush2.msra.mxu0 0.0
  %2530 = vmatprep.subr.mxu0 0.0
  %2531 = vmatpush2.msra.mxu0 0.0
  %2532 = vmatprep.subr.mxu0 0.0
  %2533 = vmatpush2.msra.mxu0 0.0
  %2534 = vmatprep.subr.mxu0 0.0
  %2535 = vmatpush2.msra.mxu0 0.0
  %2536 = vmatprep.subr.mxu0 0.0
  %2537 = vmatpush2.msra.mxu0 0.0
  %2538 = vmatprep.subr.mxu0 0.0
  %2539 = vmatpush2.msra.mxu0 0.0
  %2540 = vmatprep.subr.mxu0 0.0
  %2541 = vmatpush2.msra.mxu0 0.0
  %2542 = vmatprep.mubr.f32.mxu0 0.0
  %2543 = vmatmul.mubr.f32.gmra.mxu0 %v2474
  %v2544 = vpop.f32.mrf.mxu0
  %v2545 = vadd.f32 0.0, %v2544
  %v2546 = vpop.f32.mrf.mxu0
  %2547 = vmatprep.mubr.f32.mxu0 0.0
  %2548 = vmatmul.mubr.f32.gmra.mxu0 %v2476
  %v2549 = vpop.f32.mrf.mxu0
  %v2550 = vadd.f32 0.0, %v2549
  %v2551 = vpop.f32.mrf.mxu0
  %2552 = vdwg.mxu0
  %v2553 = vadd.f32 %v2460, %v2545
  %v2554 = vadd.f32 %v2461, %v2550
  %v2555 = vmax.f32 %v2553, 0.0
  %v2556 = vmax.f32 %v2554, 0.0
  %v2557 = vld [vmem:[%s8] sm:$0xff]
  %v2558 = vld [vmem:[%s8 + $0x8] sm:$0xff]
  %v2559 = vld [vmem:[%s8 + $0x10] sm:$0xff]
  %v2560 = vld [vmem:[%s8 + $0x18] sm:$0xff]
  %v2561 = vld [vmem:[%s8 + $0x20] sm:$0xff]
  %v2562 = vld [vmem:[%s8 + $0x28] sm:$0xff]
  %v2563 = vld [vmem:[%s8 + $0x30] sm:$0xff]
  %v2564 = vld [vmem:[%s8 + $0x38] sm:$0xff]
  %v2565 = vld [vmem:[%s8 + $0x40] sm:$0xff]
  %v2566 = vld [vmem:[%s8 + $0x48] sm:$0xff]
  %v2567 = vld [vmem:[%s8 + $0x50] sm:$0xff]
  %v2568 = vld [vmem:[%s8 + $0x58] sm:$0xff]
  %v2569 = vld [vmem:[%s8 + $0x60] sm:$0xff]
  %v2570 = vld [vmem:[%s8 + $0x68] sm:$0xff]
  %v2571 = vld [vmem:[%s8 + $0x70] sm:$0xff]
  %v2572 = vld [vmem:[%s8 + $0x78] sm:$0xff]
  %v2573 = vld [vmem:[%s8 + $0x80] sm:$0xff]
  %v2574 = vld [vmem:[%s8 + $0x88] sm:$0xff]
  %v2575 = vld [vmem:[%s8 + $0x90] sm:$0xff]
  %v2576 = vld [vmem:[%s8 + $0x98] sm:$0xff]
  %vm2577 = vcmask 408576
  %v2579 = vsel %vm2577, %v2557, 0
  %v2582 = vsel %vm2577, %v2558, 0
  %v2585 = vsel %vm2577, %v2559, 0
  %v2588 = vsel %vm2577, %v2560, 0
  %v2591 = vsel %vm2577, %v2561, 0
  %v2594 = vsel %vm2577, %v2562, 0
  %v2597 = vsel %vm2577, %v2563, 0
  %v2600 = vsel %vm2577, %v2564, 0
  %v2603 = vsel %vm2577, %v2565, 0
  %v2606 = vsel %vm2577, %v2566, 0
  %v2609 = vsel %vm2577, %v2567, 0
  %v2612 = vsel %vm2577, %v2568, 0
  %v2615 = vsel %vm2577, %v2569, 0
  %v2618 = vsel %vm2577, %v2570, 0
  %v2621 = vsel %vm2577, %v2571, 0
  %v2624 = vsel %vm2577, %v2572, 0
  %v2627 = vsel %vm2577, %v2573, 0
  %v2630 = vsel %vm2577, %v2574, 0
  %v2633 = vsel %vm2577, %v2575, 0
  %v2636 = vsel %vm2577, %v2576, 0
  %vm2638 = vcmask 1041408
  %v2640 = vsel %vm2638, %v88, 0
  %2642 = vmatprep.subr.mxu0 0.0
  %2643 = vmatpush1.msra.mxu0 0.0
  %2644 = vmatprep.subr.mxu0 0.0
  %2645 = vmatpush1.msra.mxu0 0.0
  %2646 = vmatprep.subr.mxu0 0.0
  %2647 = vmatpush1.msra.mxu0 0.0
  %2648 = vmatprep.subr.mxu0 0.0
  %2649 = vmatpush1.msra.mxu0 0.0
  %2650 = vmatprep.subr.mxu0 0.0
  %2651 = vmatpush1.msra.mxu0 0.0
  %2652 = vmatprep.subr.mxu0 0.0
  %2653 = vmatpush1.msra.mxu0 0.0
  %2654 = vmatprep.subr.mxu0 0.0
  %2655 = vmatpush1.msra.mxu0 0.0
  %2656 = vmatprep.subr.mxu0 0.0
  %2657 = vmatpush1.msra.mxu0 0.0
  %2658 = vmatprep.subr.mxu0 0.0
  %2659 = vmatpush1.msra.mxu0 0.0
  %2660 = vmatprep.subr.mxu0 0.0
  %2661 = vmatpush1.msra.mxu0 %v2640
  %2662 = vmatprep.subr.mxu0 0.0
  %2663 = vmatpush1.msra.mxu0 %v87
  %2664 = vmatprep.subr.mxu0 0.0
  %2665 = vmatpush1.msra.mxu0 %v86
  %2666 = vmatprep.subr.mxu0 0.0
  %2667 = vmatpush1.msra.mxu0 %v85
  %2668 = vmatprep.subr.mxu0 0.0
  %2669 = vmatpush1.msra.mxu0 %v84
  %2670 = vmatprep.subr.mxu0 0.0
  %2671 = vmatpush1.msra.mxu0 %v83
  %2672 = vmatprep.subr.mxu0 0.0
  %2673 = vmatpush1.msra.mxu0 %v82
  %2674 = vmatprep.subr.mxu0 0.0
  %2675 = vmatpush2.msra.mxu0 0.0
  %2676 = vmatprep.subr.mxu0 0.0
  %2677 = vmatpush2.msra.mxu0 0.0
  %2678 = vmatprep.subr.mxu0 0.0
  %2679 = vmatpush2.msra.mxu0 0.0
  %2680 = vmatprep.subr.mxu0 0.0
  %2681 = vmatpush2.msra.mxu0 0.0
  %2682 = vmatprep.subr.mxu0 0.0
  %2683 = vmatpush2.msra.mxu0 0.0
  %2684 = vmatprep.subr.mxu0 0.0
  %2685 = vmatpush2.msra.mxu0 0.0
  %2686 = vmatprep.subr.mxu0 0.0
  %2687 = vmatpush2.msra.mxu0 0.0
  %2688 = vmatprep.subr.mxu0 0.0
  %2689 = vmatpush2.msra.mxu0 0.0
  %2690 = vmatprep.subr.mxu0 0.0
  %2691 = vmatpush2.msra.mxu0 0.0
  %2692 = vmatprep.subr.mxu0 0.0
  %2693 = vmatpush2.msra.mxu0 0.0
  %2694 = vmatprep.subr.mxu0 0.0
  %2695 = vmatpush2.msra.mxu0 0.0
  %2696 = vmatprep.subr.mxu0 0.0
  %2697 = vmatpush2.msra.mxu0 0.0
  %2698 = vmatprep.subr.mxu0 0.0
  %2699 = vmatpush2.msra.mxu0 0.0
  %2700 = vmatprep.subr.mxu0 0.0
  %2701 = vmatpush2.msra.mxu0 0.0
  %2702 = vmatprep.subr.mxu0 0.0
  %2703 = vmatpush2.msra.mxu0 0.0
  %2704 = vmatprep.subr.mxu0 0.0
  %2705 = vmatpush2.msra.mxu0 0.0
  %2706 = vmatprep.mubr.f32.mxu0 0.0
  %2707 = vmatmul.mubr.f32.gmra.mxu0 %v2579
  %v2708 = vpop.f32.mrf.mxu0
  %v2709 = vadd.f32 0.0, %v2708
  %v2710 = vpop.f32.mrf.mxu0
  %2711 = vmatprep.mubr.f32.mxu0 0.0
  %2712 = vmatmul.mubr.f32.gmra.mxu0 %v2582
  %v2713 = vpop.f32.mrf.mxu0
  %v2714 = vadd.f32 0.0, %v2713
  %v2715 = vpop.f32.mrf.mxu0
  %2716 = vmatprep.mubr.f32.mxu0 0.0
  %2717 = vmatmul.mubr.f32.gmra.mxu0 %v2585
  %v2718 = vpop.f32.mrf.mxu0
  %v2719 = vadd.f32 0.0, %v2718
  %v2720 = vpop.f32.mrf.mxu0
  %2721 = vmatprep.mubr.f32.mxu0 0.0
  %2722 = vmatmul.mubr.f32.gmra.mxu0 %v2588
  %v2723 = vpop.f32.mrf.mxu0
  %v2724 = vadd.f32 0.0, %v2723
  %v2725 = vpop.f32.mrf.mxu0
  %2726 = vmatprep.mubr.f32.mxu0 0.0
  %2727 = vmatmul.mubr.f32.gmra.mxu0 %v2591
  %v2728 = vpop.f32.mrf.mxu0
  %v2729 = vadd.f32 0.0, %v2728
  %v2730 = vpop.f32.mrf.mxu0
  %2731 = vmatprep.mubr.f32.mxu0 0.0
  %2732 = vmatmul.mubr.f32.gmra.mxu0 %v2594
  %v2733 = vpop.f32.mrf.mxu0
  %v2734 = vadd.f32 0.0, %v2733
  %v2735 = vpop.f32.mrf.mxu0
  %2736 = vmatprep.mubr.f32.mxu0 0.0
  %2737 = vmatmul.mubr.f32.gmra.mxu0 %v2597
  %v2738 = vpop.f32.mrf.mxu0
  %v2739 = vadd.f32 0.0, %v2738
  %v2740 = vpop.f32.mrf.mxu0
  %2741 = vmatprep.mubr.f32.mxu0 0.0
  %2742 = vmatmul.mubr.f32.gmra.mxu0 %v2600
  %v2743 = vpop.f32.mrf.mxu0
  %v2744 = vadd.f32 0.0, %v2743
  %v2745 = vpop.f32.mrf.mxu0
  %2746 = vmatprep.mubr.f32.mxu0 0.0
  %2747 = vmatmul.mubr.f32.gmra.mxu0 %v2603
  %v2748 = vpop.f32.mrf.mxu0
  %v2749 = vadd.f32 0.0, %v2748
  %v2750 = vpop.f32.mrf.mxu0
  %2751 = vmatprep.mubr.f32.mxu0 0.0
  %2752 = vmatmul.mubr.f32.gmra.mxu0 %v2606
  %v2753 = vpop.f32.mrf.mxu0
  %v2754 = vadd.f32 0.0, %v2753
  %v2755 = vpop.f32.mrf.mxu0
  %2756 = vmatprep.mubr.f32.mxu0 0.0
  %2757 = vmatmul.mubr.f32.gmra.mxu0 %v2609
  %v2758 = vpop.f32.mrf.mxu0
  %v2759 = vadd.f32 0.0, %v2758
  %v2760 = vpop.f32.mrf.mxu0
  %2761 = vmatprep.mubr.f32.mxu0 0.0
  %2762 = vmatmul.mubr.f32.gmra.mxu0 %v2612
  %v2763 = vpop.f32.mrf.mxu0
  %v2764 = vadd.f32 0.0, %v2763
  %v2765 = vpop.f32.mrf.mxu0
  %2766 = vmatprep.mubr.f32.mxu0 0.0
  %2767 = vmatmul.mubr.f32.gmra.mxu0 %v2615
  %v2768 = vpop.f32.mrf.mxu0
  %v2769 = vadd.f32 0.0, %v2768
  %v2770 = vpop.f32.mrf.mxu0
  %2771 = vmatprep.mubr.f32.mxu0 0.0
  %2772 = vmatmul.mubr.f32.gmra.mxu0 %v2618
  %v2773 = vpop.f32.mrf.mxu0
  %v2774 = vadd.f32 0.0, %v2773
  %v2775 = vpop.f32.mrf.mxu0
  %2776 = vmatprep.mubr.f32.mxu0 0.0
  %2777 = vmatmul.mubr.f32.gmra.mxu0 %v2621
  %v2778 = vpop.f32.mrf.mxu0
  %v2779 = vadd.f32 0.0, %v2778
  %v2780 = vpop.f32.mrf.mxu0
  %2781 = vmatprep.mubr.f32.mxu0 0.0
  %2782 = vmatmul.mubr.f32.gmra.mxu0 %v2624
  %v2783 = vpop.f32.mrf.mxu0
  %v2784 = vadd.f32 0.0, %v2783
  %v2785 = vpop.f32.mrf.mxu0
  %2786 = vmatprep.mubr.f32.mxu0 0.0
  %2787 = vmatmul.mubr.f32.gmra.mxu0 %v2627
  %v2788 = vpop.f32.mrf.mxu0
  %v2789 = vadd.f32 0.0, %v2788
  %v2790 = vpop.f32.mrf.mxu0
  %2791 = vmatprep.mubr.f32.mxu0 0.0
  %2792 = vmatmul.mubr.f32.gmra.mxu0 %v2630
  %v2793 = vpop.f32.mrf.mxu0
  %v2794 = vadd.f32 0.0, %v2793
  %v2795 = vpop.f32.mrf.mxu0
  %2796 = vmatprep.mubr.f32.mxu0 0.0
  %2797 = vmatmul.mubr.f32.gmra.mxu0 %v2633
  %v2798 = vpop.f32.mrf.mxu0
  %v2799 = vadd.f32 0.0, %v2798
  %v2800 = vpop.f32.mrf.mxu0
  %2801 = vmatprep.mubr.f32.mxu0 0.0
  %2802 = vmatmul.mubr.f32.gmra.mxu0 %v2636
  %v2803 = vpop.f32.mrf.mxu0
  %v2804 = vadd.f32 0.0, %v2803
  %v2805 = vpop.f32.mrf.mxu0
  %2806 = vdwg.mxu0
  %v2807 = vld [vmem:[%s11] sm:$0xff]
  %v2808 = vld [vmem:[%s11 + $0x8] sm:$0x3]
  %v2810 = vsel %vm2577, %v2807, 0
  %v2813 = vsel %vm2577, %v2808, 0
  %2815 = vmatprep.subr.mxu0 0.0
  %2816 = vmatpush1.msra.mxu0 0.0
  %2817 = vmatprep.subr.mxu0 0.0
  %2818 = vmatpush1.msra.mxu0 0.0
  %2819 = vmatprep.subr.mxu0 0.0
  %2820 = vmatpush1.msra.mxu0 0.0
  %2821 = vmatprep.subr.mxu0 0.0
  %2822 = vmatpush1.msra.mxu0 0.0
  %2823 = vmatprep.subr.mxu0 0.0
  %2824 = vmatpush1.msra.mxu0 0.0
  %2825 = vmatprep.subr.mxu0 0.0
  %2826 = vmatpush1.msra.mxu0 0.0
  %2827 = vmatprep.subr.mxu0 0.0
  %2828 = vmatpush1.msra.mxu0 0.0
  %2829 = vmatprep.subr.mxu0 0.0
  %2830 = vmatpush1.msra.mxu0 0.0
  %2831 = vmatprep.subr.mxu0 0.0
  %2832 = vmatpush1.msra.mxu0 0.0
  %2833 = vmatprep.subr.mxu0 0.0
  %2834 = vmatpush1.msra.mxu0 %v2640
  %2835 = vmatprep.subr.mxu0 0.0
  %2836 = vmatpush1.msra.mxu0 %v87
  %2837 = vmatprep.subr.mxu0 0.0
  %2838 = vmatpush1.msra.mxu0 %v86
  %2839 = vmatprep.subr.mxu0 0.0
  %2840 = vmatpush1.msra.mxu0 %v85
  %2841 = vmatprep.subr.mxu0 0.0
  %2842 = vmatpush1.msra.mxu0 %v84
  %2843 = vmatprep.subr.mxu0 0.0
  %2844 = vmatpush1.msra.mxu0 %v83
  %2845 = vmatprep.subr.mxu0 0.0
  %2846 = vmatpush1.msra.mxu0 %v82
  %2847 = vmatprep.subr.mxu0 0.0
  %2848 = vmatpush2.msra.mxu0 0.0
  %2849 = vmatprep.subr.mxu0 0.0
  %2850 = vmatpush2.msra.mxu0 0.0
  %2851 = vmatprep.subr.mxu0 0.0
  %2852 = vmatpush2.msra.mxu0 0.0
  %2853 = vmatprep.subr.mxu0 0.0
  %2854 = vmatpush2.msra.mxu0 0.0
  %2855 = vmatprep.subr.mxu0 0.0
  %2856 = vmatpush2.msra.mxu0 0.0
  %2857 = vmatprep.subr.mxu0 0.0
  %2858 = vmatpush2.msra.mxu0 0.0
  %2859 = vmatprep.subr.mxu0 0.0
  %2860 = vmatpush2.msra.mxu0 0.0
  %2861 = vmatprep.subr.mxu0 0.0
  %2862 = vmatpush2.msra.mxu0 0.0
  %2863 = vmatprep.subr.mxu0 0.0
  %2864 = vmatpush2.msra.mxu0 0.0
  %2865 = vmatprep.subr.mxu0 0.0
  %2866 = vmatpush2.msra.mxu0 0.0
  %2867 = vmatprep.subr.mxu0 0.0
  %2868 = vmatpush2.msra.mxu0 0.0
  %2869 = vmatprep.subr.mxu0 0.0
  %2870 = vmatpush2.msra.mxu0 0.0
  %2871 = vmatprep.subr.mxu0 0.0
  %2872 = vmatpush2.msra.mxu0 0.0
  %2873 = vmatprep.subr.mxu0 0.0
  %2874 = vmatpush2.msra.mxu0 0.0
  %2875 = vmatprep.subr.mxu0 0.0
  %2876 = vmatpush2.msra.mxu0 0.0
  %2877 = vmatprep.subr.mxu0 0.0
  %2878 = vmatpush2.msra.mxu0 0.0
  %2879 = vmatprep.mubr.f32.mxu0 0.0
  %2880 = vmatmul.mubr.f32.gmra.mxu0 %v2810
  %v2881 = vpop.f32.mrf.mxu0
  %v2882 = vadd.f32 0.0, %v2881
  %v2883 = vpop.f32.mrf.mxu0
  %2884 = vmatprep.mubr.f32.mxu0 0.0
  %2885 = vmatmul.mubr.f32.gmra.mxu0 %v2813
  %v2886 = vpop.f32.mrf.mxu0
  %v2887 = vadd.f32 0.0, %v2886
  %v2888 = vpop.f32.mrf.mxu0
  %2889 = vdwg.mxu0
  %v2890 = vld [vmem:[%s9] sm:$0xff]
  %v2891 = vld [vmem:[%s9 + $0x8] sm:$0xff]
  %v2892 = vld [vmem:[%s9 + $0x10] sm:$0xff]
  %v2893 = vld [vmem:[%s9 + $0x18] sm:$0xff]
  %v2894 = vld [vmem:[%s10] sm:$0xff]
  %v2895 = vld [vmem:[%s10 + $0x8] sm:$0xff]
  %v2896 = vld [vmem:[%s10 + $0x10] sm:$0x3]
  %v2897 = vld [vmem:[%s10 + $0x18] sm:$0x3]
  %v2898 = vlaneseq
  %v2899 = vand.u32 %v2898, 127
  %v2901 = vsel %vm922, %v2555, 0
  %v2904 = vsel %vm922, %v1528, 0
  %v2907 = vsel %vm922, %v1529, 0
  %2909 = vmatprep.subr.mxu0 0.0
  %2910 = vmatpush1.xpose.msra.mxu0 0.0
  %2911 = vmatprep.subr.mxu0 0.0
  %2912 = vmatpush1.xpose.msra.mxu0 0.0
  %2913 = vmatprep.subr.mxu0 0.0
  %2914 = vmatpush1.xpose.msra.mxu0 0.0
  %2915 = vmatprep.subr.mxu0 0.0
  %2916 = vmatpush1.xpose.msra.mxu0 0.0
  %2917 = vmatprep.subr.mxu0 0.0
  %2918 = vmatpush1.xpose.msra.mxu0 0.0
  %2919 = vmatprep.subr.mxu0 0.0
  %2920 = vmatpush1.xpose.msra.mxu0 0.0
  %2921 = vmatprep.subr.mxu0 0.0
  %2922 = vmatpush1.xpose.msra.mxu0 0.0
  %2923 = vmatprep.subr.mxu0 0.0
  %2924 = vmatpush1.xpose.msra.mxu0 0.0
  %2925 = vmatprep.subr.mxu0 0.0
  %2926 = vmatpush1.xpose.msra.mxu0 0.0
  %2927 = vmatprep.subr.mxu0 0.0
  %2928 = vmatpush1.xpose.msra.mxu0 0.0
  %2929 = vmatprep.subr.mxu0 0.0
  %2930 = vmatpush1.xpose.msra.mxu0 0.0
  %2931 = vmatprep.subr.mxu0 0.0
  %2932 = vmatpush1.xpose.msra.mxu0 0.0
  %2933 = vmatprep.subr.mxu0 0.0
  %2934 = vmatpush1.xpose.msra.mxu0 0.0
  %2935 = vmatprep.subr.mxu0 0.0
  %2936 = vmatpush1.xpose.msra.mxu0 0.0
  %2937 = vmatprep.subr.mxu0 0.0
  %2938 = vmatpush1.xpose.msra.mxu0 %v2907
  %2939 = vmatprep.subr.mxu0 0.0
  %2940 = vmatpush1.xpose.msra.mxu0 %v2904
  %2941 = vmatprep.subr.mxu0 0.0
  %2942 = vmatpush2.xpose.msra.mxu0 0.0
  %2943 = vmatprep.subr.mxu0 0.0
  %2944 = vmatpush2.xpose.msra.mxu0 0.0
  %2945 = vmatprep.subr.mxu0 0.0
  %2946 = vmatpush2.xpose.msra.mxu0 0.0
  %2947 = vmatprep.subr.mxu0 0.0
  %2948 = vmatpush2.xpose.msra.mxu0 0.0
  %2949 = vmatprep.subr.mxu0 0.0
  %2950 = vmatpush2.xpose.msra.mxu0 0.0
  %2951 = vmatprep.subr.mxu0 0.0
  %2952 = vmatpush2.xpose.msra.mxu0 0.0
  %2953 = vmatprep.subr.mxu0 0.0
  %2954 = vmatpush2.xpose.msra.mxu0 0.0
  %2955 = vmatprep.subr.mxu0 0.0
  %2956 = vmatpush2.xpose.msra.mxu0 0.0
  %2957 = vmatprep.subr.mxu0 0.0
  %2958 = vmatpush2.xpose.msra.mxu0 0.0
  %2959 = vmatprep.subr.mxu0 0.0
  %2960 = vmatpush2.xpose.msra.mxu0 0.0
  %2961 = vmatprep.subr.mxu0 0.0
  %2962 = vmatpush2.xpose.msra.mxu0 0.0
  %2963 = vmatprep.subr.mxu0 0.0
  %2964 = vmatpush2.xpose.msra.mxu0 0.0
  %2965 = vmatprep.subr.mxu0 0.0
  %2966 = vmatpush2.xpose.msra.mxu0 0.0
  %2967 = vmatprep.subr.mxu0 0.0
  %2968 = vmatpush2.xpose.msra.mxu0 0.0
  %2969 = vmatprep.subr.mxu0 0.0
  %2970 = vmatpush2.xpose.msra.mxu0 0.0
  %2971 = vmatprep.subr.mxu0 0.0
  %2972 = vmatpush2.xpose.msra.mxu0 0.0
  %2973 = vmatprep.mubr.f32.mxu0 0.0
  %2974 = vmatmul.mubr.f32.gmra.mxu0 %v2901
  %v2975 = vpop.f32.mrf.mxu0
  %v2976 = vadd.f32 1e-15, %v2975
  %v2977 = vpop.f32.mrf.mxu0
  %2978 = vdwg.mxu0
  %vm2979 = vcmask 122880
  %v2980 = vsel %vm2979, %v2976, 0.0
  %2981 = vadd.xlane.f32.xlu0 %v2980
  %v2982 = vpop.xlane.xlu0 %2981
  %v2983 = vrcp.pop %v2982
  %v2984 = vmul.f32 %v2976, %v2983
  %v2985 = vstv %s89
  %v2986 = vmul.f32 %v2984, %v2985
  %vm2987 = vcmask 130048
  %v2989 = vsel %vm2987, %v2986, 0
  %2991 = vmatprep.subr.mxu0 0.0
  %2992 = vmatpush1.msra.mxu0 0.0
  %2993 = vmatprep.subr.mxu0 0.0
  %2994 = vmatpush1.msra.mxu0 0.0
  %2995 = vmatprep.subr.mxu0 0.0
  %2996 = vmatpush1.msra.mxu0 0.0
  %2997 = vmatprep.subr.mxu0 0.0
  %2998 = vmatpush1.msra.mxu0 0.0
  %2999 = vmatprep.subr.mxu0 0.0
  %3000 = vmatpush1.msra.mxu0 0.0
  %3001 = vmatprep.subr.mxu0 0.0
  %3002 = vmatpush1.msra.mxu0 0.0
  %3003 = vmatprep.subr.mxu0 0.0
  %3004 = vmatpush1.msra.mxu0 0.0
  %3005 = vmatprep.subr.mxu0 0.0
  %3006 = vmatpush1.msra.mxu0 0.0
  %3007 = vmatprep.subr.mxu0 0.0
  %3008 = vmatpush1.msra.mxu0 0.0
  %3009 = vmatprep.subr.mxu0 0.0
  %3010 = vmatpush1.msra.mxu0 0.0
  %3011 = vmatprep.subr.mxu0 0.0
  %3012 = vmatpush1.msra.mxu0 0.0
  %3013 = vmatprep.subr.mxu0 0.0
  %3014 = vmatpush1.msra.mxu0 0.0
  %3015 = vmatprep.subr.mxu0 0.0
  %3016 = vmatpush1.msra.mxu0 0.0
  %3017 = vmatprep.subr.mxu0 0.0
  %3018 = vmatpush1.msra.mxu0 0.0
  %3019 = vmatprep.subr.mxu0 %v2893
  %3020 = vmatpush1.msra.mxu0 %v2892
  %3021 = vmatprep.subr.mxu0 %v2891
  %3022 = vmatpush1.msra.mxu0 %v2890
  %3023 = vmatprep.subr.mxu0 0.0
  %3024 = vmatpush2.msra.mxu0 0.0
  %3025 = vmatprep.subr.mxu0 0.0
  %3026 = vmatpush2.msra.mxu0 0.0
  %3027 = vmatprep.subr.mxu0 0.0
  %3028 = vmatpush2.msra.mxu0 0.0
  %3029 = vmatprep.subr.mxu0 0.0
  %3030 = vmatpush2.msra.mxu0 0.0
  %3031 = vmatprep.subr.mxu0 0.0
  %3032 = vmatpush2.msra.mxu0 0.0
  %3033 = vmatprep.subr.mxu0 0.0
  %3034 = vmatpush2.msra.mxu0 0.0
  %3035 = vmatprep.subr.mxu0 0.0
  %3036 = vmatpush2.msra.mxu0 0.0
  %3037 = vmatprep.subr.mxu0 0.0
  %3038 = vmatpush2.msra.mxu0 0.0
  %3039 = vmatprep.subr.mxu0 0.0
  %3040 = vmatpush2.msra.mxu0 0.0
  %3041 = vmatprep.subr.mxu0 0.0
  %3042 = vmatpush2.msra.mxu0 0.0
  %3043 = vmatprep.subr.mxu0 0.0
  %3044 = vmatpush2.msra.mxu0 0.0
  %3045 = vmatprep.subr.mxu0 0.0
  %3046 = vmatpush2.msra.mxu0 0.0
  %3047 = vmatprep.subr.mxu0 0.0
  %3048 = vmatpush2.msra.mxu0 0.0
  %3049 = vmatprep.subr.mxu0 0.0
  %3050 = vmatpush2.msra.mxu0 0.0
  %3051 = vmatprep.subr.mxu0 0.0
  %3052 = vmatpush2.msra.mxu0 0.0
  %3053 = vmatprep.subr.mxu0 0.0
  %3054 = vmatpush2.msra.mxu0 0.0
  %3055 = vmatprep.mubr.f32.mxu0 0.0
  %3056 = vmatmul.mubr.f32.gmra.mxu0 %v2989
  %v3057 = vpop.f32.mrf.mxu0
  %v3058 = vadd.f32 0.0, %v3057
  %v3059 = vpop.f32.mrf.mxu0
  %v3060 = vadd.f32 0.0, %v3059
  %3061 = vdwg.mxu0
  %v3062 = vlaneseq
  %v3063 = vshrl.u32 %v3062, 7
  %v3064 = vsub.s32 0, %v3063
  %v3065 = vrot.slane %v3058, %v3064
  %v3066 = vlaneseq
  %v3067 = vshrl.u32 %v3066, 7
  %v3068 = vsub.s32 0, %v3067
  %v3069 = vrot.slane %v3060, %v3068
  %v3070 = vmul.f32 %v2894, %v3065
  %v3071 = vmul.f32 %v2895, %v3069
  %v3072 = vmul.f32 %v2896, %v3065
  %v3073 = vmul.f32 %v2897, %v3069
  %vm3074 = vcmask 261120
  %v3076 = vsel %vm3074, %v3071, 0
  %v3079 = vsel %vm3074, %v3073, 0
  %3081 = vmatprep.subr.mxu0 0.0
  %3082 = vmatpush1.msra.mxu0 %v2784
  %3083 = vmatprep.subr.mxu0 0.0
  %3084 = vmatpush1.msra.mxu0 %v2779
  %3085 = vmatprep.subr.mxu0 0.0
  %3086 = vmatpush1.msra.mxu0 %v2774
  %3087 = vmatprep.subr.mxu0 0.0
  %3088 = vmatpush1.msra.mxu0 %v2769
  %3089 = vmatprep.subr.mxu0 0.0
  %3090 = vmatpush1.msra.mxu0 %v2764
  %3091 = vmatprep.subr.mxu0 0.0
  %3092 = vmatpush1.msra.mxu0 %v2759
  %3093 = vmatprep.subr.mxu0 0.0
  %3094 = vmatpush1.msra.mxu0 %v2754
  %3095 = vmatprep.subr.mxu0 0.0
  %3096 = vmatpush1.msra.mxu0 %v2749
  %3097 = vmatprep.subr.mxu0 0.0
  %3098 = vmatpush1.msra.mxu0 %v2744
  %3099 = vmatprep.subr.mxu0 0.0
  %3100 = vmatpush1.msra.mxu0 %v2739
  %3101 = vmatprep.subr.mxu0 0.0
  %3102 = vmatpush1.msra.mxu0 %v2734
  %3103 = vmatprep.subr.mxu0 0.0
  %3104 = vmatpush1.msra.mxu0 %v2729
  %3105 = vmatprep.subr.mxu0 0.0
  %3106 = vmatpush1.msra.mxu0 %v2724
  %3107 = vmatprep.subr.mxu0 0.0
  %3108 = vmatpush1.msra.mxu0 %v2719
  %3109 = vmatprep.subr.mxu0 0.0
  %3110 = vmatpush1.msra.mxu0 %v2714
  %3111 = vmatprep.subr.mxu0 0.0
  %3112 = vmatpush1.msra.mxu0 %v2709
  %3113 = vmatprep.subr.mxu0 0.0
  %3114 = vmatpush2.msra.mxu0 0.0
  %3115 = vmatprep.subr.mxu0 0.0
  %3116 = vmatpush2.msra.mxu0 0.0
  %3117 = vmatprep.subr.mxu0 0.0
  %3118 = vmatpush2.msra.mxu0 0.0
  %3119 = vmatprep.subr.mxu0 0.0
  %3120 = vmatpush2.msra.mxu0 0.0
  %3121 = vmatprep.subr.mxu0 0.0
  %3122 = vmatpush2.msra.mxu0 0.0
  %3123 = vmatprep.subr.mxu0 0.0
  %3124 = vmatpush2.msra.mxu0 0.0
  %3125 = vmatprep.subr.mxu0 0.0
  %3126 = vmatpush2.msra.mxu0 0.0
  %3127 = vmatprep.subr.mxu0 0.0
  %3128 = vmatpush2.msra.mxu0 0.0
  %3129 = vmatprep.subr.mxu0 0.0
  %3130 = vmatpush2.msra.mxu0 0.0
  %3131 = vmatprep.subr.mxu0 0.0
  %3132 = vmatpush2.msra.mxu0 0.0
  %3133 = vmatprep.subr.mxu0 0.0
  %3134 = vmatpush2.msra.mxu0 0.0
  %3135 = vmatprep.subr.mxu0 0.0
  %3136 = vmatpush2.msra.mxu0 0.0
  %3137 = vmatprep.subr.mxu0 0.0
  %3138 = vmatpush2.msra.mxu0 %v2804
  %3139 = vmatprep.subr.mxu0 0.0
  %3140 = vmatpush2.msra.mxu0 %v2799
  %3141 = vmatprep.subr.mxu0 0.0
  %3142 = vmatpush2.msra.mxu0 %v2794
  %3143 = vmatprep.subr.mxu0 0.0
  %3144 = vmatpush2.msra.mxu0 %v2789
  %3145 = vmatprep.mubr.f32.mxu0 %v3076
  %3146 = vmatmul.mubr.f32.gmra.mxu0 %v3070
  %v3147 = vpop.f32.mrf.mxu0
  %v3148 = vadd.f32 0.0, %v3147
  %v3149 = vpop.f32.mrf.mxu0
  %3150 = vmatprep.mubr.f32.mxu0 %v3079
  %3151 = vmatmul.mubr.f32.gmra.mxu0 %v3072
  %v3152 = vpop.f32.mrf.mxu0
  %v3153 = vadd.f32 0.0, %v3152
  %v3154 = vpop.f32.mrf.mxu0
  %3155 = vdwg.mxu0
  %v3157 = vrot.slane %v2556, 2
  %v3161 = vrot.slane %v1530, 1
  %v3162 = vrot.slane %v1531, 1
  %v3163 = vsel %vm107, %v3161, %v3162
  %v3164 = vrot.slane %v1532, 1
  %v3165 = vsel %vm107, %v3162, %v3164
  %v3166 = vsel %vm922, %v3157, 0
  %v3168 = vsel %vm922, %v3163, 0
  %v3170 = vsel %vm922, %v3165, 0
  %3172 = vmatprep.subr.mxu0 0.0
  %3173 = vmatpush1.xpose.msra.mxu0 0.0
  %3174 = vmatprep.subr.mxu0 0.0
  %3175 = vmatpush1.xpose.msra.mxu0 0.0
  %3176 = vmatprep.subr.mxu0 0.0
  %3177 = vmatpush1.xpose.msra.mxu0 0.0
  %3178 = vmatprep.subr.mxu0 0.0
  %3179 = vmatpush1.xpose.msra.mxu0 0.0
  %3180 = vmatprep.subr.mxu0 0.0
  %3181 = vmatpush1.xpose.msra.mxu0 0.0
  %3182 = vmatprep.subr.mxu0 0.0
  %3183 = vmatpush1.xpose.msra.mxu0 0.0
  %3184 = vmatprep.subr.mxu0 0.0
  %3185 = vmatpush1.xpose.msra.mxu0 0.0
  %3186 = vmatprep.subr.mxu0 0.0
  %3187 = vmatpush1.xpose.msra.mxu0 0.0
  %3188 = vmatprep.subr.mxu0 0.0
  %3189 = vmatpush1.xpose.msra.mxu0 0.0
  %3190 = vmatprep.subr.mxu0 0.0
  %3191 = vmatpush1.xpose.msra.mxu0 0.0
  %3192 = vmatprep.subr.mxu0 0.0
  %3193 = vmatpush1.xpose.msra.mxu0 0.0
  %3194 = vmatprep.subr.mxu0 0.0
  %3195 = vmatpush1.xpose.msra.mxu0 0.0
  %3196 = vmatprep.subr.mxu0 0.0
  %3197 = vmatpush1.xpose.msra.mxu0 0.0
  %3198 = vmatprep.subr.mxu0 0.0
  %3199 = vmatpush1.xpose.msra.mxu0 0.0
  %3200 = vmatprep.subr.mxu0 0.0
  %3201 = vmatpush1.xpose.msra.mxu0 %v3170
  %3202 = vmatprep.subr.mxu0 0.0
  %3203 = vmatpush1.xpose.msra.mxu0 %v3168
  %3204 = vmatprep.subr.mxu0 0.0
  %3205 = vmatpush2.xpose.msra.mxu0 0.0
  %3206 = vmatprep.subr.mxu0 0.0
  %3207 = vmatpush2.xpose.msra.mxu0 0.0
  %3208 = vmatprep.subr.mxu0 0.0
  %3209 = vmatpush2.xpose.msra.mxu0 0.0
  %3210 = vmatprep.subr.mxu0 0.0
  %3211 = vmatpush2.xpose.msra.mxu0 0.0
  %3212 = vmatprep.subr.mxu0 0.0
  %3213 = vmatpush2.xpose.msra.mxu0 0.0
  %3214 = vmatprep.subr.mxu0 0.0
  %3215 = vmatpush2.xpose.msra.mxu0 0.0
  %3216 = vmatprep.subr.mxu0 0.0
  %3217 = vmatpush2.xpose.msra.mxu0 0.0
  %3218 = vmatprep.subr.mxu0 0.0
  %3219 = vmatpush2.xpose.msra.mxu0 0.0
  %3220 = vmatprep.subr.mxu0 0.0
  %3221 = vmatpush2.xpose.msra.mxu0 0.0
  %3222 = vmatprep.subr.mxu0 0.0
  %3223 = vmatpush2.xpose.msra.mxu0 0.0
  %3224 = vmatprep.subr.mxu0 0.0
  %3225 = vmatpush2.xpose.msra.mxu0 0.0
  %3226 = vmatprep.subr.mxu0 0.0
  %3227 = vmatpush2.xpose.msra.mxu0 0.0
  %3228 = vmatprep.subr.mxu0 0.0
  %3229 = vmatpush2.xpose.msra.mxu0 0.0
  %3230 = vmatprep.subr.mxu0 0.0
  %3231 = vmatpush2.xpose.msra.mxu0 0.0
  %3232 = vmatprep.subr.mxu0 0.0
  %3233 = vmatpush2.xpose.msra.mxu0 0.0
  %3234 = vmatprep.subr.mxu0 0.0
  %3235 = vmatpush2.xpose.msra.mxu0 0.0
  %3236 = vmatprep.mubr.f32.mxu0 0.0
  %3237 = vmatmul.mubr.f32.gmra.mxu0 %v3166
  %v3238 = vpop.f32.mrf.mxu0
  %v3239 = vadd.f32 1e-15, %v3238
  %v3240 = vpop.f32.mrf.mxu0
  %3241 = vdwg.mxu0
  %v3242 = vsel %vm2979, %v3239, 0.0
  %3243 = vadd.xlane.f32.xlu0 %v3242
  %v3244 = vpop.xlane.xlu0 %3243
  %v3245 = vrcp.pop %v3244
  %v3246 = vmul.f32 %v3239, %v3245
  %v3247 = vmul.f32 %v3246, %v2985
  %v3249 = vsel %vm2987, %v3247, 0
  %3251 = vmatprep.subr.mxu0 0.0
  %3252 = vmatpush1.msra.mxu0 0.0
  %3253 = vmatprep.subr.mxu0 0.0
  %3254 = vmatpush1.msra.mxu0 0.0
  %3255 = vmatprep.subr.mxu0 0.0
  %3256 = vmatpush1.msra.mxu0 0.0
  %3257 = vmatprep.subr.mxu0 0.0
  %3258 = vmatpush1.msra.mxu0 0.0
  %3259 = vmatprep.subr.mxu0 0.0
  %3260 = vmatpush1.msra.mxu0 0.0
  %3261 = vmatprep.subr.mxu0 0.0
  %3262 = vmatpush1.msra.mxu0 0.0
  %3263 = vmatprep.subr.mxu0 0.0
  %3264 = vmatpush1.msra.mxu0 0.0
  %3265 = vmatprep.subr.mxu0 0.0
  %3266 = vmatpush1.msra.mxu0 0.0
  %3267 = vmatprep.subr.mxu0 0.0
  %3268 = vmatpush1.msra.mxu0 0.0
  %3269 = vmatprep.subr.mxu0 0.0
  %3270 = vmatpush1.msra.mxu0 0.0
  %3271 = vmatprep.subr.mxu0 0.0
  %3272 = vmatpush1.msra.mxu0 0.0
  %3273 = vmatprep.subr.mxu0 0.0
  %3274 = vmatpush1.msra.mxu0 0.0
  %3275 = vmatprep.subr.mxu0 0.0
  %3276 = vmatpush1.msra.mxu0 0.0
  %3277 = vmatprep.subr.mxu0 0.0
  %3278 = vmatpush1.msra.mxu0 0.0
  %3279 = vmatprep.subr.mxu0 %v2893
  %3280 = vmatpush1.msra.mxu0 %v2892
  %3281 = vmatprep.subr.mxu0 %v2891
  %3282 = vmatpush1.msra.mxu0 %v2890
  %3283 = vmatprep.subr.mxu0 0.0
  %3284 = vmatpush2.msra.mxu0 0.0
  %3285 = vmatprep.subr.mxu0 0.0
  %3286 = vmatpush2.msra.mxu0 0.0
  %3287 = vmatprep.subr.mxu0 0.0
  %3288 = vmatpush2.msra.mxu0 0.0
  %3289 = vmatprep.subr.mxu0 0.0
  %3290 = vmatpush2.msra.mxu0 0.0
  %3291 = vmatprep.subr.mxu0 0.0
  %3292 = vmatpush2.msra.mxu0 0.0
  %3293 = vmatprep.subr.mxu0 0.0
  %3294 = vmatpush2.msra.mxu0 0.0
  %3295 = vmatprep.subr.mxu0 0.0
  %3296 = vmatpush2.msra.mxu0 0.0
  %3297 = vmatprep.subr.mxu0 0.0
  %3298 = vmatpush2.msra.mxu0 0.0
  %3299 = vmatprep.subr.mxu0 0.0
  %3300 = vmatpush2.msra.mxu0 0.0
  %3301 = vmatprep.subr.mxu0 0.0
  %3302 = vmatpush2.msra.mxu0 0.0
  %3303 = vmatprep.subr.mxu0 0.0
  %3304 = vmatpush2.msra.mxu0 0.0
  %3305 = vmatprep.subr.mxu0 0.0
  %3306 = vmatpush2.msra.mxu0 0.0
  %3307 = vmatprep.subr.mxu0 0.0
  %3308 = vmatpush2.msra.mxu0 0.0
  %3309 = vmatprep.subr.mxu0 0.0
  %3310 = vmatpush2.msra.mxu0 0.0
  %3311 = vmatprep.subr.mxu0 0.0
  %3312 = vmatpush2.msra.mxu0 0.0
  %3313 = vmatprep.subr.mxu0 0.0
  %3314 = vmatpush2.msra.mxu0 0.0
  %3315 = vmatprep.mubr.f32.mxu0 0.0
  %3316 = vmatmul.mubr.f32.gmra.mxu0 %v3249
  %v3317 = vpop.f32.mrf.mxu0
  %v3318 = vadd.f32 0.0, %v3317
  %v3319 = vpop.f32.mrf.mxu0
  %v3320 = vadd.f32 0.0, %v3319
  %3321 = vdwg.mxu0
  %v3322 = vlaneseq
  %v3323 = vshrl.u32 %v3322, 7
  %v3324 = vsub.s32 0, %v3323
  %v3325 = vrot.slane %v3318, %v3324
  %v3326 = vlaneseq
  %v3327 = vshrl.u32 %v3326, 7
  %v3328 = vsub.s32 0, %v3327
  %v3329 = vrot.slane %v3320, %v3328
  %v3330 = vmul.f32 %v2894, %v3325
  %v3331 = vmul.f32 %v2895, %v3329
  %v3332 = vmul.f32 %v2896, %v3325
  %v3333 = vmul.f32 %v2897, %v3329
  %v3335 = vsel %vm3074, %v3331, 0
  %v3338 = vsel %vm3074, %v3333, 0
  %3340 = vmatprep.subr.mxu0 0.0
  %3341 = vmatpush1.msra.mxu0 %v2784
  %3342 = vmatprep.subr.mxu0 0.0
  %3343 = vmatpush1.msra.mxu0 %v2779
  %3344 = vmatprep.subr.mxu0 0.0
  %3345 = vmatpush1.msra.mxu0 %v2774
  %3346 = vmatprep.subr.mxu0 0.0
  %3347 = vmatpush1.msra.mxu0 %v2769
  %3348 = vmatprep.subr.mxu0 0.0
  %3349 = vmatpush1.msra.mxu0 %v2764
  %3350 = vmatprep.subr.mxu0 0.0
  %3351 = vmatpush1.msra.mxu0 %v2759
  %3352 = vmatprep.subr.mxu0 0.0
  %3353 = vmatpush1.msra.mxu0 %v2754
  %3354 = vmatprep.subr.mxu0 0.0
  %3355 = vmatpush1.msra.mxu0 %v2749
  %3356 = vmatprep.subr.mxu0 0.0
  %3357 = vmatpush1.msra.mxu0 %v2744
  %3358 = vmatprep.subr.mxu0 0.0
  %3359 = vmatpush1.msra.mxu0 %v2739
  %3360 = vmatprep.subr.mxu0 0.0
  %3361 = vmatpush1.msra.mxu0 %v2734
  %3362 = vmatprep.subr.mxu0 0.0
  %3363 = vmatpush1.msra.mxu0 %v2729
  %3364 = vmatprep.subr.mxu0 0.0
  %3365 = vmatpush1.msra.mxu0 %v2724
  %3366 = vmatprep.subr.mxu0 0.0
  %3367 = vmatpush1.msra.mxu0 %v2719
  %3368 = vmatprep.subr.mxu0 0.0
  %3369 = vmatpush1.msra.mxu0 %v2714
  %3370 = vmatprep.subr.mxu0 0.0
  %3371 = vmatpush1.msra.mxu0 %v2709
  %3372 = vmatprep.subr.mxu0 0.0
  %3373 = vmatpush2.msra.mxu0 0.0
  %3374 = vmatprep.subr.mxu0 0.0
  %3375 = vmatpush2.msra.mxu0 0.0
  %3376 = vmatprep.subr.mxu0 0.0
  %3377 = vmatpush2.msra.mxu0 0.0
  %3378 = vmatprep.subr.mxu0 0.0
  %3379 = vmatpush2.msra.mxu0 0.0
  %3380 = vmatprep.subr.mxu0 0.0
  %3381 = vmatpush2.msra.mxu0 0.0
  %3382 = vmatprep.subr.mxu0 0.0
  %3383 = vmatpush2.msra.mxu0 0.0
  %3384 = vmatprep.subr.mxu0 0.0
  %3385 = vmatpush2.msra.mxu0 0.0
  %3386 = vmatprep.subr.mxu0 0.0
  %3387 = vmatpush2.msra.mxu0 0.0
  %3388 = vmatprep.subr.mxu0 0.0
  %3389 = vmatpush2.msra.mxu0 0.0
  %3390 = vmatprep.subr.mxu0 0.0
  %3391 = vmatpush2.msra.mxu0 0.0
  %3392 = vmatprep.subr.mxu0 0.0
  %3393 = vmatpush2.msra.mxu0 0.0
  %3394 = vmatprep.subr.mxu0 0.0
  %3395 = vmatpush2.msra.mxu0 0.0
  %3396 = vmatprep.subr.mxu0 0.0
  %3397 = vmatpush2.msra.mxu0 %v2804
  %3398 = vmatprep.subr.mxu0 0.0
  %3399 = vmatpush2.msra.mxu0 %v2799
  %3400 = vmatprep.subr.mxu0 0.0
  %3401 = vmatpush2.msra.mxu0 %v2794
  %3402 = vmatprep.subr.mxu0 0.0
  %3403 = vmatpush2.msra.mxu0 %v2789
  %3404 = vmatprep.mubr.f32.mxu0 %v3335
  %3405 = vmatmul.mubr.f32.gmra.mxu0 %v3330
  %v3406 = vpop.f32.mrf.mxu0
  %v3407 = vadd.f32 0.0, %v3406
  %v3408 = vpop.f32.mrf.mxu0
  %3409 = vmatprep.mubr.f32.mxu0 %v3338
  %3410 = vmatmul.mubr.f32.gmra.mxu0 %v3332
  %v3411 = vpop.f32.mrf.mxu0
  %v3412 = vadd.f32 0.0, %v3411
  %v3413 = vpop.f32.mrf.mxu0
  %3414 = vdwg.mxu0
  %vm3415 = vcmp.ge.s32.totalorder %v2899, 33
  %v3416 = vsel %vm3415, %v3407, %v3148
  %v3417 = vsel %vm3415, %v3412, %v3153
  %v3420 = vrot.slane %v3416, 6
  %v3421 = vrot.slane %v3417, 6
  %v3422 = vsel %vm2638, %v3420, %v3421
  %v3425 = vsel %vm2638, %v2887, %v3420
  %v3426 = vld [vmem:[%s12] sm:$0xff]
  %v3427 = vld [vmem:[%s12 + $0x8] sm:$0xff]
  %v3428 = vld [vmem:[%s12 + $0x10] sm:$0xff]
  %v3429 = vld [vmem:[%s12 + $0x18] sm:$0xff]
  %v3430 = vld [vmem:[%s12 + $0x20] sm:$0xff]
  %v3431 = vld [vmem:[%s12 + $0x28] sm:$0xff]
  %v3432 = vld [vmem:[%s12 + $0x30] sm:$0xff]
  %v3433 = vld [vmem:[%s12 + $0x38] sm:$0xff]
  %v3434 = vld [vmem:[%s13] sm:$0xff]
  %v3435 = vld [vmem:[%s13 + $0x8] sm:$0xff]
  %v3436 = vld [vmem:[%s13 + $0x10] sm:$0xff]
  %v3437 = vld [vmem:[%s13 + $0x18] sm:$0xff]
  %v3438 = vld [vmem:[%s13 + $0x20] sm:$0xff]
  %v3439 = vld [vmem:[%s13 + $0x28] sm:$0xff]
  %v3440 = vld [vmem:[%s13 + $0x30] sm:$0xff]
  %v3441 = vld [vmem:[%s13 + $0x38] sm:$0xff]
  %v3442 = vld [vmem:[%s13 + $0x40] sm:$0x3]
  %v3443 = vld [vmem:[%s14] sm:$0xff]
  %v3444 = vld [vmem:[%s14 + $0x8] sm:$0xff]
  %v3445 = vld [vmem:[%s14 + $0x10] sm:$0xff]
  %v3446 = vld [vmem:[%s14 + $0x18] sm:$0xff]
  %v3447 = vld [vmem:[%s14 + $0x20] sm:$0xff]
  %v3448 = vld [vmem:[%s14 + $0x28] sm:$0xff]
  %v3449 = vld [vmem:[%s14 + $0x30] sm:$0xff]
  %v3450 = vld [vmem:[%s14 + $0x38] sm:$0xff]
  %vm3451 = vcmask 162816
  %v3453 = vsel %vm3451, %v3426, 0
  %v3456 = vsel %vm3451, %v3427, 0
  %v3459 = vsel %vm3451, %v3428, 0
  %v3462 = vsel %vm3451, %v3429, 0
  %v3465 = vsel %vm3451, %v3430, 0
  %v3468 = vsel %vm3451, %v3431, 0
  %v3471 = vsel %vm3451, %v3432, 0
  %v3474 = vsel %vm3451, %v3433, 0
  %v3476 = vsel %vm616, %v3422, 0
  %3478 = vmatprep.subr.mxu0 0.0
  %3479 = vmatpush1.msra.mxu0 0.0
  %3480 = vmatprep.subr.mxu0 0.0
  %3481 = vmatpush1.msra.mxu0 0.0
  %3482 = vmatprep.subr.mxu0 0.0
  %3483 = vmatpush1.msra.mxu0 0.0
  %3484 = vmatprep.subr.mxu0 0.0
  %3485 = vmatpush1.msra.mxu0 0.0
  %3486 = vmatprep.subr.mxu0 0.0
  %3487 = vmatpush1.msra.mxu0 0.0
  %3488 = vmatprep.subr.mxu0 0.0
  %3489 = vmatpush1.msra.mxu0 0.0
  %3490 = vmatprep.subr.mxu0 0.0
  %3491 = vmatpush1.msra.mxu0 0.0
  %3492 = vmatprep.subr.mxu0 0.0
  %3493 = vmatpush1.msra.mxu0 0.0
  %3494 = vmatprep.subr.mxu0 0.0
  %3495 = vmatpush1.msra.mxu0 0.0
  %3496 = vmatprep.subr.mxu0 0.0
  %3497 = vmatpush1.msra.mxu0 0.0
  %3498 = vmatprep.subr.mxu0 0.0
  %3499 = vmatpush1.msra.mxu0 0.0
  %3500 = vmatprep.subr.mxu0 0.0
  %3501 = vmatpush1.msra.mxu0 0.0
  %3502 = vmatprep.subr.mxu0 0.0
  %3503 = vmatpush1.msra.mxu0 0.0
  %3504 = vmatprep.subr.mxu0 0.0
  %3505 = vmatpush1.msra.mxu0 %v3476
  %3506 = vmatprep.subr.mxu0 0.0
  %3507 = vmatpush1.msra.mxu0 %v3425
  %3508 = vmatprep.subr.mxu0 0.0
  %3509 = vmatpush1.msra.mxu0 %v2882
  %3510 = vmatprep.subr.mxu0 0.0
  %3511 = vmatpush2.msra.mxu0 0.0
  %3512 = vmatprep.subr.mxu0 0.0
  %3513 = vmatpush2.msra.mxu0 0.0
  %3514 = vmatprep.subr.mxu0 0.0
  %3515 = vmatpush2.msra.mxu0 0.0
  %3516 = vmatprep.subr.mxu0 0.0
  %3517 = vmatpush2.msra.mxu0 0.0
  %3518 = vmatprep.subr.mxu0 0.0
  %3519 = vmatpush2.msra.mxu0 0.0
  %3520 = vmatprep.subr.mxu0 0.0
  %3521 = vmatpush2.msra.mxu0 0.0
  %3522 = vmatprep.subr.mxu0 0.0
  %3523 = vmatpush2.msra.mxu0 0.0
  %3524 = vmatprep.subr.mxu0 0.0
  %3525 = vmatpush2.msra.mxu0 0.0
  %3526 = vmatprep.subr.mxu0 0.0
  %3527 = vmatpush2.msra.mxu0 0.0
  %3528 = vmatprep.subr.mxu0 0.0
  %3529 = vmatpush2.msra.mxu0 0.0
  %3530 = vmatprep.subr.mxu0 0.0
  %3531 = vmatpush2.msra.mxu0 0.0
  %3532 = vmatprep.subr.mxu0 0.0
  %3533 = vmatpush2.msra.mxu0 0.0
  %3534 = vmatprep.subr.mxu0 0.0
  %3535 = vmatpush2.msra.mxu0 0.0
  %3536 = vmatprep.subr.mxu0 0.0
  %3537 = vmatpush2.msra.mxu0 0.0
  %3538 = vmatprep.subr.mxu0 0.0
  %3539 = vmatpush2.msra.mxu0 0.0
  %3540 = vmatprep.subr.mxu0 0.0
  %3541 = vmatpush2.msra.mxu0 0.0
  %3542 = vmatprep.mubr.f32.mxu0 0.0
  %3543 = vmatmul.mubr.f32.gmra.mxu0 %v3453
  %v3544 = vpop.f32.mrf.mxu0
  %v3545 = vadd.f32 0.0, %v3544
  %v3546 = vpop.f32.mrf.mxu0
  %3547 = vmatprep.mubr.f32.mxu0 0.0
  %3548 = vmatmul.mubr.f32.gmra.mxu0 %v3456
  %v3549 = vpop.f32.mrf.mxu0
  %v3550 = vadd.f32 0.0, %v3549
  %v3551 = vpop.f32.mrf.mxu0
  %3552 = vmatprep.mubr.f32.mxu0 0.0
  %3553 = vmatmul.mubr.f32.gmra.mxu0 %v3459
  %v3554 = vpop.f32.mrf.mxu0
  %v3555 = vadd.f32 0.0, %v3554
  %v3556 = vpop.f32.mrf.mxu0
  %3557 = vmatprep.mubr.f32.mxu0 0.0
  %3558 = vmatmul.mubr.f32.gmra.mxu0 %v3462
  %v3559 = vpop.f32.mrf.mxu0
  %v3560 = vadd.f32 0.0, %v3559
  %v3561 = vpop.f32.mrf.mxu0
  %3562 = vmatprep.mubr.f32.mxu0 0.0
  %3563 = vmatmul.mubr.f32.gmra.mxu0 %v3465
  %v3564 = vpop.f32.mrf.mxu0
  %v3565 = vadd.f32 0.0, %v3564
  %v3566 = vpop.f32.mrf.mxu0
  %3567 = vmatprep.mubr.f32.mxu0 0.0
  %3568 = vmatmul.mubr.f32.gmra.mxu0 %v3468
  %v3569 = vpop.f32.mrf.mxu0
  %v3570 = vadd.f32 0.0, %v3569
  %v3571 = vpop.f32.mrf.mxu0
  %3572 = vmatprep.mubr.f32.mxu0 0.0
  %3573 = vmatmul.mubr.f32.gmra.mxu0 %v3471
  %v3574 = vpop.f32.mrf.mxu0
  %v3575 = vadd.f32 0.0, %v3574
  %v3576 = vpop.f32.mrf.mxu0
  %3577 = vmatprep.mubr.f32.mxu0 0.0
  %3578 = vmatmul.mubr.f32.gmra.mxu0 %v3474
  %v3579 = vpop.f32.mrf.mxu0
  %v3580 = vadd.f32 0.0, %v3579
  %v3581 = vpop.f32.mrf.mxu0
  %3582 = vdwg.mxu0
  %3584 = vset.pattern.permute.xlu0 0
  %3585 = vperm.xlu0 %3584, %v3443
  %v3586 = vpop.permute.xlu0 %3585
  %3589 = vset.pattern.permute.xlu0 0
  %3590 = vperm.xlu0 %3589, %v3444
  %v3591 = vpop.permute.xlu0 %3590
  %3594 = vset.pattern.permute.xlu0 0
  %3595 = vperm.xlu0 %3594, %v3445
  %v3596 = vpop.permute.xlu0 %3595
  %3599 = vset.pattern.permute.xlu0 0
  %3600 = vperm.xlu0 %3599, %v3446
  %v3601 = vpop.permute.xlu0 %3600
  %3604 = vset.pattern.permute.xlu0 0
  %3605 = vperm.xlu0 %3604, %v3447
  %v3606 = vpop.permute.xlu0 %3605
  %3609 = vset.pattern.permute.xlu0 0
  %3610 = vperm.xlu0 %3609, %v3448
  %v3611 = vpop.permute.xlu0 %3610
  %3614 = vset.pattern.permute.xlu0 0
  %3615 = vperm.xlu0 %3614, %v3449
  %v3616 = vpop.permute.xlu0 %3615
  %3619 = vset.pattern.permute.xlu0 0
  %3620 = vperm.xlu0 %3619, %v3450
  %v3621 = vpop.permute.xlu0 %3620
  %vm3623 = vcmask 539648
  %v3625 = vsel %vm3623, %v3545, 0
  %v3628 = vsel %vm3623, %v3550, 0
  %v3631 = vsel %vm3623, %v3555, 0
  %v3634 = vsel %vm3623, %v3560, 0
  %v3637 = vsel %vm3623, %v3565, 0
  %v3640 = vsel %vm3623, %v3570, 0
  %v3643 = vsel %vm3623, %v3575, 0
  %v3646 = vsel %vm3623, %v3580, 0
  %v3649 = vsel %vm2638, %v3442, 0
  %3651 = vmatprep.subr.mxu0 0.0
  %3652 = vmatpush1.msra.mxu0 0.0
  %3653 = vmatprep.subr.mxu0 0.0
  %3654 = vmatpush1.msra.mxu0 0.0
  %3655 = vmatprep.subr.mxu0 0.0
  %3656 = vmatpush1.msra.mxu0 0.0
  %3657 = vmatprep.subr.mxu0 0.0
  %3658 = vmatpush1.msra.mxu0 0.0
  %3659 = vmatprep.subr.mxu0 0.0
  %3660 = vmatpush1.msra.mxu0 0.0
  %3661 = vmatprep.subr.mxu0 0.0
  %3662 = vmatpush1.msra.mxu0 0.0
  %3663 = vmatprep.subr.mxu0 0.0
  %3664 = vmatpush1.msra.mxu0 0.0
  %3665 = vmatprep.subr.mxu0 0.0
  %3666 = vmatpush1.msra.mxu0 %v3649
  %3667 = vmatprep.subr.mxu0 0.0
  %3668 = vmatpush1.msra.mxu0 %v3441
  %3669 = vmatprep.subr.mxu0 0.0
  %3670 = vmatpush1.msra.mxu0 %v3440
  %3671 = vmatprep.subr.mxu0 0.0
  %3672 = vmatpush1.msra.mxu0 %v3439
  %3673 = vmatprep.subr.mxu0 0.0
  %3674 = vmatpush1.msra.mxu0 %v3438
  %3675 = vmatprep.subr.mxu0 0.0
  %3676 = vmatpush1.msra.mxu0 %v3437
  %3677 = vmatprep.subr.mxu0 0.0
  %3678 = vmatpush1.msra.mxu0 %v3436
  %3679 = vmatprep.subr.mxu0 0.0
  %3680 = vmatpush1.msra.mxu0 %v3435
  %3681 = vmatprep.subr.mxu0 0.0
  %3682 = vmatpush1.msra.mxu0 %v3434
  %3683 = vmatprep.subr.mxu0 0.0
  %3684 = vmatpush2.msra.mxu0 0.0
  %3685 = vmatprep.subr.mxu0 0.0
  %3686 = vmatpush2.msra.mxu0 0.0
  %3687 = vmatprep.subr.mxu0 0.0
  %3688 = vmatpush2.msra.mxu0 0.0
  %3689 = vmatprep.subr.mxu0 0.0
  %3690 = vmatpush2.msra.mxu0 0.0
  %3691 = vmatprep.subr.mxu0 0.0
  %3692 = vmatpush2.msra.mxu0 0.0
  %3693 = vmatprep.subr.mxu0 0.0
  %3694 = vmatpush2.msra.mxu0 0.0
  %3695 = vmatprep.subr.mxu0 0.0
  %3696 = vmatpush2.msra.mxu0 0.0
  %3697 = vmatprep.subr.mxu0 0.0
  %3698 = vmatpush2.msra.mxu0 0.0
  %3699 = vmatprep.subr.mxu0 0.0
  %3700 = vmatpush2.msra.mxu0 0.0
  %3701 = vmatprep.subr.mxu0 0.0
  %3702 = vmatpush2.msra.mxu0 0.0
  %3703 = vmatprep.subr.mxu0 0.0
  %3704 = vmatpush2.msra.mxu0 0.0
  %3705 = vmatprep.subr.mxu0 0.0
  %3706 = vmatpush2.msra.mxu0 0.0
  %3707 = vmatprep.subr.mxu0 0.0
  %3708 = vmatpush2.msra.mxu0 0.0
  %3709 = vmatprep.subr.mxu0 0.0
  %3710 = vmatpush2.msra.mxu0 0.0
  %3711 = vmatprep.subr.mxu0 0.0
  %3712 = vmatpush2.msra.mxu0 0.0
  %3713 = vmatprep.subr.mxu0 0.0
  %3714 = vmatpush2.msra.mxu0 0.0
  %3715 = vmatprep.mubr.f32.mxu0 0.0
  %3716 = vmatmul.mubr.f32.gmra.mxu0 %v3625
  %v3717 = vpop.f32.mrf.mxu0
  %v3718 = vadd.f32 %v3586, %v3717
  %v3719 = vpop.f32.mrf.mxu0
  %3720 = vmatprep.mubr.f32.mxu0 0.0
  %3721 = vmatmul.mubr.f32.gmra.mxu0 %v3628
  %v3722 = vpop.f32.mrf.mxu0
  %v3723 = vadd.f32 %v3591, %v3722
  %v3724 = vpop.f32.mrf.mxu0
  %3725 = vmatprep.mubr.f32.mxu0 0.0
  %3726 = vmatmul.mubr.f32.gmra.mxu0 %v3631
  %v3727 = vpop.f32.mrf.mxu0
  %v3728 = vadd.f32 %v3596, %v3727
  %v3729 = vpop.f32.mrf.mxu0
  %3730 = vmatprep.mubr.f32.mxu0 0.0
  %3731 = vmatmul.mubr.f32.gmra.mxu0 %v3634
  %v3732 = vpop.f32.mrf.mxu0
  %v3733 = vadd.f32 %v3601, %v3732
  %v3734 = vpop.f32.mrf.mxu0
  %3735 = vmatprep.mubr.f32.mxu0 0.0
  %3736 = vmatmul.mubr.f32.gmra.mxu0 %v3637
  %v3737 = vpop.f32.mrf.mxu0
  %v3738 = vadd.f32 %v3606, %v3737
  %v3739 = vpop.f32.mrf.mxu0
  %3740 = vmatprep.mubr.f32.mxu0 0.0
  %3741 = vmatmul.mubr.f32.gmra.mxu0 %v3640
  %v3742 = vpop.f32.mrf.mxu0
  %v3743 = vadd.f32 %v3611, %v3742
  %v3744 = vpop.f32.mrf.mxu0
  %3745 = vmatprep.mubr.f32.mxu0 0.0
  %3746 = vmatmul.mubr.f32.gmra.mxu0 %v3643
  %v3747 = vpop.f32.mrf.mxu0
  %v3748 = vadd.f32 %v3616, %v3747
  %v3749 = vpop.f32.mrf.mxu0
  %3750 = vmatprep.mubr.f32.mxu0 0.0
  %3751 = vmatmul.mubr.f32.gmra.mxu0 %v3646
  %v3752 = vpop.f32.mrf.mxu0
  %v3753 = vadd.f32 %v3621, %v3752
  %v3754 = vpop.f32.mrf.mxu0
  %3755 = vdwg.mxu0
  %v3756 = vmul.f32 %v3718, 0.999995
  %v3757 = vmul.f32 %v3723, 0.999995
  %v3758 = vmul.f32 %v3728, 0.999995
  %v3759 = vmul.f32 %v3733, 0.999995
  %v3760 = vmul.f32 %v3738, 0.999995
  %v3761 = vmul.f32 %v3743, 0.999995
  %v3762 = vmul.f32 %v3748, 0.999995
  %v3763 = vmul.f32 %v3753, 0.999995
  %v3764 = vtanh.pop %v3756
  %v3765 = vtanh.pop %v3757
  %v3766 = vtanh.pop %v3758
  %v3767 = vtanh.pop %v3759
  %v3768 = vtanh.pop %v3760
  %v3769 = vtanh.pop %v3761
  %v3770 = vtanh.pop %v3762
  %v3771 = vtanh.pop %v3763
  %v3772 = vld [vmem:[%s15] sm:$0xff]
  %v3773 = vld [vmem:[%s15 + $0x8] sm:$0xff]
  %v3774 = vld [vmem:[%s15 + $0x10] sm:$0xff]
  %v3775 = vld [vmem:[%s15 + $0x18] sm:$0xff]
  %v3776 = vld [vmem:[%s15 + $0x20] sm:$0xff]
  %v3777 = vld [vmem:[%s15 + $0x28] sm:$0xff]
  %v3778 = vld [vmem:[%s15 + $0x30] sm:$0xff]
  %v3779 = vld [vmem:[%s15 + $0x38] sm:$0xff]
  %v3780 = vld [vmem:[%s16] sm:$0xff]
  %v3781 = vld [vmem:[%s16 + $0x8] sm:$0xff]
  %v3782 = vld [vmem:[%s16 + $0x10] sm:$0xff]
  %v3783 = vld [vmem:[%s16 + $0x18] sm:$0xff]
  %v3784 = vld [vmem:[%s16 + $0x20] sm:$0xff]
  %v3785 = vld [vmem:[%s16 + $0x28] sm:$0xff]
  %v3786 = vld [vmem:[%s16 + $0x30] sm:$0xff]
  %v3787 = vld [vmem:[%s16 + $0x38] sm:$0xff]
  %v3788 = vld [vmem:[%s16 + $0x40] sm:$0x3]
  %v3789 = vld [vmem:[%s17] sm:$0xff]
  %v3790 = vld [vmem:[%s17 + $0x8] sm:$0xff]
  %v3791 = vld [vmem:[%s17 + $0x10] sm:$0xff]
  %v3792 = vld [vmem:[%s17 + $0x18] sm:$0xff]
  %v3793 = vld [vmem:[%s17 + $0x20] sm:$0xff]
  %v3794 = vld [vmem:[%s17 + $0x28] sm:$0xff]
  %v3795 = vld [vmem:[%s17 + $0x30] sm:$0xff]
  %v3796 = vld [vmem:[%s17 + $0x38] sm:$0xff]
  %v3798 = vsel %vm922, %v3772, 0
  %v3801 = vsel %vm922, %v3773, 0
  %v3804 = vsel %vm922, %v3774, 0
  %v3807 = vsel %vm922, %v3775, 0
  %v3810 = vsel %vm922, %v3776, 0
  %v3813 = vsel %vm922, %v3777, 0
  %v3816 = vsel %vm922, %v3778, 0
  %v3819 = vsel %vm922, %v3779, 0
  %3821 = vmatprep.subr.mxu0 0.0
  %3822 = vmatpush1.msra.mxu0 0.0
  %3823 = vmatprep.subr.mxu0 0.0
  %3824 = vmatpush1.msra.mxu0 0.0
  %3825 = vmatprep.subr.mxu0 0.0
  %3826 = vmatpush1.msra.mxu0 0.0
  %3827 = vmatprep.subr.mxu0 0.0
  %3828 = vmatpush1.msra.mxu0 0.0
  %3829 = vmatprep.subr.mxu0 0.0
  %3830 = vmatpush1.msra.mxu0 0.0
  %3831 = vmatprep.subr.mxu0 0.0
  %3832 = vmatpush1.msra.mxu0 0.0
  %3833 = vmatprep.subr.mxu0 0.0
  %3834 = vmatpush1.msra.mxu0 0.0
  %3835 = vmatprep.subr.mxu0 0.0
  %3836 = vmatpush1.msra.mxu0 0.0
  %3837 = vmatprep.subr.mxu0 0.0
  %3838 = vmatpush1.msra.mxu0 %v3771
  %3839 = vmatprep.subr.mxu0 0.0
  %3840 = vmatpush1.msra.mxu0 %v3770
  %3841 = vmatprep.subr.mxu0 0.0
  %3842 = vmatpush1.msra.mxu0 %v3769
  %3843 = vmatprep.subr.mxu0 0.0
  %3844 = vmatpush1.msra.mxu0 %v3768
  %3845 = vmatprep.subr.mxu0 0.0
  %3846 = vmatpush1.msra.mxu0 %v3767
  %3847 = vmatprep.subr.mxu0 0.0
  %3848 = vmatpush1.msra.mxu0 %v3766
  %3849 = vmatprep.subr.mxu0 0.0
  %3850 = vmatpush1.msra.mxu0 %v3765
  %3851 = vmatprep.subr.mxu0 0.0
  %3852 = vmatpush1.msra.mxu0 %v3764
  %3853 = vmatprep.subr.mxu0 0.0
  %3854 = vmatpush2.msra.mxu0 0.0
  %3855 = vmatprep.subr.mxu0 0.0
  %3856 = vmatpush2.msra.mxu0 0.0
  %3857 = vmatprep.subr.mxu0 0.0
  %3858 = vmatpush2.msra.mxu0 0.0
  %3859 = vmatprep.subr.mxu0 0.0
  %3860 = vmatpush2.msra.mxu0 0.0
  %3861 = vmatprep.subr.mxu0 0.0
  %3862 = vmatpush2.msra.mxu0 0.0
  %3863 = vmatprep.subr.mxu0 0.0
  %3864 = vmatpush2.msra.mxu0 0.0
  %3865 = vmatprep.subr.mxu0 0.0
  %3866 = vmatpush2.msra.mxu0 0.0
  %3867 = vmatprep.subr.mxu0 0.0
  %3868 = vmatpush2.msra.mxu0 0.0
  %3869 = vmatprep.subr.mxu0 0.0
  %3870 = vmatpush2.msra.mxu0 0.0
  %3871 = vmatprep.subr.mxu0 0.0
  %3872 = vmatpush2.msra.mxu0 0.0
  %3873 = vmatprep.subr.mxu0 0.0
  %3874 = vmatpush2.msra.mxu0 0.0
  %3875 = vmatprep.subr.mxu0 0.0
  %3876 = vmatpush2.msra.mxu0 0.0
  %3877 = vmatprep.subr.mxu0 0.0
  %3878 = vmatpush2.msra.mxu0 0.0
  %3879 = vmatprep.subr.mxu0 0.0
  %3880 = vmatpush2.msra.mxu0 0.0
  %3881 = vmatprep.subr.mxu0 0.0
  %3882 = vmatpush2.msra.mxu0 0.0
  %3883 = vmatprep.subr.mxu0 0.0
  %3884 = vmatpush2.msra.mxu0 0.0
  %3885 = vmatprep.mubr.f32.mxu0 0.0
  %3886 = vmatmul.mubr.f32.gmra.mxu0 %v3798
  %v3887 = vpop.f32.mrf.mxu0
  %v3888 = vadd.f32 0.0, %v3887
  %v3889 = vpop.f32.mrf.mxu0
  %3890 = vmatprep.mubr.f32.mxu0 0.0
  %3891 = vmatmul.mubr.f32.gmra.mxu0 %v3801
  %v3892 = vpop.f32.mrf.mxu0
  %v3893 = vadd.f32 0.0, %v3892
  %v3894 = vpop.f32.mrf.mxu0
  %3895 = vmatprep.mubr.f32.mxu0 0.0
  %3896 = vmatmul.mubr.f32.gmra.mxu0 %v3804
  %v3897 = vpop.f32.mrf.mxu0
  %v3898 = vadd.f32 0.0, %v3897
  %v3899 = vpop.f32.mrf.mxu0
  %3900 = vmatprep.mubr.f32.mxu0 0.0
  %3901 = vmatmul.mubr.f32.gmra.mxu0 %v3807
  %v3902 = vpop.f32.mrf.mxu0
  %v3903 = vadd.f32 0.0, %v3902
  %v3904 = vpop.f32.mrf.mxu0
  %3905 = vmatprep.mubr.f32.mxu0 0.0
  %3906 = vmatmul.mubr.f32.gmra.mxu0 %v3810
  %v3907 = vpop.f32.mrf.mxu0
  %v3908 = vadd.f32 0.0, %v3907
  %v3909 = vpop.f32.mrf.mxu0
  %3910 = vmatprep.mubr.f32.mxu0 0.0
  %3911 = vmatmul.mubr.f32.gmra.mxu0 %v3813
  %v3912 = vpop.f32.mrf.mxu0
  %v3913 = vadd.f32 0.0, %v3912
  %v3914 = vpop.f32.mrf.mxu0
  %3915 = vmatprep.mubr.f32.mxu0 0.0
  %3916 = vmatmul.mubr.f32.gmra.mxu0 %v3816
  %v3917 = vpop.f32.mrf.mxu0
  %v3918 = vadd.f32 0.0, %v3917
  %v3919 = vpop.f32.mrf.mxu0
  %3920 = vmatprep.mubr.f32.mxu0 0.0
  %3921 = vmatmul.mubr.f32.gmra.mxu0 %v3819
  %v3922 = vpop.f32.mrf.mxu0
  %v3923 = vadd.f32 0.0, %v3922
  %v3924 = vpop.f32.mrf.mxu0
  %3925 = vdwg.mxu0
  %3927 = vset.pattern.permute.xlu0 0
  %3928 = vperm.xlu0 %3927, %v3789
  %v3929 = vpop.permute.xlu0 %3928
  %3932 = vset.pattern.permute.xlu0 0
  %3933 = vperm.xlu0 %3932, %v3790
  %v3934 = vpop.permute.xlu0 %3933
  %3937 = vset.pattern.permute.xlu0 0
  %3938 = vperm.xlu0 %3937, %v3791
  %v3939 = vpop.permute.xlu0 %3938
  %3942 = vset.pattern.permute.xlu0 0
  %3943 = vperm.xlu0 %3942, %v3792
  %v3944 = vpop.permute.xlu0 %3943
  %3947 = vset.pattern.permute.xlu0 0
  %3948 = vperm.xlu0 %3947, %v3793
  %v3949 = vpop.permute.xlu0 %3948
  %3952 = vset.pattern.permute.xlu0 0
  %3953 = vperm.xlu0 %3952, %v3794
  %v3954 = vpop.permute.xlu0 %3953
  %3957 = vset.pattern.permute.xlu0 0
  %3958 = vperm.xlu0 %3957, %v3795
  %v3959 = vpop.permute.xlu0 %3958
  %3962 = vset.pattern.permute.xlu0 0
  %3963 = vperm.xlu0 %3962, %v3796
  %v3964 = vpop.permute.xlu0 %3963
  %v3967 = vsel %vm3623, %v3888, 0
  %v3970 = vsel %vm3623, %v3893, 0
  %v3973 = vsel %vm3623, %v3898, 0
  %v3976 = vsel %vm3623, %v3903, 0
  %v3979 = vsel %vm3623, %v3908, 0
  %v3982 = vsel %vm3623, %v3913, 0
  %v3985 = vsel %vm3623, %v3918, 0
  %v3988 = vsel %vm3623, %v3923, 0
  %v3991 = vsel %vm2638, %v3788, 0
  %3993 = vmatprep.subr.mxu0 0.0
  %3994 = vmatpush1.msra.mxu0 0.0
  %3995 = vmatprep.subr.mxu0 0.0
  %3996 = vmatpush1.msra.mxu0 0.0
  %3997 = vmatprep.subr.mxu0 0.0
  %3998 = vmatpush1.msra.mxu0 0.0
  %3999 = vmatprep.subr.mxu0 0.0
  %4000 = vmatpush1.msra.mxu0 0.0
  %4001 = vmatprep.subr.mxu0 0.0
  %4002 = vmatpush1.msra.mxu0 0.0
  %4003 = vmatprep.subr.mxu0 0.0
  %4004 = vmatpush1.msra.mxu0 0.0
  %4005 = vmatprep.subr.mxu0 0.0
  %4006 = vmatpush1.msra.mxu0 0.0
  %4007 = vmatprep.subr.mxu0 0.0
  %4008 = vmatpush1.msra.mxu0 %v3991
  %4009 = vmatprep.subr.mxu0 0.0
  %4010 = vmatpush1.msra.mxu0 %v3787
  %4011 = vmatprep.subr.mxu0 0.0
  %4012 = vmatpush1.msra.mxu0 %v3786
  %4013 = vmatprep.subr.mxu0 0.0
  %4014 = vmatpush1.msra.mxu0 %v3785
  %4015 = vmatprep.subr.mxu0 0.0
  %4016 = vmatpush1.msra.mxu0 %v3784
  %4017 = vmatprep.subr.mxu0 0.0
  %4018 = vmatpush1.msra.mxu0 %v3783
  %4019 = vmatprep.subr.mxu0 0.0
  %4020 = vmatpush1.msra.mxu0 %v3782
  %4021 = vmatprep.subr.mxu0 0.0
  %4022 = vmatpush1.msra.mxu0 %v3781
  %4023 = vmatprep.subr.mxu0 0.0
  %4024 = vmatpush1.msra.mxu0 %v3780
  %4025 = vmatprep.subr.mxu0 0.0
  %4026 = vmatpush2.msra.mxu0 0.0
  %4027 = vmatprep.subr.mxu0 0.0
  %4028 = vmatpush2.msra.mxu0 0.0
  %4029 = vmatprep.subr.mxu0 0.0
  %4030 = vmatpush2.msra.mxu0 0.0
  %4031 = vmatprep.subr.mxu0 0.0
  %4032 = vmatpush2.msra.mxu0 0.0
  %4033 = vmatprep.subr.mxu0 0.0
  %4034 = vmatpush2.msra.mxu0 0.0
  %4035 = vmatprep.subr.mxu0 0.0
  %4036 = vmatpush2.msra.mxu0 0.0
  %4037 = vmatprep.subr.mxu0 0.0
  %4038 = vmatpush2.msra.mxu0 0.0
  %4039 = vmatprep.subr.mxu0 0.0
  %4040 = vmatpush2.msra.mxu0 0.0
  %4041 = vmatprep.subr.mxu0 0.0
  %4042 = vmatpush2.msra.mxu0 0.0
  %4043 = vmatprep.subr.mxu0 0.0
  %4044 = vmatpush2.msra.mxu0 0.0
  %4045 = vmatprep.subr.mxu0 0.0
  %4046 = vmatpush2.msra.mxu0 0.0
  %4047 = vmatprep.subr.mxu0 0.0
  %4048 = vmatpush2.msra.mxu0 0.0
  %4049 = vmatprep.subr.mxu0 0.0
  %4050 = vmatpush2.msra.mxu0 0.0
  %4051 = vmatprep.subr.mxu0 0.0
  %4052 = vmatpush2.msra.mxu0 0.0
  %4053 = vmatprep.subr.mxu0 0.0
  %4054 = vmatpush2.msra.mxu0 0.0
  %4055 = vmatprep.subr.mxu0 0.0
  %4056 = vmatpush2.msra.mxu0 0.0
  %4057 = vmatprep.mubr.f32.mxu0 0.0
  %4058 = vmatmul.mubr.f32.gmra.mxu0 %v3967
  %v4059 = vpop.f32.mrf.mxu0
  %v4060 = vadd.f32 %v3929, %v4059
  %v4061 = vpop.f32.mrf.mxu0
  %4062 = vmatprep.mubr.f32.mxu0 0.0
  %4063 = vmatmul.mubr.f32.gmra.mxu0 %v3970
  %v4064 = vpop.f32.mrf.mxu0
  %v4065 = vadd.f32 %v3934, %v4064
  %v4066 = vpop.f32.mrf.mxu0
  %4067 = vmatprep.mubr.f32.mxu0 0.0
  %4068 = vmatmul.mubr.f32.gmra.mxu0 %v3973
  %v4069 = vpop.f32.mrf.mxu0
  %v4070 = vadd.f32 %v3939, %v4069
  %v4071 = vpop.f32.mrf.mxu0
  %4072 = vmatprep.mubr.f32.mxu0 0.0
  %4073 = vmatmul.mubr.f32.gmra.mxu0 %v3976
  %v4074 = vpop.f32.mrf.mxu0
  %v4075 = vadd.f32 %v3944, %v4074
  %v4076 = vpop.f32.mrf.mxu0
  %4077 = vmatprep.mubr.f32.mxu0 0.0
  %4078 = vmatmul.mubr.f32.gmra.mxu0 %v3979
  %v4079 = vpop.f32.mrf.mxu0
  %v4080 = vadd.f32 %v3949, %v4079
  %v4081 = vpop.f32.mrf.mxu0
  %4082 = vmatprep.mubr.f32.mxu0 0.0
  %4083 = vmatmul.mubr.f32.gmra.mxu0 %v3982
  %v4084 = vpop.f32.mrf.mxu0
  %v4085 = vadd.f32 %v3954, %v4084
  %v4086 = vpop.f32.mrf.mxu0
  %4087 = vmatprep.mubr.f32.mxu0 0.0
  %4088 = vmatmul.mubr.f32.gmra.mxu0 %v3985
  %v4089 = vpop.f32.mrf.mxu0
  %v4090 = vadd.f32 %v3959, %v4089
  %v4091 = vpop.f32.mrf.mxu0
  %4092 = vmatprep.mubr.f32.mxu0 0.0
  %4093 = vmatmul.mubr.f32.gmra.mxu0 %v3988
  %v4094 = vpop.f32.mrf.mxu0
  %v4095 = vadd.f32 %v3964, %v4094
  %v4096 = vpop.f32.mrf.mxu0
  %4097 = vdwg.mxu0
  %v4098 = vmul.f32 %v4060, 0.999995
  %v4099 = vmul.f32 %v4065, 0.999995
  %v4100 = vmul.f32 %v4070, 0.999995
  %v4101 = vmul.f32 %v4075, 0.999995
  %v4102 = vmul.f32 %v4080, 0.999995
  %v4103 = vmul.f32 %v4085, 0.999995
  %v4104 = vmul.f32 %v4090, 0.999995
  %v4105 = vmul.f32 %v4095, 0.999995
  %v4106 = vtanh.pop %v4098
  %v4107 = vtanh.pop %v4099
  %v4108 = vtanh.pop %v4100
  %v4109 = vtanh.pop %v4101
  %v4110 = vtanh.pop %v4102
  %v4111 = vtanh.pop %v4103
  %v4112 = vtanh.pop %v4104
  %v4113 = vtanh.pop %v4105
  %s4114 = scalar_lea.vmem %s15, 64
  %v4115 = vld [vmem:[%s4114] sm:$0xff]
  %v4116 = vld [vmem:[%s4114 + $0x8] sm:$0xff]
  %v4117 = vld [vmem:[%s4114 + $0x10] sm:$0xff]
  %v4118 = vld [vmem:[%s4114 + $0x18] sm:$0xff]
  %v4119 = vld [vmem:[%s4114 + $0x20] sm:$0xff]
  %v4120 = vld [vmem:[%s4114 + $0x28] sm:$0xff]
  %v4121 = vld [vmem:[%s4114 + $0x30] sm:$0xff]
  %v4122 = vld [vmem:[%s4114 + $0x38] sm:$0xff]
  %s4123 = scalar_lea.vmem %s16, 72
  %v4124 = vld [vmem:[%s4123] sm:$0xff]
  %v4125 = vld [vmem:[%s4123 + $0x8] sm:$0xff]
  %v4126 = vld [vmem:[%s4123 + $0x10] sm:$0xff]
  %v4127 = vld [vmem:[%s4123 + $0x18] sm:$0xff]
  %v4128 = vld [vmem:[%s4123 + $0x20] sm:$0xff]
  %v4129 = vld [vmem:[%s4123 + $0x28] sm:$0xff]
  %v4130 = vld [vmem:[%s4123 + $0x30] sm:$0xff]
  %v4131 = vld [vmem:[%s4123 + $0x38] sm:$0xff]
  %v4132 = vld [vmem:[%s4123 + $0x40] sm:$0x3]
  %s4133 = scalar_lea.vmem %s17, 64
  %v4134 = vld [vmem:[%s4133] sm:$0xff]
  %v4135 = vld [vmem:[%s4133 + $0x8] sm:$0xff]
  %v4136 = vld [vmem:[%s4133 + $0x10] sm:$0xff]
  %v4137 = vld [vmem:[%s4133 + $0x18] sm:$0xff]
  %v4138 = vld [vmem:[%s4133 + $0x20] sm:$0xff]
  %v4139 = vld [vmem:[%s4133 + $0x28] sm:$0xff]
  %v4140 = vld [vmem:[%s4133 + $0x30] sm:$0xff]
  %v4141 = vld [vmem:[%s4133 + $0x38] sm:$0xff]
  %v4143 = vsel %vm922, %v4115, 0
  %v4146 = vsel %vm922, %v4116, 0
  %v4149 = vsel %vm922, %v4117, 0
  %v4152 = vsel %vm922, %v4118, 0
  %v4155 = vsel %vm922, %v4119, 0
  %v4158 = vsel %vm922, %v4120, 0
  %v4161 = vsel %vm922, %v4121, 0
  %v4164 = vsel %vm922, %v4122, 0
  %4166 = vmatprep.subr.mxu0 0.0
  %4167 = vmatpush1.msra.mxu0 0.0
  %4168 = vmatprep.subr.mxu0 0.0
  %4169 = vmatpush1.msra.mxu0 0.0
  %4170 = vmatprep.subr.mxu0 0.0
  %4171 = vmatpush1.msra.mxu0 0.0
  %4172 = vmatprep.subr.mxu0 0.0
  %4173 = vmatpush1.msra.mxu0 0.0
  %4174 = vmatprep.subr.mxu0 0.0
  %4175 = vmatpush1.msra.mxu0 0.0
  %4176 = vmatprep.subr.mxu0 0.0
  %4177 = vmatpush1.msra.mxu0 0.0
  %4178 = vmatprep.subr.mxu0 0.0
  %4179 = vmatpush1.msra.mxu0 0.0
  %4180 = vmatprep.subr.mxu0 0.0
  %4181 = vmatpush1.msra.mxu0 0.0
  %4182 = vmatprep.subr.mxu0 0.0
  %4183 = vmatpush1.msra.mxu0 %v4113
  %4184 = vmatprep.subr.mxu0 0.0
  %4185 = vmatpush1.msra.mxu0 %v4112
  %4186 = vmatprep.subr.mxu0 0.0
  %4187 = vmatpush1.msra.mxu0 %v4111
  %4188 = vmatprep.subr.mxu0 0.0
  %4189 = vmatpush1.msra.mxu0 %v4110
  %4190 = vmatprep.subr.mxu0 0.0
  %4191 = vmatpush1.msra.mxu0 %v4109
  %4192 = vmatprep.subr.mxu0 0.0
  %4193 = vmatpush1.msra.mxu0 %v4108
  %4194 = vmatprep.subr.mxu0 0.0
  %4195 = vmatpush1.msra.mxu0 %v4107
  %4196 = vmatprep.subr.mxu0 0.0
  %4197 = vmatpush1.msra.mxu0 %v4106
  %4198 = vmatprep.subr.mxu0 0.0
  %4199 = vmatpush2.msra.mxu0 0.0
  %4200 = vmatprep.subr.mxu0 0.0
  %4201 = vmatpush2.msra.mxu0 0.0
  %4202 = vmatprep.subr.mxu0 0.0
  %4203 = vmatpush2.msra.mxu0 0.0
  %4204 = vmatprep.subr.mxu0 0.0
  %4205 = vmatpush2.msra.mxu0 0.0
  %4206 = vmatprep.subr.mxu0 0.0
  %4207 = vmatpush2.msra.mxu0 0.0
  %4208 = vmatprep.subr.mxu0 0.0
  %4209 = vmatpush2.msra.mxu0 0.0
  %4210 = vmatprep.subr.mxu0 0.0
  %4211 = vmatpush2.msra.mxu0 0.0
  %4212 = vmatprep.subr.mxu0 0.0
  %4213 = vmatpush2.msra.mxu0 0.0
  %4214 = vmatprep.subr.mxu0 0.0
  %4215 = vmatpush2.msra.mxu0 0.0
  %4216 = vmatprep.subr.mxu0 0.0
  %4217 = vmatpush2.msra.mxu0 0.0
  %4218 = vmatprep.subr.mxu0 0.0
  %4219 = vmatpush2.msra.mxu0 0.0
  %4220 = vmatprep.subr.mxu0 0.0
  %4221 = vmatpush2.msra.mxu0 0.0
  %4222 = vmatprep.subr.mxu0 0.0
  %4223 = vmatpush2.msra.mxu0 0.0
  %4224 = vmatprep.subr.mxu0 0.0
  %4225 = vmatpush2.msra.mxu0 0.0
  %4226 = vmatprep.subr.mxu0 0.0
  %4227 = vmatpush2.msra.mxu0 0.0
  %4228 = vmatprep.subr.mxu0 0.0
  %4229 = vmatpush2.msra.mxu0 0.0
  %4230 = vmatprep.mubr.f32.mxu0 0.0
  %4231 = vmatmul.mubr.f32.gmra.mxu0 %v4143
  %v4232 = vpop.f32.mrf.mxu0
  %v4233 = vadd.f32 0.0, %v4232
  %v4234 = vpop.f32.mrf.mxu0
  %4235 = vmatprep.mubr.f32.mxu0 0.0
  %4236 = vmatmul.mubr.f32.gmra.mxu0 %v4146
  %v4237 = vpop.f32.mrf.mxu0
  %v4238 = vadd.f32 0.0, %v4237
  %v4239 = vpop.f32.mrf.mxu0
  %4240 = vmatprep.mubr.f32.mxu0 0.0
  %4241 = vmatmul.mubr.f32.gmra.mxu0 %v4149
  %v4242 = vpop.f32.mrf.mxu0
  %v4243 = vadd.f32 0.0, %v4242
  %v4244 = vpop.f32.mrf.mxu0
  %4245 = vmatprep.mubr.f32.mxu0 0.0
  %4246 = vmatmul.mubr.f32.gmra.mxu0 %v4152
  %v4247 = vpop.f32.mrf.mxu0
  %v4248 = vadd.f32 0.0, %v4247
  %v4249 = vpop.f32.mrf.mxu0
  %4250 = vmatprep.mubr.f32.mxu0 0.0
  %4251 = vmatmul.mubr.f32.gmra.mxu0 %v4155
  %v4252 = vpop.f32.mrf.mxu0
  %v4253 = vadd.f32 0.0, %v4252
  %v4254 = vpop.f32.mrf.mxu0
  %4255 = vmatprep.mubr.f32.mxu0 0.0
  %4256 = vmatmul.mubr.f32.gmra.mxu0 %v4158
  %v4257 = vpop.f32.mrf.mxu0
  %v4258 = vadd.f32 0.0, %v4257
  %v4259 = vpop.f32.mrf.mxu0
  %4260 = vmatprep.mubr.f32.mxu0 0.0
  %4261 = vmatmul.mubr.f32.gmra.mxu0 %v4161
  %v4262 = vpop.f32.mrf.mxu0
  %v4263 = vadd.f32 0.0, %v4262
  %v4264 = vpop.f32.mrf.mxu0
  %4265 = vmatprep.mubr.f32.mxu0 0.0
  %4266 = vmatmul.mubr.f32.gmra.mxu0 %v4164
  %v4267 = vpop.f32.mrf.mxu0
  %v4268 = vadd.f32 0.0, %v4267
  %v4269 = vpop.f32.mrf.mxu0
  %4270 = vdwg.mxu0
  %4272 = vset.pattern.permute.xlu0 0
  %4273 = vperm.xlu0 %4272, %v4134
  %v4274 = vpop.permute.xlu0 %4273
  %4277 = vset.pattern.permute.xlu0 0
  %4278 = vperm.xlu0 %4277, %v4135
  %v4279 = vpop.permute.xlu0 %4278
  %4282 = vset.pattern.permute.xlu0 0
  %4283 = vperm.xlu0 %4282, %v4136
  %v4284 = vpop.permute.xlu0 %4283
  %4287 = vset.pattern.permute.xlu0 0
  %4288 = vperm.xlu0 %4287, %v4137
  %v4289 = vpop.permute.xlu0 %4288
  %4292 = vset.pattern.permute.xlu0 0
  %4293 = vperm.xlu0 %4292, %v4138
  %v4294 = vpop.permute.xlu0 %4293
  %4297 = vset.pattern.permute.xlu0 0
  %4298 = vperm.xlu0 %4297, %v4139
  %v4299 = vpop.permute.xlu0 %4298
  %4302 = vset.pattern.permute.xlu0 0
  %4303 = vperm.xlu0 %4302, %v4140
  %v4304 = vpop.permute.xlu0 %4303
  %4307 = vset.pattern.permute.xlu0 0
  %4308 = vperm.xlu0 %4307, %v4141
  %v4309 = vpop.permute.xlu0 %4308
  %v4312 = vsel %vm3623, %v4233, 0
  %v4315 = vsel %vm3623, %v4238, 0
  %v4318 = vsel %vm3623, %v4243, 0
  %v4321 = vsel %vm3623, %v4248, 0
  %v4324 = vsel %vm3623, %v4253, 0
  %v4327 = vsel %vm3623, %v4258, 0
  %v4330 = vsel %vm3623, %v4263, 0
  %v4333 = vsel %vm3623, %v4268, 0
  %v4336 = vsel %vm2638, %v4132, 0
  %4338 = vmatprep.subr.mxu0 0.0
  %4339 = vmatpush1.msra.mxu0 0.0
  %4340 = vmatprep.subr.mxu0 0.0
  %4341 = vmatpush1.msra.mxu0 0.0
  %4342 = vmatprep.subr.mxu0 0.0
  %4343 = vmatpush1.msra.mxu0 0.0
  %4344 = vmatprep.subr.mxu0 0.0
  %4345 = vmatpush1.msra.mxu0 0.0
  %4346 = vmatprep.subr.mxu0 0.0
  %4347 = vmatpush1.msra.mxu0 0.0
  %4348 = vmatprep.subr.mxu0 0.0
  %4349 = vmatpush1.msra.mxu0 0.0
  %4350 = vmatprep.subr.mxu0 0.0
  %4351 = vmatpush1.msra.mxu0 0.0
  %4352 = vmatprep.subr.mxu0 0.0
  %4353 = vmatpush1.msra.mxu0 %v4336
  %4354 = vmatprep.subr.mxu0 0.0
  %4355 = vmatpush1.msra.mxu0 %v4131
  %4356 = vmatprep.subr.mxu0 0.0
  %4357 = vmatpush1.msra.mxu0 %v4130
  %4358 = vmatprep.subr.mxu0 0.0
  %4359 = vmatpush1.msra.mxu0 %v4129
  %4360 = vmatprep.subr.mxu0 0.0
  %4361 = vmatpush1.msra.mxu0 %v4128
  %4362 = vmatprep.subr.mxu0 0.0
  %4363 = vmatpush1.msra.mxu0 %v4127
  %4364 = vmatprep.subr.mxu0 0.0
  %4365 = vmatpush1.msra.mxu0 %v4126
  %4366 = vmatprep.subr.mxu0 0.0
  %4367 = vmatpush1.msra.mxu0 %v4125
  %4368 = vmatprep.subr.mxu0 0.0
  %4369 = vmatpush1.msra.mxu0 %v4124
  %4370 = vmatprep.subr.mxu0 0.0
  %4371 = vmatpush2.msra.mxu0 0.0
  %4372 = vmatprep.subr.mxu0 0.0
  %4373 = vmatpush2.msra.mxu0 0.0
  %4374 = vmatprep.subr.mxu0 0.0
  %4375 = vmatpush2.msra.mxu0 0.0
  %4376 = vmatprep.subr.mxu0 0.0
  %4377 = vmatpush2.msra.mxu0 0.0
  %4378 = vmatprep.subr.mxu0 0.0
  %4379 = vmatpush2.msra.mxu0 0.0
  %4380 = vmatprep.subr.mxu0 0.0
  %4381 = vmatpush2.msra.mxu0 0.0
  %4382 = vmatprep.subr.mxu0 0.0
  %4383 = vmatpush2.msra.mxu0 0.0
  %4384 = vmatprep.subr.mxu0 0.0
  %4385 = vmatpush2.msra.mxu0 0.0
  %4386 = vmatprep.subr.mxu0 0.0
  %4387 = vmatpush2.msra.mxu0 0.0
  %4388 = vmatprep.subr.mxu0 0.0
  %4389 = vmatpush2.msra.mxu0 0.0
  %4390 = vmatprep.subr.mxu0 0.0
  %4391 = vmatpush2.msra.mxu0 0.0
  %4392 = vmatprep.subr.mxu0 0.0
  %4393 = vmatpush2.msra.mxu0 0.0
  %4394 = vmatprep.subr.mxu0 0.0
  %4395 = vmatpush2.msra.mxu0 0.0
  %4396 = vmatprep.subr.mxu0 0.0
  %4397 = vmatpush2.msra.mxu0 0.0
  %4398 = vmatprep.subr.mxu0 0.0
  %4399 = vmatpush2.msra.mxu0 0.0
  %4400 = vmatprep.subr.mxu0 0.0
  %4401 = vmatpush2.msra.mxu0 0.0
  %4402 = vmatprep.mubr.f32.mxu0 0.0
  %4403 = vmatmul.mubr.f32.gmra.mxu0 %v4312
  %v4404 = vpop.f32.mrf.mxu0
  %v4405 = vadd.f32 %v4274, %v4404
  %v4406 = vpop.f32.mrf.mxu0
  %4407 = vmatprep.mubr.f32.mxu0 0.0
  %4408 = vmatmul.mubr.f32.gmra.mxu0 %v4315
  %v4409 = vpop.f32.mrf.mxu0
  %v4410 = vadd.f32 %v4279, %v4409
  %v4411 = vpop.f32.mrf.mxu0
  %4412 = vmatprep.mubr.f32.mxu0 0.0
  %4413 = vmatmul.mubr.f32.gmra.mxu0 %v4318
  %v4414 = vpop.f32.mrf.mxu0
  %v4415 = vadd.f32 %v4284, %v4414
  %v4416 = vpop.f32.mrf.mxu0
  %4417 = vmatprep.mubr.f32.mxu0 0.0
  %4418 = vmatmul.mubr.f32.gmra.mxu0 %v4321
  %v4419 = vpop.f32.mrf.mxu0
  %v4420 = vadd.f32 %v4289, %v4419
  %v4421 = vpop.f32.mrf.mxu0
  %4422 = vmatprep.mubr.f32.mxu0 0.0
  %4423 = vmatmul.mubr.f32.gmra.mxu0 %v4324
  %v4424 = vpop.f32.mrf.mxu0
  %v4425 = vadd.f32 %v4294, %v4424
  %v4426 = vpop.f32.mrf.mxu0
  %4427 = vmatprep.mubr.f32.mxu0 0.0
  %4428 = vmatmul.mubr.f32.gmra.mxu0 %v4327
  %v4429 = vpop.f32.mrf.mxu0
  %v4430 = vadd.f32 %v4299, %v4429
  %v4431 = vpop.f32.mrf.mxu0
  %4432 = vmatprep.mubr.f32.mxu0 0.0
  %4433 = vmatmul.mubr.f32.gmra.mxu0 %v4330
  %v4434 = vpop.f32.mrf.mxu0
  %v4435 = vadd.f32 %v4304, %v4434
  %v4436 = vpop.f32.mrf.mxu0
  %4437 = vmatprep.mubr.f32.mxu0 0.0
  %4438 = vmatmul.mubr.f32.gmra.mxu0 %v4333
  %v4439 = vpop.f32.mrf.mxu0
  %v4440 = vadd.f32 %v4309, %v4439
  %v4441 = vpop.f32.mrf.mxu0
  %4442 = vdwg.mxu0
  %v4443 = vmul.f32 %v4405, 0.999995
  %v4444 = vmul.f32 %v4410, 0.999995
  %v4445 = vmul.f32 %v4415, 0.999995
  %v4446 = vmul.f32 %v4420, 0.999995
  %v4447 = vmul.f32 %v4425, 0.999995
  %v4448 = vmul.f32 %v4430, 0.999995
  %v4449 = vmul.f32 %v4435, 0.999995
  %v4450 = vmul.f32 %v4440, 0.999995
  %v4451 = vtanh.pop %v4443
  %v4452 = vtanh.pop %v4444
  %v4453 = vtanh.pop %v4445
  %v4454 = vtanh.pop %v4446
  %v4455 = vtanh.pop %v4447
  %v4456 = vtanh.pop %v4448
  %v4457 = vtanh.pop %v4449
  %v4458 = vtanh.pop %v4450
  %v4459 = vadd.f32 %v4451, %v3764
  %v4460 = vadd.f32 %v4452, %v3765
  %v4461 = vadd.f32 %v4453, %v3766
  %v4462 = vadd.f32 %v4454, %v3767
  %v4463 = vadd.f32 %v4455, %v3768
  %v4464 = vadd.f32 %v4456, %v3769
  %v4465 = vadd.f32 %v4457, %v3770
  %v4466 = vadd.f32 %v4458, %v3771
  %s4467 = scalar_lea.vmem %s15, 128
  %v4468 = vld [vmem:[%s4467] sm:$0xff]
  %v4469 = vld [vmem:[%s4467 + $0x8] sm:$0xff]
  %v4470 = vld [vmem:[%s4467 + $0x10] sm:$0xff]
  %v4471 = vld [vmem:[%s4467 + $0x18] sm:$0xff]
  %v4472 = vld [vmem:[%s4467 + $0x20] sm:$0xff]
  %v4473 = vld [vmem:[%s4467 + $0x28] sm:$0xff]
  %v4474 = vld [vmem:[%s4467 + $0x30] sm:$0xff]
  %v4475 = vld [vmem:[%s4467 + $0x38] sm:$0xff]
  %s4476 = scalar_lea.vmem %s16, 144
  %v4477 = vld [vmem:[%s4476] sm:$0xff]
  %v4478 = vld [vmem:[%s4476 + $0x8] sm:$0xff]
  %v4479 = vld [vmem:[%s4476 + $0x10] sm:$0xff]
  %v4480 = vld [vmem:[%s4476 + $0x18] sm:$0xff]
  %v4481 = vld [vmem:[%s4476 + $0x20] sm:$0xff]
  %v4482 = vld [vmem:[%s4476 + $0x28] sm:$0xff]
  %v4483 = vld [vmem:[%s4476 + $0x30] sm:$0xff]
  %v4484 = vld [vmem:[%s4476 + $0x38] sm:$0xff]
  %v4485 = vld [vmem:[%s4476 + $0x40] sm:$0x3]
  %s4486 = scalar_lea.vmem %s17, 128
  %v4487 = vld [vmem:[%s4486] sm:$0xff]
  %v4488 = vld [vmem:[%s4486 + $0x8] sm:$0xff]
  %v4489 = vld [vmem:[%s4486 + $0x10] sm:$0xff]
  %v4490 = vld [vmem:[%s4486 + $0x18] sm:$0xff]
  %v4491 = vld [vmem:[%s4486 + $0x20] sm:$0xff]
  %v4492 = vld [vmem:[%s4486 + $0x28] sm:$0xff]
  %v4493 = vld [vmem:[%s4486 + $0x30] sm:$0xff]
  %v4494 = vld [vmem:[%s4486 + $0x38] sm:$0xff]
  %v4496 = vsel %vm922, %v4468, 0
  %v4499 = vsel %vm922, %v4469, 0
  %v4502 = vsel %vm922, %v4470, 0
  %v4505 = vsel %vm922, %v4471, 0
  %v4508 = vsel %vm922, %v4472, 0
  %v4511 = vsel %vm922, %v4473, 0
  %v4514 = vsel %vm922, %v4474, 0
  %v4517 = vsel %vm922, %v4475, 0
  %4519 = vmatprep.subr.mxu0 0.0
  %4520 = vmatpush1.msra.mxu0 0.0
  %4521 = vmatprep.subr.mxu0 0.0
  %4522 = vmatpush1.msra.mxu0 0.0
  %4523 = vmatprep.subr.mxu0 0.0
  %4524 = vmatpush1.msra.mxu0 0.0
  %4525 = vmatprep.subr.mxu0 0.0
  %4526 = vmatpush1.msra.mxu0 0.0
  %4527 = vmatprep.subr.mxu0 0.0
  %4528 = vmatpush1.msra.mxu0 0.0
  %4529 = vmatprep.subr.mxu0 0.0
  %4530 = vmatpush1.msra.mxu0 0.0
  %4531 = vmatprep.subr.mxu0 0.0
  %4532 = vmatpush1.msra.mxu0 0.0
  %4533 = vmatprep.subr.mxu0 0.0
  %4534 = vmatpush1.msra.mxu0 0.0
  %4535 = vmatprep.subr.mxu0 0.0
  %4536 = vmatpush1.msra.mxu0 %v4466
  %4537 = vmatprep.subr.mxu0 0.0
  %4538 = vmatpush1.msra.mxu0 %v4465
  %4539 = vmatprep.subr.mxu0 0.0
  %4540 = vmatpush1.msra.mxu0 %v4464
  %4541 = vmatprep.subr.mxu0 0.0
  %4542 = vmatpush1.msra.mxu0 %v4463
  %4543 = vmatprep.subr.mxu0 0.0
  %4544 = vmatpush1.msra.mxu0 %v4462
  %4545 = vmatprep.subr.mxu0 0.0
  %4546 = vmatpush1.msra.mxu0 %v4461
  %4547 = vmatprep.subr.mxu0 0.0
  %4548 = vmatpush1.msra.mxu0 %v4460
  %4549 = vmatprep.subr.mxu0 0.0
  %4550 = vmatpush1.msra.mxu0 %v4459
  %4551 = vmatprep.subr.mxu0 0.0
  %4552 = vmatpush2.msra.mxu0 0.0
  %4553 = vmatprep.subr.mxu0 0.0
  %4554 = vmatpush2.msra.mxu0 0.0
  %4555 = vmatprep.subr.mxu0 0.0
  %4556 = vmatpush2.msra.mxu0 0.0
  %4557 = vmatprep.subr.mxu0 0.0
  %4558 = vmatpush2.msra.mxu0 0.0
  %4559 = vmatprep.subr.mxu0 0.0
  %4560 = vmatpush2.msra.mxu0 0.0
  %4561 = vmatprep.subr.mxu0 0.0
  %4562 = vmatpush2.msra.mxu0 0.0
  %4563 = vmatprep.subr.mxu0 0.0
  %4564 = vmatpush2.msra.mxu0 0.0
  %4565 = vmatprep.subr.mxu0 0.0
  %4566 = vmatpush2.msra.mxu0 0.0
  %4567 = vmatprep.subr.mxu0 0.0
  %4568 = vmatpush2.msra.mxu0 0.0
  %4569 = vmatprep.subr.mxu0 0.0
  %4570 = vmatpush2.msra.mxu0 0.0
  %4571 = vmatprep.subr.mxu0 0.0
  %4572 = vmatpush2.msra.mxu0 0.0
  %4573 = vmatprep.subr.mxu0 0.0
  %4574 = vmatpush2.msra.mxu0 0.0
  %4575 = vmatprep.subr.mxu0 0.0
  %4576 = vmatpush2.msra.mxu0 0.0
  %4577 = vmatprep.subr.mxu0 0.0
  %4578 = vmatpush2.msra.mxu0 0.0
  %4579 = vmatprep.subr.mxu0 0.0
  %4580 = vmatpush2.msra.mxu0 0.0
  %4581 = vmatprep.subr.mxu0 0.0
  %4582 = vmatpush2.msra.mxu0 0.0
  %4583 = vmatprep.mubr.f32.mxu0 0.0
  %4584 = vmatmul.mubr.f32.gmra.mxu0 %v4496
  %v4585 = vpop.f32.mrf.mxu0
  %v4586 = vadd.f32 0.0, %v4585
  %v4587 = vpop.f32.mrf.mxu0
  %4588 = vmatprep.mubr.f32.mxu0 0.0
  %4589 = vmatmul.mubr.f32.gmra.mxu0 %v4499
  %v4590 = vpop.f32.mrf.mxu0
  %v4591 = vadd.f32 0.0, %v4590
  %v4592 = vpop.f32.mrf.mxu0
  %4593 = vmatprep.mubr.f32.mxu0 0.0
  %4594 = vmatmul.mubr.f32.gmra.mxu0 %v4502
  %v4595 = vpop.f32.mrf.mxu0
  %v4596 = vadd.f32 0.0, %v4595
  %v4597 = vpop.f32.mrf.mxu0
  %4598 = vmatprep.mubr.f32.mxu0 0.0
  %4599 = vmatmul.mubr.f32.gmra.mxu0 %v4505
  %v4600 = vpop.f32.mrf.mxu0
  %v4601 = vadd.f32 0.0, %v4600
  %v4602 = vpop.f32.mrf.mxu0
  %4603 = vmatprep.mubr.f32.mxu0 0.0
  %4604 = vmatmul.mubr.f32.gmra.mxu0 %v4508
  %v4605 = vpop.f32.mrf.mxu0
  %v4606 = vadd.f32 0.0, %v4605
  %v4607 = vpop.f32.mrf.mxu0
  %4608 = vmatprep.mubr.f32.mxu0 0.0
  %4609 = vmatmul.mubr.f32.gmra.mxu0 %v4511
  %v4610 = vpop.f32.mrf.mxu0
  %v4611 = vadd.f32 0.0, %v4610
  %v4612 = vpop.f32.mrf.mxu0
  %4613 = vmatprep.mubr.f32.mxu0 0.0
  %4614 = vmatmul.mubr.f32.gmra.mxu0 %v4514
  %v4615 = vpop.f32.mrf.mxu0
  %v4616 = vadd.f32 0.0, %v4615
  %v4617 = vpop.f32.mrf.mxu0
  %4618 = vmatprep.mubr.f32.mxu0 0.0
  %4619 = vmatmul.mubr.f32.gmra.mxu0 %v4517
  %v4620 = vpop.f32.mrf.mxu0
  %v4621 = vadd.f32 0.0, %v4620
  %v4622 = vpop.f32.mrf.mxu0
  %4623 = vdwg.mxu0
  %4625 = vset.pattern.permute.xlu0 0
  %4626 = vperm.xlu0 %4625, %v4487
  %v4627 = vpop.permute.xlu0 %4626
  %4630 = vset.pattern.permute.xlu0 0
  %4631 = vperm.xlu0 %4630, %v4488
  %v4632 = vpop.permute.xlu0 %4631
  %4635 = vset.pattern.permute.xlu0 0
  %4636 = vperm.xlu0 %4635, %v4489
  %v4637 = vpop.permute.xlu0 %4636
  %4640 = vset.pattern.permute.xlu0 0
  %4641 = vperm.xlu0 %4640, %v4490
  %v4642 = vpop.permute.xlu0 %4641
  %4645 = vset.pattern.permute.xlu0 0
  %4646 = vperm.xlu0 %4645, %v4491
  %v4647 = vpop.permute.xlu0 %4646
  %4650 = vset.pattern.permute.xlu0 0
  %4651 = vperm.xlu0 %4650, %v4492
  %v4652 = vpop.permute.xlu0 %4651
  %4655 = vset.pattern.permute.xlu0 0
  %4656 = vperm.xlu0 %4655, %v4493
  %v4657 = vpop.permute.xlu0 %4656
  %4660 = vset.pattern.permute.xlu0 0
  %4661 = vperm.xlu0 %4660, %v4494
  %v4662 = vpop.permute.xlu0 %4661
  %v4665 = vsel %vm3623, %v4586, 0
  %v4668 = vsel %vm3623, %v4591, 0
  %v4671 = vsel %vm3623, %v4596, 0
  %v4674 = vsel %vm3623, %v4601, 0
  %v4677 = vsel %vm3623, %v4606, 0
  %v4680 = vsel %vm3623, %v4611, 0
  %v4683 = vsel %vm3623, %v4616, 0
  %v4686 = vsel %vm3623, %v4621, 0
  %v4689 = vsel %vm2638, %v4485, 0
  %4691 = vmatprep.subr.mxu0 0.0
  %4692 = vmatpush1.msra.mxu0 0.0
  %4693 = vmatprep.subr.mxu0 0.0
  %4694 = vmatpush1.msra.mxu0 0.0
  %4695 = vmatprep.subr.mxu0 0.0
  %4696 = vmatpush1.msra.mxu0 0.0
  %4697 = vmatprep.subr.mxu0 0.0
  %4698 = vmatpush1.msra.mxu0 0.0
  %4699 = vmatprep.subr.mxu0 0.0
  %4700 = vmatpush1.msra.mxu0 0.0
  %4701 = vmatprep.subr.mxu0 0.0
  %4702 = vmatpush1.msra.mxu0 0.0
  %4703 = vmatprep.subr.mxu0 0.0
  %4704 = vmatpush1.msra.mxu0 0.0
  %4705 = vmatprep.subr.mxu0 0.0
  %4706 = vmatpush1.msra.mxu0 %v4689
  %4707 = vmatprep.subr.mxu0 0.0
  %4708 = vmatpush1.msra.mxu0 %v4484
  %4709 = vmatprep.subr.mxu0 0.0
  %4710 = vmatpush1.msra.mxu0 %v4483
  %4711 = vmatprep.subr.mxu0 0.0
  %4712 = vmatpush1.msra.mxu0 %v4482
  %4713 = vmatprep.subr.mxu0 0.0
  %4714 = vmatpush1.msra.mxu0 %v4481
  %4715 = vmatprep.subr.mxu0 0.0
  %4716 = vmatpush1.msra.mxu0 %v4480
  %4717 = vmatprep.subr.mxu0 0.0
  %4718 = vmatpush1.msra.mxu0 %v4479
  %4719 = vmatprep.subr.mxu0 0.0
  %4720 = vmatpush1.msra.mxu0 %v4478
  %4721 = vmatprep.subr.mxu0 0.0
  %4722 = vmatpush1.msra.mxu0 %v4477
  %4723 = vmatprep.subr.mxu0 0.0
  %4724 = vmatpush2.msra.mxu0 0.0
  %4725 = vmatprep.subr.mxu0 0.0
  %4726 = vmatpush2.msra.mxu0 0.0
  %4727 = vmatprep.subr.mxu0 0.0
  %4728 = vmatpush2.msra.mxu0 0.0
  %4729 = vmatprep.subr.mxu0 0.0
  %4730 = vmatpush2.msra.mxu0 0.0
  %4731 = vmatprep.subr.mxu0 0.0
  %4732 = vmatpush2.msra.mxu0 0.0
  %4733 = vmatprep.subr.mxu0 0.0
  %4734 = vmatpush2.msra.mxu0 0.0
  %4735 = vmatprep.subr.mxu0 0.0
  %4736 = vmatpush2.msra.mxu0 0.0
  %4737 = vmatprep.subr.mxu0 0.0
  %4738 = vmatpush2.msra.mxu0 0.0
  %4739 = vmatprep.subr.mxu0 0.0
  %4740 = vmatpush2.msra.mxu0 0.0
  %4741 = vmatprep.subr.mxu0 0.0
  %4742 = vmatpush2.msra.mxu0 0.0
  %4743 = vmatprep.subr.mxu0 0.0
  %4744 = vmatpush2.msra.mxu0 0.0
  %4745 = vmatprep.subr.mxu0 0.0
  %4746 = vmatpush2.msra.mxu0 0.0
  %4747 = vmatprep.subr.mxu0 0.0
  %4748 = vmatpush2.msra.mxu0 0.0
  %4749 = vmatprep.subr.mxu0 0.0
  %4750 = vmatpush2.msra.mxu0 0.0
  %4751 = vmatprep.subr.mxu0 0.0
  %4752 = vmatpush2.msra.mxu0 0.0
  %4753 = vmatprep.subr.mxu0 0.0
  %4754 = vmatpush2.msra.mxu0 0.0
  %4755 = vmatprep.mubr.f32.mxu0 0.0
  %4756 = vmatmul.mubr.f32.gmra.mxu0 %v4665
  %v4757 = vpop.f32.mrf.mxu0
  %v4758 = vadd.f32 %v4627, %v4757
  %v4759 = vpop.f32.mrf.mxu0
  %4760 = vmatprep.mubr.f32.mxu0 0.0
  %4761 = vmatmul.mubr.f32.gmra.mxu0 %v4668
  %v4762 = vpop.f32.mrf.mxu0
  %v4763 = vadd.f32 %v4632, %v4762
  %v4764 = vpop.f32.mrf.mxu0
  %4765 = vmatprep.mubr.f32.mxu0 0.0
  %4766 = vmatmul.mubr.f32.gmra.mxu0 %v4671
  %v4767 = vpop.f32.mrf.mxu0
  %v4768 = vadd.f32 %v4637, %v4767
  %v4769 = vpop.f32.mrf.mxu0
  %4770 = vmatprep.mubr.f32.mxu0 0.0
  %4771 = vmatmul.mubr.f32.gmra.mxu0 %v4674
  %v4772 = vpop.f32.mrf.mxu0
  %v4773 = vadd.f32 %v4642, %v4772
  %v4774 = vpop.f32.mrf.mxu0
  %4775 = vmatprep.mubr.f32.mxu0 0.0
  %4776 = vmatmul.mubr.f32.gmra.mxu0 %v4677
  %v4777 = vpop.f32.mrf.mxu0
  %v4778 = vadd.f32 %v4647, %v4777
  %v4779 = vpop.f32.mrf.mxu0
  %4780 = vmatprep.mubr.f32.mxu0 0.0
  %4781 = vmatmul.mubr.f32.gmra.mxu0 %v4680
  %v4782 = vpop.f32.mrf.mxu0
  %v4783 = vadd.f32 %v4652, %v4782
  %v4784 = vpop.f32.mrf.mxu0
  %4785 = vmatprep.mubr.f32.mxu0 0.0
  %4786 = vmatmul.mubr.f32.gmra.mxu0 %v4683
  %v4787 = vpop.f32.mrf.mxu0
  %v4788 = vadd.f32 %v4657, %v4787
  %v4789 = vpop.f32.mrf.mxu0
  %4790 = vmatprep.mubr.f32.mxu0 0.0
  %4791 = vmatmul.mubr.f32.gmra.mxu0 %v4686
  %v4792 = vpop.f32.mrf.mxu0
  %v4793 = vadd.f32 %v4662, %v4792
  %v4794 = vpop.f32.mrf.mxu0
  %4795 = vdwg.mxu0
  %v4796 = vmul.f32 %v4758, 0.999995
  %v4797 = vmul.f32 %v4763, 0.999995
  %v4798 = vmul.f32 %v4768, 0.999995
  %v4799 = vmul.f32 %v4773, 0.999995
  %v4800 = vmul.f32 %v4778, 0.999995
  %v4801 = vmul.f32 %v4783, 0.999995
  %v4802 = vmul.f32 %v4788, 0.999995
  %v4803 = vmul.f32 %v4793, 0.999995
  %v4804 = vtanh.pop %v4796
  %v4805 = vtanh.pop %v4797
  %v4806 = vtanh.pop %v4798
  %v4807 = vtanh.pop %v4799
  %v4808 = vtanh.pop %v4800
  %v4809 = vtanh.pop %v4801
  %v4810 = vtanh.pop %v4802
  %v4811 = vtanh.pop %v4803
  %s4812 = scalar_lea.vmem %s15, 192
  %v4813 = vld [vmem:[%s4812] sm:$0xff]
  %v4814 = vld [vmem:[%s4812 + $0x8] sm:$0xff]
  %v4815 = vld [vmem:[%s4812 + $0x10] sm:$0xff]
  %v4816 = vld [vmem:[%s4812 + $0x18] sm:$0xff]
  %v4817 = vld [vmem:[%s4812 + $0x20] sm:$0xff]
  %v4818 = vld [vmem:[%s4812 + $0x28] sm:$0xff]
  %v4819 = vld [vmem:[%s4812 + $0x30] sm:$0xff]
  %v4820 = vld [vmem:[%s4812 + $0x38] sm:$0xff]
  %s4821 = scalar_lea.vmem %s16, 216
  %v4822 = vld [vmem:[%s4821] sm:$0xff]
  %v4823 = vld [vmem:[%s4821 + $0x8] sm:$0xff]
  %v4824 = vld [vmem:[%s4821 + $0x10] sm:$0xff]
  %v4825 = vld [vmem:[%s4821 + $0x18] sm:$0xff]
  %v4826 = vld [vmem:[%s4821 + $0x20] sm:$0xff]
  %v4827 = vld [vmem:[%s4821 + $0x28] sm:$0xff]
  %v4828 = vld [vmem:[%s4821 + $0x30] sm:$0xff]
  %v4829 = vld [vmem:[%s4821 + $0x38] sm:$0xff]
  %v4830 = vld [vmem:[%s4821 + $0x40] sm:$0x3]
  %s4831 = scalar_lea.vmem %s17, 192
  %v4832 = vld [vmem:[%s4831] sm:$0xff]
  %v4833 = vld [vmem:[%s4831 + $0x8] sm:$0xff]
  %v4834 = vld [vmem:[%s4831 + $0x10] sm:$0xff]
  %v4835 = vld [vmem:[%s4831 + $0x18] sm:$0xff]
  %v4836 = vld [vmem:[%s4831 + $0x20] sm:$0xff]
  %v4837 = vld [vmem:[%s4831 + $0x28] sm:$0xff]
  %v4838 = vld [vmem:[%s4831 + $0x30] sm:$0xff]
  %v4839 = vld [vmem:[%s4831 + $0x38] sm:$0xff]
  %v4841 = vsel %vm922, %v4813, 0
  %v4844 = vsel %vm922, %v4814, 0
  %v4847 = vsel %vm922, %v4815, 0
  %v4850 = vsel %vm922, %v4816, 0
  %v4853 = vsel %vm922, %v4817, 0
  %v4856 = vsel %vm922, %v4818, 0
  %v4859 = vsel %vm922, %v4819, 0
  %v4862 = vsel %vm922, %v4820, 0
  %4864 = vmatprep.subr.mxu0 0.0
  %4865 = vmatpush1.msra.mxu0 0.0
  %4866 = vmatprep.subr.mxu0 0.0
  %4867 = vmatpush1.msra.mxu0 0.0
  %4868 = vmatprep.subr.mxu0 0.0
  %4869 = vmatpush1.msra.mxu0 0.0
  %4870 = vmatprep.subr.mxu0 0.0
  %4871 = vmatpush1.msra.mxu0 0.0
  %4872 = vmatprep.subr.mxu0 0.0
  %4873 = vmatpush1.msra.mxu0 0.0
  %4874 = vmatprep.subr.mxu0 0.0
  %4875 = vmatpush1.msra.mxu0 0.0
  %4876 = vmatprep.subr.mxu0 0.0
  %4877 = vmatpush1.msra.mxu0 0.0
  %4878 = vmatprep.subr.mxu0 0.0
  %4879 = vmatpush1.msra.mxu0 0.0
  %4880 = vmatprep.subr.mxu0 0.0
  %4881 = vmatpush1.msra.mxu0 %v4811
  %4882 = vmatprep.subr.mxu0 0.0
  %4883 = vmatpush1.msra.mxu0 %v4810
  %4884 = vmatprep.subr.mxu0 0.0
  %4885 = vmatpush1.msra.mxu0 %v4809
  %4886 = vmatprep.subr.mxu0 0.0
  %4887 = vmatpush1.msra.mxu0 %v4808
  %4888 = vmatprep.subr.mxu0 0.0
  %4889 = vmatpush1.msra.mxu0 %v4807
  %4890 = vmatprep.subr.mxu0 0.0
  %4891 = vmatpush1.msra.mxu0 %v4806
  %4892 = vmatprep.subr.mxu0 0.0
  %4893 = vmatpush1.msra.mxu0 %v4805
  %4894 = vmatprep.subr.mxu0 0.0
  %4895 = vmatpush1.msra.mxu0 %v4804
  %4896 = vmatprep.subr.mxu0 0.0
  %4897 = vmatpush2.msra.mxu0 0.0
  %4898 = vmatprep.subr.mxu0 0.0
  %4899 = vmatpush2.msra.mxu0 0.0
  %4900 = vmatprep.subr.mxu0 0.0
  %4901 = vmatpush2.msra.mxu0 0.0
  %4902 = vmatprep.subr.mxu0 0.0
  %4903 = vmatpush2.msra.mxu0 0.0
  %4904 = vmatprep.subr.mxu0 0.0
  %4905 = vmatpush2.msra.mxu0 0.0
  %4906 = vmatprep.subr.mxu0 0.0
  %4907 = vmatpush2.msra.mxu0 0.0
  %4908 = vmatprep.subr.mxu0 0.0
  %4909 = vmatpush2.msra.mxu0 0.0
  %4910 = vmatprep.subr.mxu0 0.0
  %4911 = vmatpush2.msra.mxu0 0.0
  %4912 = vmatprep.subr.mxu0 0.0
  %4913 = vmatpush2.msra.mxu0 0.0
  %4914 = vmatprep.subr.mxu0 0.0
  %4915 = vmatpush2.msra.mxu0 0.0
  %4916 = vmatprep.subr.mxu0 0.0
  %4917 = vmatpush2.msra.mxu0 0.0
  %4918 = vmatprep.subr.mxu0 0.0
  %4919 = vmatpush2.msra.mxu0 0.0
  %4920 = vmatprep.subr.mxu0 0.0
  %4921 = vmatpush2.msra.mxu0 0.0
  %4922 = vmatprep.subr.mxu0 0.0
  %4923 = vmatpush2.msra.mxu0 0.0
  %4924 = vmatprep.subr.mxu0 0.0
  %4925 = vmatpush2.msra.mxu0 0.0
  %4926 = vmatprep.subr.mxu0 0.0
  %4927 = vmatpush2.msra.mxu0 0.0
  %4928 = vmatprep.mubr.f32.mxu0 0.0
  %4929 = vmatmul.mubr.f32.gmra.mxu0 %v4841
  %v4930 = vpop.f32.mrf.mxu0
  %v4931 = vadd.f32 0.0, %v4930
  %v4932 = vpop.f32.mrf.mxu0
  %4933 = vmatprep.mubr.f32.mxu0 0.0
  %4934 = vmatmul.mubr.f32.gmra.mxu0 %v4844
  %v4935 = vpop.f32.mrf.mxu0
  %v4936 = vadd.f32 0.0, %v4935
  %v4937 = vpop.f32.mrf.mxu0
  %4938 = vmatprep.mubr.f32.mxu0 0.0
  %4939 = vmatmul.mubr.f32.gmra.mxu0 %v4847
  %v4940 = vpop.f32.mrf.mxu0
  %v4941 = vadd.f32 0.0, %v4940
  %v4942 = vpop.f32.mrf.mxu0
  %4943 = vmatprep.mubr.f32.mxu0 0.0
  %4944 = vmatmul.mubr.f32.gmra.mxu0 %v4850
  %v4945 = vpop.f32.mrf.mxu0
  %v4946 = vadd.f32 0.0, %v4945
  %v4947 = vpop.f32.mrf.mxu0
  %4948 = vmatprep.mubr.f32.mxu0 0.0
  %4949 = vmatmul.mubr.f32.gmra.mxu0 %v4853
  %v4950 = vpop.f32.mrf.mxu0
  %v4951 = vadd.f32 0.0, %v4950
  %v4952 = vpop.f32.mrf.mxu0
  %4953 = vmatprep.mubr.f32.mxu0 0.0
  %4954 = vmatmul.mubr.f32.gmra.mxu0 %v4856
  %v4955 = vpop.f32.mrf.mxu0
  %v4956 = vadd.f32 0.0, %v4955
  %v4957 = vpop.f32.mrf.mxu0
  %4958 = vmatprep.mubr.f32.mxu0 0.0
  %4959 = vmatmul.mubr.f32.gmra.mxu0 %v4859
  %v4960 = vpop.f32.mrf.mxu0
  %v4961 = vadd.f32 0.0, %v4960
  %v4962 = vpop.f32.mrf.mxu0
  %4963 = vmatprep.mubr.f32.mxu0 0.0
  %4964 = vmatmul.mubr.f32.gmra.mxu0 %v4862
  %v4965 = vpop.f32.mrf.mxu0
  %v4966 = vadd.f32 0.0, %v4965
  %v4967 = vpop.f32.mrf.mxu0
  %4968 = vdwg.mxu0
  %4970 = vset.pattern.permute.xlu0 0
  %4971 = vperm.xlu0 %4970, %v4832
  %v4972 = vpop.permute.xlu0 %4971
  %4975 = vset.pattern.permute.xlu0 0
  %4976 = vperm.xlu0 %4975, %v4833
  %v4977 = vpop.permute.xlu0 %4976
  %4980 = vset.pattern.permute.xlu0 0
  %4981 = vperm.xlu0 %4980, %v4834
  %v4982 = vpop.permute.xlu0 %4981
  %4985 = vset.pattern.permute.xlu0 0
  %4986 = vperm.xlu0 %4985, %v4835
  %v4987 = vpop.permute.xlu0 %4986
  %4990 = vset.pattern.permute.xlu0 0
  %4991 = vperm.xlu0 %4990, %v4836
  %v4992 = vpop.permute.xlu0 %4991
  %4995 = vset.pattern.permute.xlu0 0
  %4996 = vperm.xlu0 %4995, %v4837
  %v4997 = vpop.permute.xlu0 %4996
  %5000 = vset.pattern.permute.xlu0 0
  %5001 = vperm.xlu0 %5000, %v4838
  %v5002 = vpop.permute.xlu0 %5001
  %5005 = vset.pattern.permute.xlu0 0
  %5006 = vperm.xlu0 %5005, %v4839
  %v5007 = vpop.permute.xlu0 %5006
  %v5010 = vsel %vm3623, %v4931, 0
  %v5013 = vsel %vm3623, %v4936, 0
  %v5016 = vsel %vm3623, %v4941, 0
  %v5019 = vsel %vm3623, %v4946, 0
  %v5022 = vsel %vm3623, %v4951, 0
  %v5025 = vsel %vm3623, %v4956, 0
  %v5028 = vsel %vm3623, %v4961, 0
  %v5031 = vsel %vm3623, %v4966, 0
  %v5034 = vsel %vm2638, %v4830, 0
  %5036 = vmatprep.subr.mxu0 0.0
  %5037 = vmatpush1.msra.mxu0 0.0
  %5038 = vmatprep.subr.mxu0 0.0
  %5039 = vmatpush1.msra.mxu0 0.0
  %5040 = vmatprep.subr.mxu0 0.0
  %5041 = vmatpush1.msra.mxu0 0.0
  %5042 = vmatprep.subr.mxu0 0.0
  %5043 = vmatpush1.msra.mxu0 0.0
  %5044 = vmatprep.subr.mxu0 0.0
  %5045 = vmatpush1.msra.mxu0 0.0
  %5046 = vmatprep.subr.mxu0 0.0
  %5047 = vmatpush1.msra.mxu0 0.0
  %5048 = vmatprep.subr.mxu0 0.0
  %5049 = vmatpush1.msra.mxu0 0.0
  %5050 = vmatprep.subr.mxu0 0.0
  %5051 = vmatpush1.msra.mxu0 %v5034
  %5052 = vmatprep.subr.mxu0 0.0
  %5053 = vmatpush1.msra.mxu0 %v4829
  %5054 = vmatprep.subr.mxu0 0.0
  %5055 = vmatpush1.msra.mxu0 %v4828
  %5056 = vmatprep.subr.mxu0 0.0
  %5057 = vmatpush1.msra.mxu0 %v4827
  %5058 = vmatprep.subr.mxu0 0.0
  %5059 = vmatpush1.msra.mxu0 %v4826
  %5060 = vmatprep.subr.mxu0 0.0
  %5061 = vmatpush1.msra.mxu0 %v4825
  %5062 = vmatprep.subr.mxu0 0.0
  %5063 = vmatpush1.msra.mxu0 %v4824
  %5064 = vmatprep.subr.mxu0 0.0
  %5065 = vmatpush1.msra.mxu0 %v4823
  %5066 = vmatprep.subr.mxu0 0.0
  %5067 = vmatpush1.msra.mxu0 %v4822
  %5068 = vmatprep.subr.mxu0 0.0
  %5069 = vmatpush2.msra.mxu0 0.0
  %5070 = vmatprep.subr.mxu0 0.0
  %5071 = vmatpush2.msra.mxu0 0.0
  %5072 = vmatprep.subr.mxu0 0.0
  %5073 = vmatpush2.msra.mxu0 0.0
  %5074 = vmatprep.subr.mxu0 0.0
  %5075 = vmatpush2.msra.mxu0 0.0
  %5076 = vmatprep.subr.mxu0 0.0
  %5077 = vmatpush2.msra.mxu0 0.0
  %5078 = vmatprep.subr.mxu0 0.0
  %5079 = vmatpush2.msra.mxu0 0.0
  %5080 = vmatprep.subr.mxu0 0.0
  %5081 = vmatpush2.msra.mxu0 0.0
  %5082 = vmatprep.subr.mxu0 0.0
  %5083 = vmatpush2.msra.mxu0 0.0
  %5084 = vmatprep.subr.mxu0 0.0
  %5085 = vmatpush2.msra.mxu0 0.0
  %5086 = vmatprep.subr.mxu0 0.0
  %5087 = vmatpush2.msra.mxu0 0.0
  %5088 = vmatprep.subr.mxu0 0.0
  %5089 = vmatpush2.msra.mxu0 0.0
  %5090 = vmatprep.subr.mxu0 0.0
  %5091 = vmatpush2.msra.mxu0 0.0
  %5092 = vmatprep.subr.mxu0 0.0
  %5093 = vmatpush2.msra.mxu0 0.0
  %5094 = vmatprep.subr.mxu0 0.0
  %5095 = vmatpush2.msra.mxu0 0.0
  %5096 = vmatprep.subr.mxu0 0.0
  %5097 = vmatpush2.msra.mxu0 0.0
  %5098 = vmatprep.subr.mxu0 0.0
  %5099 = vmatpush2.msra.mxu0 0.0
  %5100 = vmatprep.mubr.f32.mxu0 0.0
  %5101 = vmatmul.mubr.f32.gmra.mxu0 %v5010
  %v5102 = vpop.f32.mrf.mxu0
  %v5103 = vadd.f32 %v4972, %v5102
  %v5104 = vpop.f32.mrf.mxu0
  %5105 = vmatprep.mubr.f32.mxu0 0.0
  %5106 = vmatmul.mubr.f32.gmra.mxu0 %v5013
  %v5107 = vpop.f32.mrf.mxu0
  %v5108 = vadd.f32 %v4977, %v5107
  %v5109 = vpop.f32.mrf.mxu0
  %5110 = vmatprep.mubr.f32.mxu0 0.0
  %5111 = vmatmul.mubr.f32.gmra.mxu0 %v5016
  %v5112 = vpop.f32.mrf.mxu0
  %v5113 = vadd.f32 %v4982, %v5112
  %v5114 = vpop.f32.mrf.mxu0
  %5115 = vmatprep.mubr.f32.mxu0 0.0
  %5116 = vmatmul.mubr.f32.gmra.mxu0 %v5019
  %v5117 = vpop.f32.mrf.mxu0
  %v5118 = vadd.f32 %v4987, %v5117
  %v5119 = vpop.f32.mrf.mxu0
  %5120 = vmatprep.mubr.f32.mxu0 0.0
  %5121 = vmatmul.mubr.f32.gmra.mxu0 %v5022
  %v5122 = vpop.f32.mrf.mxu0
  %v5123 = vadd.f32 %v4992, %v5122
  %v5124 = vpop.f32.mrf.mxu0
  %5125 = vmatprep.mubr.f32.mxu0 0.0
  %5126 = vmatmul.mubr.f32.gmra.mxu0 %v5025
  %v5127 = vpop.f32.mrf.mxu0
  %v5128 = vadd.f32 %v4997, %v5127
  %v5129 = vpop.f32.mrf.mxu0
  %5130 = vmatprep.mubr.f32.mxu0 0.0
  %5131 = vmatmul.mubr.f32.gmra.mxu0 %v5028
  %v5132 = vpop.f32.mrf.mxu0
  %v5133 = vadd.f32 %v5002, %v5132
  %v5134 = vpop.f32.mrf.mxu0
  %5135 = vmatprep.mubr.f32.mxu0 0.0
  %5136 = vmatmul.mubr.f32.gmra.mxu0 %v5031
  %v5137 = vpop.f32.mrf.mxu0
  %v5138 = vadd.f32 %v5007, %v5137
  %v5139 = vpop.f32.mrf.mxu0
  %5140 = vdwg.mxu0
  %v5141 = vmul.f32 %v5103, 0.999995
  %v5142 = vmul.f32 %v5108, 0.999995
  %v5143 = vmul.f32 %v5113, 0.999995
  %v5144 = vmul.f32 %v5118, 0.999995
  %v5145 = vmul.f32 %v5123, 0.999995
  %v5146 = vmul.f32 %v5128, 0.999995
  %v5147 = vmul.f32 %v5133, 0.999995
  %v5148 = vmul.f32 %v5138, 0.999995
  %v5149 = vtanh.pop %v5141
  %v5150 = vtanh.pop %v5142
  %v5151 = vtanh.pop %v5143
  %v5152 = vtanh.pop %v5144
  %v5153 = vtanh.pop %v5145
  %v5154 = vtanh.pop %v5146
  %v5155 = vtanh.pop %v5147
  %v5156 = vtanh.pop %v5148
  %v5157 = vadd.f32 %v5149, %v4459
  %v5158 = vadd.f32 %v5150, %v4460
  %v5159 = vadd.f32 %v5151, %v4461
  %v5160 = vadd.f32 %v5152, %v4462
  %v5161 = vadd.f32 %v5153, %v4463
  %v5162 = vadd.f32 %v5154, %v4464
  %v5163 = vadd.f32 %v5155, %v4465
  %v5164 = vadd.f32 %v5156, %v4466
  %v5165 = vld [vmem:[%s18] sm:$0xff]
  %v5166 = vld [vmem:[%s18 + $0x8] sm:$0xff]
  %v5167 = vld [vmem:[%s18 + $0x10] sm:$0xf]
  %v5168 = vld [vmem:[%s19] sm:$0xff]
  %v5169 = vld [vmem:[%s19 + $0x8] sm:$0xff]
  %v5170 = vld [vmem:[%s19 + $0x10] sm:$0xff]
  %v5171 = vld [vmem:[%s19 + $0x18] sm:$0xff]
  %v5172 = vld [vmem:[%s19 + $0x20] sm:$0xff]
  %v5173 = vld [vmem:[%s19 + $0x28] sm:$0xff]
  %v5174 = vld [vmem:[%s19 + $0x30] sm:$0xff]
  %v5175 = vld [vmem:[%s19 + $0x38] sm:$0xff]
  %v5176 = vld [vmem:[%s19 + $0x40] sm:$0x3]
  %v5177 = vld [vmem:[%s20] sm:$0xff]
  %v5178 = vld [vmem:[%s20 + $0x8] sm:$0xff]
  %v5179 = vld [vmem:[%s20 + $0x10] sm:$0xf]
  %v5181 = vsel %vm922, %v5165, 0
  %v5184 = vsel %vm922, %v5166, 0
  %v5187 = vsel %vm922, %v5167, 0
  %5189 = vmatprep.subr.mxu0 0.0
  %5190 = vmatpush1.msra.mxu0 0.0
  %5191 = vmatprep.subr.mxu0 0.0
  %5192 = vmatpush1.msra.mxu0 0.0
  %5193 = vmatprep.subr.mxu0 0.0
  %5194 = vmatpush1.msra.mxu0 0.0
  %5195 = vmatprep.subr.mxu0 0.0
  %5196 = vmatpush1.msra.mxu0 0.0
  %5197 = vmatprep.subr.mxu0 0.0
  %5198 = vmatpush1.msra.mxu0 0.0
  %5199 = vmatprep.subr.mxu0 0.0
  %5200 = vmatpush1.msra.mxu0 0.0
  %5201 = vmatprep.subr.mxu0 0.0
  %5202 = vmatpush1.msra.mxu0 0.0
  %5203 = vmatprep.subr.mxu0 0.0
  %5204 = vmatpush1.msra.mxu0 0.0
  %5205 = vmatprep.subr.mxu0 0.0
  %5206 = vmatpush1.msra.mxu0 %v5164
  %5207 = vmatprep.subr.mxu0 0.0
  %5208 = vmatpush1.msra.mxu0 %v5163
  %5209 = vmatprep.subr.mxu0 0.0
  %5210 = vmatpush1.msra.mxu0 %v5162
  %5211 = vmatprep.subr.mxu0 0.0
  %5212 = vmatpush1.msra.mxu0 %v5161
  %5213 = vmatprep.subr.mxu0 0.0
  %5214 = vmatpush1.msra.mxu0 %v5160
  %5215 = vmatprep.subr.mxu0 0.0
  %5216 = vmatpush1.msra.mxu0 %v5159
  %5217 = vmatprep.subr.mxu0 0.0
  %5218 = vmatpush1.msra.mxu0 %v5158
  %5219 = vmatprep.subr.mxu0 0.0
  %5220 = vmatpush1.msra.mxu0 %v5157
  %5221 = vmatprep.subr.mxu0 0.0
  %5222 = vmatpush2.msra.mxu0 0.0
  %5223 = vmatprep.subr.mxu0 0.0
  %5224 = vmatpush2.msra.mxu0 0.0
  %5225 = vmatprep.subr.mxu0 0.0
  %5226 = vmatpush2.msra.mxu0 0.0
  %5227 = vmatprep.subr.mxu0 0.0
  %5228 = vmatpush2.msra.mxu0 0.0
  %5229 = vmatprep.subr.mxu0 0.0
  %5230 = vmatpush2.msra.mxu0 0.0
  %5231 = vmatprep.subr.mxu0 0.0
  %5232 = vmatpush2.msra.mxu0 0.0
  %5233 = vmatprep.subr.mxu0 0.0
  %5234 = vmatpush2.msra.mxu0 0.0
  %5235 = vmatprep.subr.mxu0 0.0
  %5236 = vmatpush2.msra.mxu0 0.0
  %5237 = vmatprep.subr.mxu0 0.0
  %5238 = vmatpush2.msra.mxu0 0.0
  %5239 = vmatprep.subr.mxu0 0.0
  %5240 = vmatpush2.msra.mxu0 0.0
  %5241 = vmatprep.subr.mxu0 0.0
  %5242 = vmatpush2.msra.mxu0 0.0
  %5243 = vmatprep.subr.mxu0 0.0
  %5244 = vmatpush2.msra.mxu0 0.0
  %5245 = vmatprep.subr.mxu0 0.0
  %5246 = vmatpush2.msra.mxu0 0.0
  %5247 = vmatprep.subr.mxu0 0.0
  %5248 = vmatpush2.msra.mxu0 0.0
  %5249 = vmatprep.subr.mxu0 0.0
  %5250 = vmatpush2.msra.mxu0 0.0
  %5251 = vmatprep.subr.mxu0 0.0
  %5252 = vmatpush2.msra.mxu0 0.0
  %5253 = vmatprep.mubr.f32.mxu0 0.0
  %5254 = vmatmul.mubr.f32.gmra.mxu0 %v5181
  %v5255 = vpop.f32.mrf.mxu0
  %v5256 = vadd.f32 0.0, %v5255
  %v5257 = vpop.f32.mrf.mxu0
  %5258 = vmatprep.mubr.f32.mxu0 0.0
  %5259 = vmatmul.mubr.f32.gmra.mxu0 %v5184
  %v5260 = vpop.f32.mrf.mxu0
  %v5261 = vadd.f32 0.0, %v5260
  %v5262 = vpop.f32.mrf.mxu0
  %5263 = vmatprep.mubr.f32.mxu0 0.0
  %5264 = vmatmul.mubr.f32.gmra.mxu0 %v5187
  %v5265 = vpop.f32.mrf.mxu0
  %v5266 = vadd.f32 0.0, %v5265
  %v5267 = vpop.f32.mrf.mxu0
  %5268 = vdwg.mxu0
  %5270 = vset.pattern.permute.xlu0 0
  %5271 = vperm.xlu0 %5270, %v5177
  %v5272 = vpop.permute.xlu0 %5271
  %5275 = vset.pattern.permute.xlu0 0
  %5276 = vperm.xlu0 %5275, %v5178
  %v5277 = vpop.permute.xlu0 %5276
  %5280 = vset.pattern.permute.xlu0 0
  %5281 = vperm.xlu0 %5280, %v5179
  %v5282 = vpop.permute.xlu0 %5281
  %v5285 = vsel %vm3623, %v5256, 0
  %v5288 = vsel %vm3623, %v5261, 0
  %v5291 = vsel %vm3623, %v5266, 0
  %v5294 = vsel %vm2638, %v5176, 0
  %5296 = vmatprep.subr.mxu0 0.0
  %5297 = vmatpush1.msra.mxu0 0.0
  %5298 = vmatprep.subr.mxu0 0.0
  %5299 = vmatpush1.msra.mxu0 0.0
  %5300 = vmatprep.subr.mxu0 0.0
  %5301 = vmatpush1.msra.mxu0 0.0
  %5302 = vmatprep.subr.mxu0 0.0
  %5303 = vmatpush1.msra.mxu0 0.0
  %5304 = vmatprep.subr.mxu0 0.0
  %5305 = vmatpush1.msra.mxu0 0.0
  %5306 = vmatprep.subr.mxu0 0.0
  %5307 = vmatpush1.msra.mxu0 0.0
  %5308 = vmatprep.subr.mxu0 0.0
  %5309 = vmatpush1.msra.mxu0 0.0
  %5310 = vmatprep.subr.mxu0 0.0
  %5311 = vmatpush1.msra.mxu0 %v5294
  %5312 = vmatprep.subr.mxu0 0.0
  %5313 = vmatpush1.msra.mxu0 %v5175
  %5314 = vmatprep.subr.mxu0 0.0
  %5315 = vmatpush1.msra.mxu0 %v5174
  %5316 = vmatprep.subr.mxu0 0.0
  %5317 = vmatpush1.msra.mxu0 %v5173
  %5318 = vmatprep.subr.mxu0 0.0
  %5319 = vmatpush1.msra.mxu0 %v5172
  %5320 = vmatprep.subr.mxu0 0.0
  %5321 = vmatpush1.msra.mxu0 %v5171
  %5322 = vmatprep.subr.mxu0 0.0
  %5323 = vmatpush1.msra.mxu0 %v5170
  %5324 = vmatprep.subr.mxu0 0.0
  %5325 = vmatpush1.msra.mxu0 %v5169
  %5326 = vmatprep.subr.mxu0 0.0
  %5327 = vmatpush1.msra.mxu0 %v5168
  %5328 = vmatprep.subr.mxu0 0.0
  %5329 = vmatpush2.msra.mxu0 0.0
  %5330 = vmatprep.subr.mxu0 0.0
  %5331 = vmatpush2.msra.mxu0 0.0
  %5332 = vmatprep.subr.mxu0 0.0
  %5333 = vmatpush2.msra.mxu0 0.0
  %5334 = vmatprep.subr.mxu0 0.0
  %5335 = vmatpush2.msra.mxu0 0.0
  %5336 = vmatprep.subr.mxu0 0.0
  %5337 = vmatpush2.msra.mxu0 0.0
  %5338 = vmatprep.subr.mxu0 0.0
  %5339 = vmatpush2.msra.mxu0 0.0
  %5340 = vmatprep.subr.mxu0 0.0
  %5341 = vmatpush2.msra.mxu0 0.0
  %5342 = vmatprep.subr.mxu0 0.0
  %5343 = vmatpush2.msra.mxu0 0.0
  %5344 = vmatprep.subr.mxu0 0.0
  %5345 = vmatpush2.msra.mxu0 0.0
  %5346 = vmatprep.subr.mxu0 0.0
  %5347 = vmatpush2.msra.mxu0 0.0
  %5348 = vmatprep.subr.mxu0 0.0
  %5349 = vmatpush2.msra.mxu0 0.0
  %5350 = vmatprep.subr.mxu0 0.0
  %5351 = vmatpush2.msra.mxu0 0.0
  %5352 = vmatprep.subr.mxu0 0.0
  %5353 = vmatpush2.msra.mxu0 0.0
  %5354 = vmatprep.subr.mxu0 0.0
  %5355 = vmatpush2.msra.mxu0 0.0
  %5356 = vmatprep.subr.mxu0 0.0
  %5357 = vmatpush2.msra.mxu0 0.0
  %5358 = vmatprep.subr.mxu0 0.0
  %5359 = vmatpush2.msra.mxu0 0.0
  %5360 = vmatprep.mubr.f32.mxu0 0.0
  %5361 = vmatmul.mubr.f32.gmra.mxu0 %v5285
  %v5362 = vpop.f32.mrf.mxu0
  %v5363 = vadd.f32 %v5272, %v5362
  %v5364 = vpop.f32.mrf.mxu0
  %5365 = vmatprep.mubr.f32.mxu0 0.0
  %5366 = vmatmul.mubr.f32.gmra.mxu0 %v5288
  %v5367 = vpop.f32.mrf.mxu0
  %v5368 = vadd.f32 %v5277, %v5367
  %v5369 = vpop.f32.mrf.mxu0
  %5370 = vmatprep.mubr.f32.mxu0 0.0
  %5371 = vmatmul.mubr.f32.gmra.mxu0 %v5291
  %v5372 = vpop.f32.mrf.mxu0
  %v5373 = vadd.f32 %v5282, %v5372
  %v5374 = vpop.f32.mrf.mxu0
  %5375 = vdwg.mxu0
  %v5376 = vadd.f32 %v5363, %v2882
  %v5377 = vadd.f32 %v5368, %v3425
  %v5378 = vadd.f32 %v5373, %v3422
  %v5379 = vld [vmem:[%s21] sm:$0xff]
  %v5380 = vld [vmem:[%s21 + $0x8] sm:$0xff]
  %v5381 = vld [vmem:[%s21 + $0x10] sm:$0xff]
  %v5382 = vld [vmem:[%s21 + $0x18] sm:$0xff]
  %v5383 = vld [vmem:[%s21 + $0x20] sm:$0x7]
  %v5385 = vsel %vm3451, %v5379, 0
  %v5388 = vsel %vm3451, %v5380, 0
  %v5391 = vsel %vm3451, %v5381, 0
  %v5394 = vsel %vm3451, %v5382, 0
  %v5397 = vsel %vm3451, %v5383, 0
  %v5400 = vsel %vm616, %v5378, 0
  %5402 = vmatprep.subr.mxu0 0.0
  %5403 = vmatpush1.msra.mxu0 0.0
  %5404 = vmatprep.subr.mxu0 0.0
  %5405 = vmatpush1.msra.mxu0 0.0
  %5406 = vmatprep.subr.mxu0 0.0
  %5407 = vmatpush1.msra.mxu0 0.0
  %5408 = vmatprep.subr.mxu0 0.0
  %5409 = vmatpush1.msra.mxu0 0.0
  %5410 = vmatprep.subr.mxu0 0.0
  %5411 = vmatpush1.msra.mxu0 0.0
  %5412 = vmatprep.subr.mxu0 0.0
  %5413 = vmatpush1.msra.mxu0 0.0
  %5414 = vmatprep.subr.mxu0 0.0
  %5415 = vmatpush1.msra.mxu0 0.0
  %5416 = vmatprep.subr.mxu0 0.0
  %5417 = vmatpush1.msra.mxu0 0.0
  %5418 = vmatprep.subr.mxu0 0.0
  %5419 = vmatpush1.msra.mxu0 0.0
  %5420 = vmatprep.subr.mxu0 0.0
  %5421 = vmatpush1.msra.mxu0 0.0
  %5422 = vmatprep.subr.mxu0 0.0
  %5423 = vmatpush1.msra.mxu0 0.0
  %5424 = vmatprep.subr.mxu0 0.0
  %5425 = vmatpush1.msra.mxu0 0.0
  %5426 = vmatprep.subr.mxu0 0.0
  %5427 = vmatpush1.msra.mxu0 0.0
  %5428 = vmatprep.subr.mxu0 0.0
  %5429 = vmatpush1.msra.mxu0 %v5400
  %5430 = vmatprep.subr.mxu0 0.0
  %5431 = vmatpush1.msra.mxu0 %v5377
  %5432 = vmatprep.subr.mxu0 0.0
  %5433 = vmatpush1.msra.mxu0 %v5376
  %5434 = vmatprep.subr.mxu0 0.0
  %5435 = vmatpush2.msra.mxu0 0.0
  %5436 = vmatprep.subr.mxu0 0.0
  %5437 = vmatpush2.msra.mxu0 0.0
  %5438 = vmatprep.subr.mxu0 0.0
  %5439 = vmatpush2.msra.mxu0 0.0
  %5440 = vmatprep.subr.mxu0 0.0
  %5441 = vmatpush2.msra.mxu0 0.0
  %5442 = vmatprep.subr.mxu0 0.0
  %5443 = vmatpush2.msra.mxu0 0.0
  %5444 = vmatprep.subr.mxu0 0.0
  %5445 = vmatpush2.msra.mxu0 0.0
  %5446 = vmatprep.subr.mxu0 0.0
  %5447 = vmatpush2.msra.mxu0 0.0
  %5448 = vmatprep.subr.mxu0 0.0
  %5449 = vmatpush2.msra.mxu0 0.0
  %5450 = vmatprep.subr.mxu0 0.0
  %5451 = vmatpush2.msra.mxu0 0.0
  %5452 = vmatprep.subr.mxu0 0.0
  %5453 = vmatpush2.msra.mxu0 0.0
  %5454 = vmatprep.subr.mxu0 0.0
  %5455 = vmatpush2.msra.mxu0 0.0
  %5456 = vmatprep.subr.mxu0 0.0
  %5457 = vmatpush2.msra.mxu0 0.0
  %5458 = vmatprep.subr.mxu0 0.0
  %5459 = vmatpush2.msra.mxu0 0.0
  %5460 = vmatprep.subr.mxu0 0.0
  %5461 = vmatpush2.msra.mxu0 0.0
  %5462 = vmatprep.subr.mxu0 0.0
  %5463 = vmatpush2.msra.mxu0 0.0
  %5464 = vmatprep.subr.mxu0 0.0
  %5465 = vmatpush2.msra.mxu0 0.0
  %5466 = vmatprep.mubr.f32.mxu0 0.0
  %5467 = vmatmul.mubr.f32.gmra.mxu0 %v5385
  %v5468 = vpop.f32.mrf.mxu0
  %v5469 = vadd.f32 0.0, %v5468
  %v5470 = vpop.f32.mrf.mxu0
  %5471 = vmatprep.mubr.f32.mxu0 0.0
  %5472 = vmatmul.mubr.f32.gmra.mxu0 %v5388
  %v5473 = vpop.f32.mrf.mxu0
  %v5474 = vadd.f32 0.0, %v5473
  %v5475 = vpop.f32.mrf.mxu0
  %5476 = vmatprep.mubr.f32.mxu0 0.0
  %5477 = vmatmul.mubr.f32.gmra.mxu0 %v5391
  %v5478 = vpop.f32.mrf.mxu0
  %v5479 = vadd.f32 0.0, %v5478
  %v5480 = vpop.f32.mrf.mxu0
  %5481 = vmatprep.mubr.f32.mxu0 0.0
  %5482 = vmatmul.mubr.f32.gmra.mxu0 %v5394
  %v5483 = vpop.f32.mrf.mxu0
  %v5484 = vadd.f32 0.0, %v5483
  %v5485 = vpop.f32.mrf.mxu0
  %5486 = vmatprep.mubr.f32.mxu0 0.0
  %5487 = vmatmul.mubr.f32.gmra.mxu0 %v5397
  %v5488 = vpop.f32.mrf.mxu0
  %v5489 = vadd.f32 0.0, %v5488
  %v5490 = vpop.f32.mrf.mxu0
  %5491 = vdwg.mxu0
  %5492 = vst.msk [vmem:[%s22] sm:$0xff] %vm3623, %v5469
  %5493 = vst.msk [vmem:[%s22 + $0x8] sm:$0xff] %vm3623, %v5474
  %5494 = vst.msk [vmem:[%s22 + $0x10] sm:$0xff] %vm3623, %v5479
  %5495 = vst.msk [vmem:[%s22 + $0x18] sm:$0xff] %vm3623, %v5484
  %vm5496 = vcmask 534528
  %5497 = vst.msk [vmem:[%s22 + $0x20] sm:$0x7] %vm5496, %v5489
  // Predicated region
  $region90: #{mix_attention_forward.1} parent=0 // pred_check
    _
  $region91: #{mix_attention_forward.1} parent=0 // pred_check_branch
    %5499 = sbr.rel (0) target = $region93
  $region92: #{mix_attention_forward.1} parent=0 // pred_region
    _
  $region93: #{mix_attention_forward.1} parent=0 // pred_fallthru
    _
  // Predicated region
  $region94: #{mix_attention_forward.1} parent=0 // pred_check
    _
  $region95: #{mix_attention_forward.1} parent=0 // pred_check_branch
    %5501 = sbr.rel (0) target = $region97
  $region96: #{mix_attention_forward.1} parent=0 // pred_region
    _
  $region97: #{mix_attention_forward.1} parent=0 // pred_fallthru
    _

</llo_original>
